<compile_context>
chip_gen: v7x
topology: tpu7x:2x2x1
jax: 0.10.0
libtpu: 0.0.40
codegen_flags: <defaults>
</compile_context>

<pallas_src>
import jax
import jax.numpy as jnp
from jax.experimental import pallas as pl
from jax.experimental.pallas import tpu as pltpu


def _round_up(x, m):
    return (x + m - 1) // m * m


def _vae_kernel(x_ref, eps_ref,
                w1_ref, b1_ref, wmv_ref, bmv_ref,
                wd1_ref, bd1_ref, wd2_ref, bd2_ref,
                recon_ref, mv_ref):
    x = x_ref[...]                                             # (TM, IN_P) bf16

    # ---- encoder ----
    h = jnp.dot(x, w1_ref[...],
                preferred_element_type=jnp.float32) + b1_ref[...]
    h = jnp.maximum(h, 0.0)                                    # ReLU, (TM, H_P) f32

    # fused [mu | log_var] projection -> one lane-dense (TM, 2*ZP) tile
    mv = jnp.dot(h.astype(jnp.bfloat16), wmv_ref[...],
                 preferred_element_type=jnp.float32) + bmv_ref[...]
    mv = jnp.maximum(mv, 0.0)                                  # ReLU

    zp = mv.shape[-1] // 2
    mean = mv[:, :zp]                                          # (TM, ZP)
    log_var = mv[:, zp:]                                       # (TM, ZP)

    # ---- reparameterization: z = mean + eps * exp(log_var), eps ~ U[0,1) ----
    z = mean + eps_ref[...] * jnp.exp(log_var)                 # f32

    # ---- decoder ----
    d = jnp.dot(z.astype(jnp.bfloat16), wd1_ref[...],
                preferred_element_type=jnp.float32) + bd1_ref[...]
    d = jnp.maximum(d, 0.0)                                    # ReLU, (TM, H_P)

    logits = jnp.dot(d.astype(jnp.bfloat16), wd2_ref[...],
                     preferred_element_type=jnp.float32) + bd2_ref[...]
    recon_ref[...] = jax.nn.sigmoid(logits)                    # (TM, IN_P)

    mv_ref[...] = mv                                           # [mean | log_var]


def make_vae_forward(B, zdim, tm=None):
    IN, H = 784, 400
    IN_P = _round_up(IN, 128)            # 896
    H_P = _round_up(H, 128)              # 512
    ZP = _round_up(zdim, 64)             # 2*ZP is a multiple of 128 (lane-dense)

    if tm is None:
        tm = 256 if B >= 256 else _round_up(B, 8)   # 256 rows saturates v6e/v7x MXU
    B_pad = _round_up(B, tm)
    grid = (B_pad // tm,)

    def batch_spec(feat):
        return pl.BlockSpec((tm, feat), lambda i: (i, 0))

    def const_spec(shape):
        return pl.BlockSpec(shape, lambda i: (0, 0))   # weights stay VMEM-resident

    call = pl.pallas_call(
        _vae_kernel,
        out_shape=(
            jax.ShapeDtypeStruct((B_pad, IN_P), jnp.float32),    # reconstruction
            jax.ShapeDtypeStruct((B_pad, 2 * ZP), jnp.float32),  # [mean | log_var]
        ),
        grid_spec=pltpu.PrefetchScalarGridSpec(
            num_scalar_prefetch=0,
            grid=grid,
            in_specs=[
                batch_spec(IN_P),            # x
                batch_spec(ZP),              # eps
                const_spec((IN_P, H_P)),     # w1
                const_spec((1, H_P)),        # b1
                const_spec((H_P, 2 * ZP)),   # w_mu|w_var fused
                const_spec((1, 2 * ZP)),     # b_mu|b_var fused
                const_spec((ZP, H_P)),       # w_dec1
                const_spec((1, H_P)),        # b_dec1
                const_spec((H_P, IN_P)),     # w_dec2
                const_spec((1, IN_P)),       # b_dec2
            ],
            out_specs=[
                batch_spec(IN_P),
                batch_spec(2 * ZP),
            ],
        ),
        compiler_params=pltpu.CompilerParams(
            dimension_semantics=("parallel",)),   # batch axis -> megacore on v7x
    )

    def _pad2(a, rows, cols, dtype):
        a = a.astype(dtype)
        return jnp.pad(a, ((0, rows - a.shape[0]), (0, cols - a.shape[1])))

    @jax.jit
    def forward(x_nchw, params, eps):
        x = x_nchw.reshape(-1, IN)                             # torch .view(-1, 784)
        x = _pad2(x, B_pad, IN_P, jnp.bfloat16)                # bf16 MXU operand
        eps_p = _pad2(eps, B_pad, ZP, jnp.float32)

        w1 = _pad2(params["w1"], IN_P, H_P, jnp.bfloat16)
        b1 = _pad2(params["b1"], 1, H_P, jnp.float32)
        w_mv = jnp.concatenate(
            [_pad2(params["w_mu"], H_P, ZP, jnp.bfloat16),
             _pad2(params["w_var"], H_P, ZP, jnp.bfloat16)], axis=1)
        b_mv = jnp.concatenate(
            [_pad2(params["b_mu"], 1, ZP, jnp.float32),
             _pad2(params["b_var"], 1, ZP, jnp.float32)], axis=1)
        w_d1 = _pad2(params["w_d1"], ZP, H_P, jnp.bfloat16)
        b_d1 = _pad2(params["b_d1"], 1, H_P, jnp.float32)
        w_d2 = _pad2(params["w_d2"], H_P, IN_P, jnp.bfloat16)
        b_d2 = _pad2(params["b_d2"], 1, IN_P, jnp.float32)

        recon_p, mv_p = call(x, eps_p, w1, b1, w_mv, b_mv,
                             w_d1, b_d1, w_d2, b_d2)

        recon = recon_p[:B, :IN].reshape(-1, 1, 28, 28)        # torch .reshape(-1,1,28,28)
        mean = mv_p[:B, :zdim]
        log_var = mv_p[:B, ZP:ZP + zdim]
        return recon, mean, log_var

    # TODO(synk): for training, fuse the BCE+KL loss reduction into a follow-up
    # kernel consuming recon in VMEM to avoid the (B, 784) HBM writeback.
    return forward


def init_params(key, zdim):
    """Deterministic synthetic init (PyTorch-Linear-like uniform fan-in scaling).
    Weights stored as (in_features, out_features); biases as (1, out)."""
    IN, H = 784, 400
    dims = [
        ("w1", (IN, H)), ("b1", (1, H)),
        ("w_mu", (H, zdim)), ("b_mu", (1, zdim)),
        ("w_var", (H, zdim)), ("b_var", (1, zdim)),
        ("w_d1", (zdim, H)), ("b_d1", (1, H)),
        ("w_d2", (H, IN)), ("b_d2", (1, IN)),
    ]
    fan_in = {"w1": IN, "b1": IN, "w_mu": H, "b_mu": H, "w_var": H, "b_var": H,
              "w_d1": zdim, "b_d1": zdim, "w_d2": H, "b_d2": H}
    params = {}
    keys = jax.random.split(key, len(dims))
    for k, (name, shape) in zip(keys, dims):
        bound = 1.0 / jnp.sqrt(float(fan_in[name]))
        params[name] = jax.random.uniform(
            k, shape, jnp.float32, minval=-bound, maxval=bound)
    return params


if __name__ == "__main__":
    B, ZDIM = 8, 32
    root = jax.random.PRNGKey(0)
    k_param, k_x, k_eps = jax.random.split(root, 3)

    params = init_params(k_param, ZDIM)
    x = jax.random.uniform(k_x, (B, 1, 28, 28), jnp.float32)   # NCHW input
    eps = jax.random.uniform(k_eps, (B, ZDIM), jnp.float32)    # torch.rand equivalent

    vae_forward = make_vae_forward(B, ZDIM)
    recon, mean, logvar = vae_forward(x, params, eps)
    jax.block_until_ready((recon, mean, logvar))

    assert recon.shape == (B, 1, 28, 28)
    assert mean.shape == (B, ZDIM) and logvar.shape == (B, ZDIM)
    print("KERNEL_OK")
</pallas_src>

<mosaic_0001>
module attributes {stable_mosaic.version = 11 : i64} {
  func.func @_vae_kernel(%arg0: i32, %arg1: memref<8x896xbf16, #tpu.memory_space<vmem>>, %arg2: memref<8x64xf32, #tpu.memory_space<vmem>>, %arg3: memref<896x512xbf16, #tpu.memory_space<vmem>>, %arg4: memref<1x512xf32, #tpu.memory_space<vmem>>, %arg5: memref<512x128xbf16, #tpu.memory_space<vmem>>, %arg6: memref<1x128xf32, #tpu.memory_space<vmem>>, %arg7: memref<64x512xbf16, #tpu.memory_space<vmem>>, %arg8: memref<1x512xf32, #tpu.memory_space<vmem>>, %arg9: memref<512x896xbf16, #tpu.memory_space<vmem>>, %arg10: memref<1x896xf32, #tpu.memory_space<vmem>>, %arg11: memref<8x896xf32, #tpu.memory_space<vmem>>, %arg12: memref<8x128xf32, #tpu.memory_space<vmem>>) attributes {dimension_semantics = [#tpu.dimension_semantics<parallel>], iteration_bounds = array<i64: 1>, scalar_prefetch = 0 : i64, scratch_operands = 0 : i64, tpu.core_type = #tpu.core_type<tc>, window_params = [{transform_indices = @transform_0, window_bounds = array<i64: 8, 896>}, {transform_indices = @transform_1, window_bounds = array<i64: 8, 64>}, {pipeline_mode = #tpu.pipeline_mode<synchronous>, transform_indices = @transform_2, window_bounds = array<i64: 896, 512>}, {pipeline_mode = #tpu.pipeline_mode<synchronous>, transform_indices = @transform_3, window_bounds = array<i64: 1, 512>}, {pipeline_mode = #tpu.pipeline_mode<synchronous>, transform_indices = @transform_4, window_bounds = array<i64: 512, 128>}, {pipeline_mode = #tpu.pipeline_mode<synchronous>, transform_indices = @transform_5, window_bounds = array<i64: 1, 128>}, {pipeline_mode = #tpu.pipeline_mode<synchronous>, transform_indices = @transform_6, window_bounds = array<i64: 64, 512>}, {pipeline_mode = #tpu.pipeline_mode<synchronous>, transform_indices = @transform_7, window_bounds = array<i64: 1, 512>}, {pipeline_mode = #tpu.pipeline_mode<synchronous>, transform_indices = @transform_8, window_bounds = array<i64: 512, 896>}, {pipeline_mode = #tpu.pipeline_mode<synchronous>, transform_indices = @transform_9, window_bounds = array<i64: 1, 896>}, {transform_indices = @transform_10, window_bounds = array<i64: 8, 896>}, {transform_indices = @transform_11, window_bounds = array<i64: 8, 128>}]} {
    %c0 = arith.constant 0 : index
    %c0_0 = arith.constant 0 : index
    %0 = vector.load %arg1[%c0, %c0_0] : memref<8x896xbf16, #tpu.memory_space<vmem>>, vector<8x896xbf16>
    %c0_1 = arith.constant 0 : index
    %c0_2 = arith.constant 0 : index
    %1 = vector.load %arg3[%c0_1, %c0_2] : memref<896x512xbf16, #tpu.memory_space<vmem>>, vector<896x512xbf16>
    %cst = arith.constant dense<0.000000e+00> : vector<8x512xf32>
    %2 = tpu.matmul %0, %1, %cst {dimension_numbers = #tpu.dot_dimension_numbers<[1], [0], [0], [1], [0, 0, 1, 1], [], []>} : vector<8x896xbf16>, vector<896x512xbf16>, vector<8x512xf32> -> vector<8x512xf32>
    %c0_3 = arith.constant 0 : index
    %c0_4 = arith.constant 0 : index
    %3 = vector.load %arg4[%c0_3, %c0_4] : memref<1x512xf32, #tpu.memory_space<vmem>>, vector<1x512xf32>
    %4 = vector.broadcast %3 : vector<1x512xf32> to vector<8x512xf32>
    %5 = arith.addf %2, %4 : vector<8x512xf32>
    %cst_5 = arith.constant 0.000000e+00 : f32
    %6 = vector.broadcast %cst_5 : f32 to vector<8x512xf32>
    %7 = arith.maximumf %5, %6 : vector<8x512xf32>
    %8 = arith.truncf %7 : vector<8x512xf32> to vector<8x512xbf16>
    %c0_6 = arith.constant 0 : index
    %c0_7 = arith.constant 0 : index
    %9 = vector.load %arg5[%c0_6, %c0_7] : memref<512x128xbf16, #tpu.memory_space<vmem>>, vector<512x128xbf16>
    %cst_8 = arith.constant dense<0.000000e+00> : vector<8x128xf32>
    %10 = tpu.matmul %8, %9, %cst_8 {dimension_numbers = #tpu.dot_dimension_numbers<[1], [0], [0], [1], [0, 0, 1, 1], [], []>} : vector<8x512xbf16>, vector<512x128xbf16>, vector<8x128xf32> -> vector<8x128xf32>
    %c0_9 = arith.constant 0 : index
    %c0_10 = arith.constant 0 : index
    %11 = vector.load %arg6[%c0_9, %c0_10] : memref<1x128xf32, #tpu.memory_space<vmem>>, vector<1x128xf32>
    %12 = vector.broadcast %11 : vector<1x128xf32> to vector<8x128xf32>
    %13 = arith.addf %10, %12 : vector<8x128xf32>
    %cst_11 = arith.constant 0.000000e+00 : f32
    %14 = vector.broadcast %cst_11 : f32 to vector<8x128xf32>
    %15 = arith.maximumf %13, %14 : vector<8x128xf32>
    %16 = vector.extract_strided_slice %15 {offsets = [0, 0], sizes = [8, 64], strides = [1, 1]} : vector<8x128xf32> to vector<8x64xf32>
    %17 = vector.extract_strided_slice %15 {offsets = [0, 64], sizes = [8, 64], strides = [1, 1]} : vector<8x128xf32> to vector<8x64xf32>
    %c0_12 = arith.constant 0 : index
    %c0_13 = arith.constant 0 : index
    %18 = vector.load %arg2[%c0_12, %c0_13] : memref<8x64xf32, #tpu.memory_space<vmem>>, vector<8x64xf32>
    %19 = math.exp %17 : vector<8x64xf32>
    %20 = arith.mulf %18, %19 : vector<8x64xf32>
    %21 = arith.addf %16, %20 : vector<8x64xf32>
    %22 = arith.truncf %21 : vector<8x64xf32> to vector<8x64xbf16>
    %c0_14 = arith.constant 0 : index
    %c0_15 = arith.constant 0 : index
    %23 = vector.load %arg7[%c0_14, %c0_15] : memref<64x512xbf16, #tpu.memory_space<vmem>>, vector<64x512xbf16>
    %cst_16 = arith.constant dense<0.000000e+00> : vector<8x512xf32>
    %24 = tpu.matmul %22, %23, %cst_16 {dimension_numbers = #tpu.dot_dimension_numbers<[1], [0], [0], [1], [0, 0, 1, 1], [], []>} : vector<8x64xbf16>, vector<64x512xbf16>, vector<8x512xf32> -> vector<8x512xf32>
    %c0_17 = arith.constant 0 : index
    %c0_18 = arith.constant 0 : index
    %25 = vector.load %arg8[%c0_17, %c0_18] : memref<1x512xf32, #tpu.memory_space<vmem>>, vector<1x512xf32>
    %26 = vector.broadcast %25 : vector<1x512xf32> to vector<8x512xf32>
    %27 = arith.addf %24, %26 : vector<8x512xf32>
    %cst_19 = arith.constant 0.000000e+00 : f32
    %28 = vector.broadcast %cst_19 : f32 to vector<8x512xf32>
    %29 = arith.maximumf %27, %28 : vector<8x512xf32>
    %30 = arith.truncf %29 : vector<8x512xf32> to vector<8x512xbf16>
    %c0_20 = arith.constant 0 : index
    %c0_21 = arith.constant 0 : index
    %31 = vector.load %arg9[%c0_20, %c0_21] : memref<512x896xbf16, #tpu.memory_space<vmem>>, vector<512x896xbf16>
    %cst_22 = arith.constant dense<0.000000e+00> : vector<8x896xf32>
    %32 = tpu.matmul %30, %31, %cst_22 {dimension_numbers = #tpu.dot_dimension_numbers<[1], [0], [0], [1], [0, 0, 1, 1], [], []>} : vector<8x512xbf16>, vector<512x896xbf16>, vector<8x896xf32> -> vector<8x896xf32>
    %c0_23 = arith.constant 0 : index
    %c0_24 = arith.constant 0 : index
    %33 = vector.load %arg10[%c0_23, %c0_24] : memref<1x896xf32, #tpu.memory_space<vmem>>, vector<1x896xf32>
    %34 = vector.broadcast %33 : vector<1x896xf32> to vector<8x896xf32>
    %35 = arith.addf %32, %34 : vector<8x896xf32>
    %36 = arith.negf %35 : vector<8x896xf32>
    %37 = math.exp %36 : vector<8x896xf32>
    %cst_25 = arith.constant 1.000000e+00 : f32
    %38 = vector.broadcast %cst_25 : f32 to vector<8x896xf32>
    %39 = arith.addf %38, %37 : vector<8x896xf32>
    %40 = arith.divf %38, %39 : vector<8x896xf32>
    %c0_26 = arith.constant 0 : index
    %c0_27 = arith.constant 0 : index
    %41 = vector.load %arg11[%c0_26, %c0_27] : memref<8x896xf32, #tpu.memory_space<vmem>>, vector<8x896xf32>
    tpu.vector_store %arg11[%c0_26, %c0_27], %40 {strides = array<i32>} : memref<8x896xf32, #tpu.memory_space<vmem>>, vector<8x896xf32>,
    %c0_28 = arith.constant 0 : index
    %c0_29 = arith.constant 0 : index
    %42 = vector.load %arg12[%c0_28, %c0_29] : memref<8x128xf32, #tpu.memory_space<vmem>>, vector<8x128xf32>
    tpu.vector_store %arg12[%c0_28, %c0_29], %15 {strides = array<i32>} : memref<8x128xf32, #tpu.memory_space<vmem>>, vector<8x128xf32>,
    return
  }
  func.func @transform_0(%arg0: i32) -> (i32, i32) {
    %c0_i32 = arith.constant 0 : i32
    %c0_i32_0 = arith.constant 0 : i32
    return %arg0, %c0_i32 : i32, i32
  }
  func.func @transform_1(%arg0: i32) -> (i32, i32) {
    %c0_i32 = arith.constant 0 : i32
    %c0_i32_0 = arith.constant 0 : i32
    return %arg0, %c0_i32 : i32, i32
  }
  func.func @transform_2(%arg0: i32) -> (i32, i32) {
    %c0_i32 = arith.constant 0 : i32
    %c0_i32_0 = arith.constant 0 : i32
    %c0_i32_1 = arith.constant 0 : i32
    return %c0_i32, %c0_i32_0 : i32, i32
  }
  func.func @transform_3(%arg0: i32) -> (i32, i32) {
    %c0_i32 = arith.constant 0 : i32
    %c0_i32_0 = arith.constant 0 : i32
    %c0_i32_1 = arith.constant 0 : i32
    return %c0_i32, %c0_i32_0 : i32, i32
  }
  func.func @transform_4(%arg0: i32) -> (i32, i32) {
    %c0_i32 = arith.constant 0 : i32
    %c0_i32_0 = arith.constant 0 : i32
    %c0_i32_1 = arith.constant 0 : i32
    return %c0_i32, %c0_i32_0 : i32, i32
  }
  func.func @transform_5(%arg0: i32) -> (i32, i32) {
    %c0_i32 = arith.constant 0 : i32
    %c0_i32_0 = arith.constant 0 : i32
    %c0_i32_1 = arith.constant 0 : i32
    return %c0_i32, %c0_i32_0 : i32, i32
  }
  func.func @transform_6(%arg0: i32) -> (i32, i32) {
    %c0_i32 = arith.constant 0 : i32
    %c0_i32_0 = arith.constant 0 : i32
    %c0_i32_1 = arith.constant 0 : i32
    return %c0_i32, %c0_i32_0 : i32, i32
  }
  func.func @transform_7(%arg0: i32) -> (i32, i32) {
    %c0_i32 = arith.constant 0 : i32
    %c0_i32_0 = arith.constant 0 : i32
    %c0_i32_1 = arith.constant 0 : i32
    return %c0_i32, %c0_i32_0 : i32, i32
  }
  func.func @transform_8(%arg0: i32) -> (i32, i32) {
    %c0_i32 = arith.constant 0 : i32
    %c0_i32_0 = arith.constant 0 : i32
    %c0_i32_1 = arith.constant 0 : i32
    return %c0_i32, %c0_i32_0 : i32, i32
  }
  func.func @transform_9(%arg0: i32) -> (i32, i32) {
    %c0_i32 = arith.constant 0 : i32
    %c0_i32_0 = arith.constant 0 : i32
    %c0_i32_1 = arith.constant 0 : i32
    return %c0_i32, %c0_i32_0 : i32, i32
  }
  func.func @transform_10(%arg0: i32) -> (i32, i32) {
    %c0_i32 = arith.constant 0 : i32
    %c0_i32_0 = arith.constant 0 : i32
    return %arg0, %c0_i32 : i32, i32
  }
  func.func @transform_11(%arg0: i32) -> (i32, i32) {
    %c0_i32 = arith.constant 0 : i32
    %c0_i32_0 = arith.constant 0 : i32
    return %arg0, %c0_i32 : i32, i32
  }
}

</mosaic_0001>

<llo_original>
// kernel: forward.1
$region0: #{forward.1}
  #allocation0 [shape = 'u32[]', space=smem, size = 0x4, offset = 0x4, fixed_abs, tag = 'smem constant byte address 0x4 - core index']
  #allocation1 [shape = 'u32[144,128]{1,0:T(1,128)}', space=vmem, size = 0x12000, scoped, tag = 'internal scratch']
  %s0 = inlined_call_operand.vmem [shape: bf16[8,896], index: 0, kind: input, shape index: {}]
  %s1 = inlined_call_operand.vmem [shape: f32[8,64], index: 1, kind: input, shape index: {}]
  %s2 = inlined_call_operand.vmem [shape: bf16[896,512], index: 2, kind: input, shape index: {}]
  %s3 = inlined_call_operand.vmem [shape: f32[1,512], index: 3, kind: input, shape index: {}]
  %s4 = inlined_call_operand.vmem [shape: bf16[512,128], index: 4, kind: input, shape index: {}]
  %s5 = inlined_call_operand.vmem [shape: f32[1,128], index: 5, kind: input, shape index: {}]
  %s6 = inlined_call_operand.vmem [shape: bf16[64,512], index: 6, kind: input, shape index: {}]
  %s7 = inlined_call_operand.vmem [shape: f32[1,512], index: 7, kind: input, shape index: {}]
  %s8 = inlined_call_operand.vmem [shape: bf16[512,896], index: 8, kind: input, shape index: {}]
  %s9 = inlined_call_operand.vmem [shape: f32[1,896], index: 9, kind: input, shape index: {}]
  %s10 = inlined_call_operand.vmem [shape: f32[8,896], index: 10, kind: output, shape index: {0}]
  %s11 = inlined_call_operand.vmem [shape: f32[8,128], index: 11, kind: output, shape index: {1}]
  %12 = xla_tuple %s10, %s11
  %s13 = sld [smem:[#allocation0]]
  $region58: #{forward.1} parent=0
    _
  %s15 = ssub.s32 1, %s13
  %s16 = scalar_select 0, %s15, %s13
  // Predicated region
  $region2: #{forward.1} parent=0 // pred_check
    _
  $region3: #{forward.1} parent=0 // pred_check_branch
    %18 = sbr.rel (0) target = $region5
  $region4: #{forward.1} parent=0 // pred_region
    _
  $region5: #{forward.1} parent=0 // pred_fallthru
    _
  // Predicated region
  $region6: #{forward.1} parent=0 // pred_check
    _
  $region7: #{forward.1} parent=0 // pred_check_branch
    %20 = sbr.rel (0) target = $region9
  $region8: #{forward.1} parent=0 // pred_region
    _
  $region9: #{forward.1} parent=0 // pred_fallthru
    _
  // Predicated region
  $region10: #{forward.1} parent=0 // pred_check
    _
  $region11: #{forward.1} parent=0 // pred_check_branch
    %22 = sbr.rel (0) target = $region13
  $region12: #{forward.1} parent=0 // pred_region
    _
  $region13: #{forward.1} parent=0 // pred_fallthru
    _
  // Predicated region
  $region14: #{forward.1} parent=0 // pred_check
    _
  $region15: #{forward.1} parent=0 // pred_check_branch
    %24 = sbr.rel (0) target = $region17
  $region16: #{forward.1} parent=0 // pred_region
    _
  $region17: #{forward.1} parent=0 // pred_fallthru
    _
  // Predicated region
  $region18: #{forward.1} parent=0 // pred_check
    _
  $region19: #{forward.1} parent=0 // pred_check_branch
    %26 = sbr.rel (0) target = $region21
  $region20: #{forward.1} parent=0 // pred_region
    _
  $region21: #{forward.1} parent=0 // pred_fallthru
    _
  // Predicated region
  $region22: #{forward.1} parent=0 // pred_check
    _
  $region23: #{forward.1} parent=0 // pred_check_branch
    %28 = sbr.rel (0) target = $region25
  $region24: #{forward.1} parent=0 // pred_region
    _
  $region25: #{forward.1} parent=0 // pred_fallthru
    _
  // Predicated region
  $region26: #{forward.1} parent=0 // pred_check
    _
  $region27: #{forward.1} parent=0 // pred_check_branch
    %30 = sbr.rel (0) target = $region29
  $region28: #{forward.1} parent=0 // pred_region
    _
  $region29: #{forward.1} parent=0 // pred_fallthru
    _
  // Predicated region
  $region30: #{forward.1} parent=0 // pred_check
    _
  $region31: #{forward.1} parent=0 // pred_check_branch
    %32 = sbr.rel (0) target = $region33
  $region32: #{forward.1} parent=0 // pred_region
    _
  $region33: #{forward.1} parent=0 // pred_fallthru
    _
  // Predicated region
  $region34: #{forward.1} parent=0 // pred_check
    _
  $region35: #{forward.1} parent=0 // pred_check_branch
    %34 = sbr.rel (0) target = $region37
  $region36: #{forward.1} parent=0 // pred_region
    _
  $region37: #{forward.1} parent=0 // pred_fallthru
    _
  // Predicated region
  $region38: #{forward.1} parent=0 // pred_check
    _
  $region39: #{forward.1} parent=0 // pred_check_branch
    %36 = sbr.rel (0) target = $region41
  $region40: #{forward.1} parent=0 // pred_region
    _
  $region41: #{forward.1} parent=0 // pred_fallthru
    _
  %v38 = vld [vmem:[%s0] sm:$0xff]
  %v39 = vld [vmem:[%s0 + $0x8] sm:$0xff]
  %v40 = vld [vmem:[%s0 + $0x10] sm:$0xff]
  %v41 = vld [vmem:[%s0 + $0x18] sm:$0xf]
  %v42 = vld [vmem:[%s2] sm:$0xff]
  %v43 = vld [vmem:[%s2 + $0x8] sm:$0xff]
  %v44 = vld [vmem:[%s2 + $0x10] sm:$0xff]
  %v45 = vld [vmem:[%s2 + $0x18] sm:$0xff]
  %v46 = vld [vmem:[%s2 + $0x20] sm:$0xff]
  %v47 = vld [vmem:[%s2 + $0x28] sm:$0xff]
  %v48 = vld [vmem:[%s2 + $0x30] sm:$0xff]
  %v49 = vld [vmem:[%s2 + $0x38] sm:$0xff]
  %v50 = vld [vmem:[%s2 + $0x40] sm:$0xff]
  %v51 = vld [vmem:[%s2 + $0x48] sm:$0xff]
  %v52 = vld [vmem:[%s2 + $0x50] sm:$0xff]
  %v53 = vld [vmem:[%s2 + $0x58] sm:$0xff]
  %v54 = vld [vmem:[%s2 + $0x60] sm:$0xff]
  %v55 = vld [vmem:[%s2 + $0x68] sm:$0xff]
  %v56 = vld [vmem:[%s2 + $0x70] sm:$0xff]
  %v57 = vld [vmem:[%s2 + $0x78] sm:$0xff]
  %v58 = vld [vmem:[%s2 + $0x80] sm:$0xff]
  %v59 = vld [vmem:[%s2 + $0x88] sm:$0xff]
  %v60 = vld [vmem:[%s2 + $0x90] sm:$0xff]
  %v61 = vld [vmem:[%s2 + $0x98] sm:$0xff]
  %v62 = vld [vmem:[%s2 + $0xa0] sm:$0xff]
  %v63 = vld [vmem:[%s2 + $0xa8] sm:$0xff]
  %v64 = vld [vmem:[%s2 + $0xb0] sm:$0xff]
  %v65 = vld [vmem:[%s2 + $0xb8] sm:$0xff]
  %v66 = vld [vmem:[%s2 + $0xc0] sm:$0xff]
  %v67 = vld [vmem:[%s2 + $0xc8] sm:$0xff]
  %v68 = vld [vmem:[%s2 + $0xd0] sm:$0xff]
  %v69 = vld [vmem:[%s2 + $0xd8] sm:$0xff]
  %v70 = vld [vmem:[%s2 + $0xe0] sm:$0xff]
  %v71 = vld [vmem:[%s2 + $0xe8] sm:$0xff]
  %v72 = vld [vmem:[%s2 + $0xf0] sm:$0xff]
  %v73 = vld [vmem:[%s2 + $0xf8] sm:$0xff]
  %v74 = vld [vmem:[%s2 + $0x100] sm:$0xff]
  %v75 = vld [vmem:[%s2 + $0x108] sm:$0xff]
  %v76 = vld [vmem:[%s2 + $0x110] sm:$0xff]
  %v77 = vld [vmem:[%s2 + $0x118] sm:$0xff]
  %v78 = vld [vmem:[%s2 + $0x120] sm:$0xff]
  %v79 = vld [vmem:[%s2 + $0x128] sm:$0xff]
  %v80 = vld [vmem:[%s2 + $0x130] sm:$0xff]
  %v81 = vld [vmem:[%s2 + $0x138] sm:$0xff]
  %v82 = vld [vmem:[%s2 + $0x140] sm:$0xff]
  %v83 = vld [vmem:[%s2 + $0x148] sm:$0xff]
  %v84 = vld [vmem:[%s2 + $0x150] sm:$0xff]
  %v85 = vld [vmem:[%s2 + $0x158] sm:$0xff]
  %v86 = vld [vmem:[%s2 + $0x160] sm:$0xff]
  %v87 = vld [vmem:[%s2 + $0x168] sm:$0xff]
  %v88 = vld [vmem:[%s2 + $0x170] sm:$0xff]
  %v89 = vld [vmem:[%s2 + $0x178] sm:$0xff]
  %v90 = vld [vmem:[%s2 + $0x180] sm:$0xff]
  %v91 = vld [vmem:[%s2 + $0x188] sm:$0xff]
  %v92 = vld [vmem:[%s2 + $0x190] sm:$0xff]
  %v93 = vld [vmem:[%s2 + $0x198] sm:$0xff]
  %v94 = vld [vmem:[%s2 + $0x1a0] sm:$0xff]
  %v95 = vld [vmem:[%s2 + $0x1a8] sm:$0xff]
  %v96 = vld [vmem:[%s2 + $0x1b0] sm:$0xff]
  %v97 = vld [vmem:[%s2 + $0x1b8] sm:$0xff]
  %v98 = vld [vmem:[%s2 + $0x1c0] sm:$0xff]
  %v99 = vld [vmem:[%s2 + $0x1c8] sm:$0xff]
  %v100 = vld [vmem:[%s2 + $0x1d0] sm:$0xff]
  %v101 = vld [vmem:[%s2 + $0x1d8] sm:$0xff]
  %v102 = vld [vmem:[%s2 + $0x1e0] sm:$0xff]
  %v103 = vld [vmem:[%s2 + $0x1e8] sm:$0xff]
  %v104 = vld [vmem:[%s2 + $0x1f0] sm:$0xff]
  %v105 = vld [vmem:[%s2 + $0x1f8] sm:$0xff]
  %v106 = vld [vmem:[%s2 + $0x200] sm:$0xff]
  %v107 = vld [vmem:[%s2 + $0x208] sm:$0xff]
  %v108 = vld [vmem:[%s2 + $0x210] sm:$0xff]
  %v109 = vld [vmem:[%s2 + $0x218] sm:$0xff]
  %v110 = vld [vmem:[%s2 + $0x220] sm:$0xff]
  %v111 = vld [vmem:[%s2 + $0x228] sm:$0xff]
  %v112 = vld [vmem:[%s2 + $0x230] sm:$0xff]
  %v113 = vld [vmem:[%s2 + $0x238] sm:$0xff]
  %v114 = vld [vmem:[%s2 + $0x240] sm:$0xff]
  %v115 = vld [vmem:[%s2 + $0x248] sm:$0xff]
  %v116 = vld [vmem:[%s2 + $0x250] sm:$0xff]
  %v117 = vld [vmem:[%s2 + $0x258] sm:$0xff]
  %v118 = vld [vmem:[%s2 + $0x260] sm:$0xff]
  %v119 = vld [vmem:[%s2 + $0x268] sm:$0xff]
  %v120 = vld [vmem:[%s2 + $0x270] sm:$0xff]
  %v121 = vld [vmem:[%s2 + $0x278] sm:$0xff]
  %v122 = vld [vmem:[%s2 + $0x280] sm:$0xff]
  %v123 = vld [vmem:[%s2 + $0x288] sm:$0xff]
  %v124 = vld [vmem:[%s2 + $0x290] sm:$0xff]
  %v125 = vld [vmem:[%s2 + $0x298] sm:$0xff]
  %v126 = vld [vmem:[%s2 + $0x2a0] sm:$0xff]
  %v127 = vld [vmem:[%s2 + $0x2a8] sm:$0xff]
  %v128 = vld [vmem:[%s2 + $0x2b0] sm:$0xff]
  %v129 = vld [vmem:[%s2 + $0x2b8] sm:$0xff]
  %v130 = vld [vmem:[%s2 + $0x2c0] sm:$0xff]
  %v131 = vld [vmem:[%s2 + $0x2c8] sm:$0xff]
  %v132 = vld [vmem:[%s2 + $0x2d0] sm:$0xff]
  %v133 = vld [vmem:[%s2 + $0x2d8] sm:$0xff]
  %v134 = vld [vmem:[%s2 + $0x2e0] sm:$0xff]
  %v135 = vld [vmem:[%s2 + $0x2e8] sm:$0xff]
  %v136 = vld [vmem:[%s2 + $0x2f0] sm:$0xff]
  %v137 = vld [vmem:[%s2 + $0x2f8] sm:$0xff]
  %v138 = vld [vmem:[%s2 + $0x300] sm:$0xff]
  %v139 = vld [vmem:[%s2 + $0x308] sm:$0xff]
  %v140 = vld [vmem:[%s2 + $0x310] sm:$0xff]
  %v141 = vld [vmem:[%s2 + $0x318] sm:$0xff]
  %v142 = vld [vmem:[%s2 + $0x320] sm:$0xff]
  %v143 = vld [vmem:[%s2 + $0x328] sm:$0xff]
  %v144 = vld [vmem:[%s2 + $0x330] sm:$0xff]
  %v145 = vld [vmem:[%s2 + $0x338] sm:$0xff]
  %v146 = vld [vmem:[%s2 + $0x340] sm:$0xff]
  %v147 = vld [vmem:[%s2 + $0x348] sm:$0xff]
  %v148 = vld [vmem:[%s2 + $0x350] sm:$0xff]
  %v149 = vld [vmem:[%s2 + $0x358] sm:$0xff]
  %v150 = vld [vmem:[%s2 + $0x360] sm:$0xff]
  %v151 = vld [vmem:[%s2 + $0x368] sm:$0xff]
  %v152 = vld [vmem:[%s2 + $0x370] sm:$0xff]
  %v153 = vld [vmem:[%s2 + $0x378] sm:$0xff]
  %v154 = vld [vmem:[%s2 + $0x380] sm:$0xff]
  %v155 = vld [vmem:[%s2 + $0x388] sm:$0xff]
  %v156 = vld [vmem:[%s2 + $0x390] sm:$0xff]
  %v157 = vld [vmem:[%s2 + $0x398] sm:$0xff]
  %v158 = vld [vmem:[%s2 + $0x3a0] sm:$0xff]
  %v159 = vld [vmem:[%s2 + $0x3a8] sm:$0xff]
  %v160 = vld [vmem:[%s2 + $0x3b0] sm:$0xff]
  %v161 = vld [vmem:[%s2 + $0x3b8] sm:$0xff]
  %v162 = vld [vmem:[%s2 + $0x3c0] sm:$0xff]
  %v163 = vld [vmem:[%s2 + $0x3c8] sm:$0xff]
  %v164 = vld [vmem:[%s2 + $0x3d0] sm:$0xff]
  %v165 = vld [vmem:[%s2 + $0x3d8] sm:$0xff]
  %v166 = vld [vmem:[%s2 + $0x3e0] sm:$0xff]
  %v167 = vld [vmem:[%s2 + $0x3e8] sm:$0xff]
  %v168 = vld [vmem:[%s2 + $0x3f0] sm:$0xff]
  %v169 = vld [vmem:[%s2 + $0x3f8] sm:$0xff]
  %v170 = vld [vmem:[%s2 + $0x400] sm:$0xff]
  %v171 = vld [vmem:[%s2 + $0x408] sm:$0xff]
  %v172 = vld [vmem:[%s2 + $0x410] sm:$0xff]
  %v173 = vld [vmem:[%s2 + $0x418] sm:$0xff]
  %v174 = vld [vmem:[%s2 + $0x420] sm:$0xff]
  %v175 = vld [vmem:[%s2 + $0x428] sm:$0xff]
  %v176 = vld [vmem:[%s2 + $0x430] sm:$0xff]
  %v177 = vld [vmem:[%s2 + $0x438] sm:$0xff]
  %v178 = vld [vmem:[%s2 + $0x440] sm:$0xff]
  %v179 = vld [vmem:[%s2 + $0x448] sm:$0xff]
  %v180 = vld [vmem:[%s2 + $0x450] sm:$0xff]
  %v181 = vld [vmem:[%s2 + $0x458] sm:$0xff]
  %v182 = vld [vmem:[%s2 + $0x460] sm:$0xff]
  %v183 = vld [vmem:[%s2 + $0x468] sm:$0xff]
  %v184 = vld [vmem:[%s2 + $0x470] sm:$0xff]
  %v185 = vld [vmem:[%s2 + $0x478] sm:$0xff]
  %v186 = vld [vmem:[%s2 + $0x480] sm:$0xff]
  %v187 = vld [vmem:[%s2 + $0x488] sm:$0xff]
  %v188 = vld [vmem:[%s2 + $0x490] sm:$0xff]
  %v189 = vld [vmem:[%s2 + $0x498] sm:$0xff]
  %v190 = vld [vmem:[%s2 + $0x4a0] sm:$0xff]
  %v191 = vld [vmem:[%s2 + $0x4a8] sm:$0xff]
  %v192 = vld [vmem:[%s2 + $0x4b0] sm:$0xff]
  %v193 = vld [vmem:[%s2 + $0x4b8] sm:$0xff]
  %v194 = vld [vmem:[%s2 + $0x4c0] sm:$0xff]
  %v195 = vld [vmem:[%s2 + $0x4c8] sm:$0xff]
  %v196 = vld [vmem:[%s2 + $0x4d0] sm:$0xff]
  %v197 = vld [vmem:[%s2 + $0x4d8] sm:$0xff]
  %v198 = vld [vmem:[%s2 + $0x4e0] sm:$0xff]
  %v199 = vld [vmem:[%s2 + $0x4e8] sm:$0xff]
  %v200 = vld [vmem:[%s2 + $0x4f0] sm:$0xff]
  %v201 = vld [vmem:[%s2 + $0x4f8] sm:$0xff]
  %v202 = vld [vmem:[%s2 + $0x500] sm:$0xff]
  %v203 = vld [vmem:[%s2 + $0x508] sm:$0xff]
  %v204 = vld [vmem:[%s2 + $0x510] sm:$0xff]
  %v205 = vld [vmem:[%s2 + $0x518] sm:$0xff]
  %v206 = vld [vmem:[%s2 + $0x520] sm:$0xff]
  %v207 = vld [vmem:[%s2 + $0x528] sm:$0xff]
  %v208 = vld [vmem:[%s2 + $0x530] sm:$0xff]
  %v209 = vld [vmem:[%s2 + $0x538] sm:$0xff]
  %v210 = vld [vmem:[%s2 + $0x540] sm:$0xff]
  %v211 = vld [vmem:[%s2 + $0x548] sm:$0xff]
  %v212 = vld [vmem:[%s2 + $0x550] sm:$0xff]
  %v213 = vld [vmem:[%s2 + $0x558] sm:$0xff]
  %v214 = vld [vmem:[%s2 + $0x560] sm:$0xff]
  %v215 = vld [vmem:[%s2 + $0x568] sm:$0xff]
  %v216 = vld [vmem:[%s2 + $0x570] sm:$0xff]
  %v217 = vld [vmem:[%s2 + $0x578] sm:$0xff]
  %v218 = vld [vmem:[%s2 + $0x580] sm:$0xff]
  %v219 = vld [vmem:[%s2 + $0x588] sm:$0xff]
  %v220 = vld [vmem:[%s2 + $0x590] sm:$0xff]
  %v221 = vld [vmem:[%s2 + $0x598] sm:$0xff]
  %v222 = vld [vmem:[%s2 + $0x5a0] sm:$0xff]
  %v223 = vld [vmem:[%s2 + $0x5a8] sm:$0xff]
  %v224 = vld [vmem:[%s2 + $0x5b0] sm:$0xff]
  %v225 = vld [vmem:[%s2 + $0x5b8] sm:$0xff]
  %v226 = vld [vmem:[%s2 + $0x5c0] sm:$0xff]
  %v227 = vld [vmem:[%s2 + $0x5c8] sm:$0xff]
  %v228 = vld [vmem:[%s2 + $0x5d0] sm:$0xff]
  %v229 = vld [vmem:[%s2 + $0x5d8] sm:$0xff]
  %v230 = vld [vmem:[%s2 + $0x5e0] sm:$0xff]
  %v231 = vld [vmem:[%s2 + $0x5e8] sm:$0xff]
  %v232 = vld [vmem:[%s2 + $0x5f0] sm:$0xff]
  %v233 = vld [vmem:[%s2 + $0x5f8] sm:$0xff]
  %v234 = vld [vmem:[%s2 + $0x600] sm:$0xff]
  %v235 = vld [vmem:[%s2 + $0x608] sm:$0xff]
  %v236 = vld [vmem:[%s2 + $0x610] sm:$0xff]
  %v237 = vld [vmem:[%s2 + $0x618] sm:$0xff]
  %v238 = vld [vmem:[%s2 + $0x620] sm:$0xff]
  %v239 = vld [vmem:[%s2 + $0x628] sm:$0xff]
  %v240 = vld [vmem:[%s2 + $0x630] sm:$0xff]
  %v241 = vld [vmem:[%s2 + $0x638] sm:$0xff]
  %v242 = vld [vmem:[%s2 + $0x640] sm:$0xff]
  %v243 = vld [vmem:[%s2 + $0x648] sm:$0xff]
  %v244 = vld [vmem:[%s2 + $0x650] sm:$0xff]
  %v245 = vld [vmem:[%s2 + $0x658] sm:$0xff]
  %v246 = vld [vmem:[%s2 + $0x660] sm:$0xff]
  %v247 = vld [vmem:[%s2 + $0x668] sm:$0xff]
  %v248 = vld [vmem:[%s2 + $0x670] sm:$0xff]
  %v249 = vld [vmem:[%s2 + $0x678] sm:$0xff]
  %v250 = vld [vmem:[%s2 + $0x680] sm:$0xff]
  %v251 = vld [vmem:[%s2 + $0x688] sm:$0xff]
  %v252 = vld [vmem:[%s2 + $0x690] sm:$0xff]
  %v253 = vld [vmem:[%s2 + $0x698] sm:$0xff]
  %v254 = vld [vmem:[%s2 + $0x6a0] sm:$0xff]
  %v255 = vld [vmem:[%s2 + $0x6a8] sm:$0xff]
  %v256 = vld [vmem:[%s2 + $0x6b0] sm:$0xff]
  %v257 = vld [vmem:[%s2 + $0x6b8] sm:$0xff]
  %v258 = vld [vmem:[%s2 + $0x6c0] sm:$0xff]
  %v259 = vld [vmem:[%s2 + $0x6c8] sm:$0xff]
  %v260 = vld [vmem:[%s2 + $0x6d0] sm:$0xff]
  %v261 = vld [vmem:[%s2 + $0x6d8] sm:$0xff]
  %v262 = vld [vmem:[%s2 + $0x6e0] sm:$0xff]
  %v263 = vld [vmem:[%s2 + $0x6e8] sm:$0xff]
  %v264 = vld [vmem:[%s2 + $0x6f0] sm:$0xff]
  %v265 = vld [vmem:[%s2 + $0x6f8] sm:$0xff]
  %v266 = vld [vmem:[%s3] sm:$0xf]
  %v268 = vlaneseq
  %v269 = vshrl.u32 %v268, 7
  %v270 = vsub.s32 0, %v269
  %v271 = vrot.slane %v266, %v270
  %v272 = vlaneseq
  %v273 = vshrl.u32 %v272, 7
  %v274 = vsub.s32 1, %v273
  %v275 = vrot.slane %v266, %v274
  %v276 = vlaneseq
  %v277 = vshrl.u32 %v276, 7
  %v278 = vsub.s32 2, %v277
  %v279 = vrot.slane %v266, %v278
  %v280 = vlaneseq
  %v281 = vshrl.u32 %v280, 7
  %v282 = vsub.s32 3, %v281
  %v283 = vrot.slane %v266, %v282
  %v292 = vunpack.c.l.b16 %v38
  %v293 = vunpack.c.h.b16 %v38
  %v294 = vunpack.c.l.b16 %v39
  %v295 = vunpack.c.h.b16 %v39
  %v296 = vunpack.c.l.b16 %v40
  %v297 = vunpack.c.h.b16 %v40
  %v298 = vunpack.c.l.b16 %v41
  %v299 = vpack.c.b16 %v292, %v292
  %v300 = vpack.c.b16 %v293, %v293
  %v301 = vpack.c.b16 %v294, %v294
  %v302 = vpack.c.b16 %v295, %v295
  %v303 = vpack.c.b16 %v296, %v296
  %v304 = vpack.c.b16 %v297, %v297
  %v305 = vpack.c.b16 %v298, %v298
  %v537 = vunpack.c.l.b16 %v42
  %v538 = vunpack.c.h.b16 %v42
  %v539 = vunpack.c.l.b16 %v43
  %v540 = vunpack.c.h.b16 %v43
  %v541 = vunpack.c.l.b16 %v44
  %v542 = vunpack.c.h.b16 %v44
  %v543 = vunpack.c.l.b16 %v45
  %v544 = vunpack.c.h.b16 %v45
  %v545 = vunpack.c.l.b16 %v46
  %v546 = vunpack.c.h.b16 %v46
  %v547 = vunpack.c.l.b16 %v47
  %v548 = vunpack.c.h.b16 %v47
  %v549 = vunpack.c.l.b16 %v48
  %v550 = vunpack.c.h.b16 %v48
  %v551 = vunpack.c.l.b16 %v49
  %v552 = vunpack.c.h.b16 %v49
  %v553 = vunpack.c.l.b16 %v50
  %v554 = vunpack.c.h.b16 %v50
  %v555 = vunpack.c.l.b16 %v51
  %v556 = vunpack.c.h.b16 %v51
  %v557 = vunpack.c.l.b16 %v52
  %v558 = vunpack.c.h.b16 %v52
  %v559 = vunpack.c.l.b16 %v53
  %v560 = vunpack.c.h.b16 %v53
  %v561 = vunpack.c.l.b16 %v54
  %v562 = vunpack.c.h.b16 %v54
  %v563 = vunpack.c.l.b16 %v55
  %v564 = vunpack.c.h.b16 %v55
  %v565 = vunpack.c.l.b16 %v56
  %v566 = vunpack.c.h.b16 %v56
  %v567 = vunpack.c.l.b16 %v57
  %v568 = vunpack.c.h.b16 %v57
  %v569 = vunpack.c.l.b16 %v58
  %v570 = vunpack.c.h.b16 %v58
  %v571 = vunpack.c.l.b16 %v59
  %v572 = vunpack.c.h.b16 %v59
  %v573 = vunpack.c.l.b16 %v60
  %v574 = vunpack.c.h.b16 %v60
  %v575 = vunpack.c.l.b16 %v61
  %v576 = vunpack.c.h.b16 %v61
  %v577 = vunpack.c.l.b16 %v62
  %v578 = vunpack.c.h.b16 %v62
  %v579 = vunpack.c.l.b16 %v63
  %v580 = vunpack.c.h.b16 %v63
  %v581 = vunpack.c.l.b16 %v64
  %v582 = vunpack.c.h.b16 %v64
  %v583 = vunpack.c.l.b16 %v65
  %v584 = vunpack.c.h.b16 %v65
  %v585 = vunpack.c.l.b16 %v66
  %v586 = vunpack.c.h.b16 %v66
  %v587 = vunpack.c.l.b16 %v67
  %v588 = vunpack.c.h.b16 %v67
  %v589 = vunpack.c.l.b16 %v68
  %v590 = vunpack.c.h.b16 %v68
  %v591 = vunpack.c.l.b16 %v69
  %v592 = vunpack.c.h.b16 %v69
  %v593 = vunpack.c.l.b16 %v70
  %v594 = vunpack.c.h.b16 %v70
  %v595 = vunpack.c.l.b16 %v71
  %v596 = vunpack.c.h.b16 %v71
  %v597 = vunpack.c.l.b16 %v72
  %v598 = vunpack.c.h.b16 %v72
  %v599 = vunpack.c.l.b16 %v73
  %v600 = vunpack.c.h.b16 %v73
  %v601 = vunpack.c.l.b16 %v74
  %v602 = vunpack.c.h.b16 %v74
  %v603 = vunpack.c.l.b16 %v75
  %v604 = vunpack.c.h.b16 %v75
  %v605 = vunpack.c.l.b16 %v76
  %v606 = vunpack.c.h.b16 %v76
  %v607 = vunpack.c.l.b16 %v77
  %v608 = vunpack.c.h.b16 %v77
  %v609 = vunpack.c.l.b16 %v78
  %v610 = vunpack.c.h.b16 %v78
  %v611 = vunpack.c.l.b16 %v79
  %v612 = vunpack.c.h.b16 %v79
  %v613 = vunpack.c.l.b16 %v80
  %v614 = vunpack.c.h.b16 %v80
  %v615 = vunpack.c.l.b16 %v81
  %v616 = vunpack.c.h.b16 %v81
  %v617 = vunpack.c.l.b16 %v82
  %v618 = vunpack.c.h.b16 %v82
  %v619 = vunpack.c.l.b16 %v83
  %v620 = vunpack.c.h.b16 %v83
  %v621 = vunpack.c.l.b16 %v84
  %v622 = vunpack.c.h.b16 %v84
  %v623 = vunpack.c.l.b16 %v85
  %v624 = vunpack.c.h.b16 %v85
  %v625 = vunpack.c.l.b16 %v86
  %v626 = vunpack.c.h.b16 %v86
  %v627 = vunpack.c.l.b16 %v87
  %v628 = vunpack.c.h.b16 %v87
  %v629 = vunpack.c.l.b16 %v88
  %v630 = vunpack.c.h.b16 %v88
  %v631 = vunpack.c.l.b16 %v89
  %v632 = vunpack.c.h.b16 %v89
  %v633 = vunpack.c.l.b16 %v90
  %v634 = vunpack.c.h.b16 %v90
  %v635 = vunpack.c.l.b16 %v91
  %v636 = vunpack.c.h.b16 %v91
  %v637 = vunpack.c.l.b16 %v92
  %v638 = vunpack.c.h.b16 %v92
  %v639 = vunpack.c.l.b16 %v93
  %v640 = vunpack.c.h.b16 %v93
  %v641 = vunpack.c.l.b16 %v94
  %v642 = vunpack.c.h.b16 %v94
  %v643 = vunpack.c.l.b16 %v95
  %v644 = vunpack.c.h.b16 %v95
  %v645 = vunpack.c.l.b16 %v96
  %v646 = vunpack.c.h.b16 %v96
  %v647 = vunpack.c.l.b16 %v97
  %v648 = vunpack.c.h.b16 %v97
  %v649 = vunpack.c.l.b16 %v98
  %v650 = vunpack.c.h.b16 %v98
  %v651 = vunpack.c.l.b16 %v99
  %v652 = vunpack.c.h.b16 %v99
  %v653 = vunpack.c.l.b16 %v100
  %v654 = vunpack.c.h.b16 %v100
  %v655 = vunpack.c.l.b16 %v101
  %v656 = vunpack.c.h.b16 %v101
  %v657 = vunpack.c.l.b16 %v102
  %v658 = vunpack.c.h.b16 %v102
  %v659 = vunpack.c.l.b16 %v103
  %v660 = vunpack.c.h.b16 %v103
  %v661 = vunpack.c.l.b16 %v104
  %v662 = vunpack.c.h.b16 %v104
  %v663 = vunpack.c.l.b16 %v105
  %v664 = vunpack.c.h.b16 %v105
  %v665 = vunpack.c.l.b16 %v106
  %v666 = vunpack.c.h.b16 %v106
  %v667 = vunpack.c.l.b16 %v107
  %v668 = vunpack.c.h.b16 %v107
  %v669 = vunpack.c.l.b16 %v108
  %v670 = vunpack.c.h.b16 %v108
  %v671 = vunpack.c.l.b16 %v109
  %v672 = vunpack.c.h.b16 %v109
  %v673 = vunpack.c.l.b16 %v110
  %v674 = vunpack.c.h.b16 %v110
  %v675 = vunpack.c.l.b16 %v111
  %v676 = vunpack.c.h.b16 %v111
  %v677 = vunpack.c.l.b16 %v112
  %v678 = vunpack.c.h.b16 %v112
  %v679 = vunpack.c.l.b16 %v113
  %v680 = vunpack.c.h.b16 %v113
  %v681 = vunpack.c.l.b16 %v114
  %v682 = vunpack.c.h.b16 %v114
  %v683 = vunpack.c.l.b16 %v115
  %v684 = vunpack.c.h.b16 %v115
  %v685 = vunpack.c.l.b16 %v116
  %v686 = vunpack.c.h.b16 %v116
  %v687 = vunpack.c.l.b16 %v117
  %v688 = vunpack.c.h.b16 %v117
  %v689 = vunpack.c.l.b16 %v118
  %v690 = vunpack.c.h.b16 %v118
  %v691 = vunpack.c.l.b16 %v119
  %v692 = vunpack.c.h.b16 %v119
  %v693 = vunpack.c.l.b16 %v120
  %v694 = vunpack.c.h.b16 %v120
  %v695 = vunpack.c.l.b16 %v121
  %v696 = vunpack.c.h.b16 %v121
  %v697 = vunpack.c.l.b16 %v122
  %v698 = vunpack.c.h.b16 %v122
  %v699 = vunpack.c.l.b16 %v123
  %v700 = vunpack.c.h.b16 %v123
  %v701 = vunpack.c.l.b16 %v124
  %v702 = vunpack.c.h.b16 %v124
  %v703 = vunpack.c.l.b16 %v125
  %v704 = vunpack.c.h.b16 %v125
  %v705 = vunpack.c.l.b16 %v126
  %v706 = vunpack.c.h.b16 %v126
  %v707 = vunpack.c.l.b16 %v127
  %v708 = vunpack.c.h.b16 %v127
  %v709 = vunpack.c.l.b16 %v128
  %v710 = vunpack.c.h.b16 %v128
  %v711 = vunpack.c.l.b16 %v129
  %v712 = vunpack.c.h.b16 %v129
  %v713 = vunpack.c.l.b16 %v130
  %v714 = vunpack.c.h.b16 %v130
  %v715 = vunpack.c.l.b16 %v131
  %v716 = vunpack.c.h.b16 %v131
  %v717 = vunpack.c.l.b16 %v132
  %v718 = vunpack.c.h.b16 %v132
  %v719 = vunpack.c.l.b16 %v133
  %v720 = vunpack.c.h.b16 %v133
  %v721 = vunpack.c.l.b16 %v134
  %v722 = vunpack.c.h.b16 %v134
  %v723 = vunpack.c.l.b16 %v135
  %v724 = vunpack.c.h.b16 %v135
  %v725 = vunpack.c.l.b16 %v136
  %v726 = vunpack.c.h.b16 %v136
  %v727 = vunpack.c.l.b16 %v137
  %v728 = vunpack.c.h.b16 %v137
  %v729 = vunpack.c.l.b16 %v138
  %v730 = vunpack.c.h.b16 %v138
  %v731 = vunpack.c.l.b16 %v139
  %v732 = vunpack.c.h.b16 %v139
  %v733 = vunpack.c.l.b16 %v140
  %v734 = vunpack.c.h.b16 %v140
  %v735 = vunpack.c.l.b16 %v141
  %v736 = vunpack.c.h.b16 %v141
  %v737 = vunpack.c.l.b16 %v142
  %v738 = vunpack.c.h.b16 %v142
  %v739 = vunpack.c.l.b16 %v143
  %v740 = vunpack.c.h.b16 %v143
  %v741 = vunpack.c.l.b16 %v144
  %v742 = vunpack.c.h.b16 %v144
  %v743 = vunpack.c.l.b16 %v145
  %v744 = vunpack.c.h.b16 %v145
  %v745 = vunpack.c.l.b16 %v146
  %v746 = vunpack.c.h.b16 %v146
  %v747 = vunpack.c.l.b16 %v147
  %v748 = vunpack.c.h.b16 %v147
  %v749 = vunpack.c.l.b16 %v148
  %v750 = vunpack.c.h.b16 %v148
  %v751 = vunpack.c.l.b16 %v149
  %v752 = vunpack.c.h.b16 %v149
  %v753 = vunpack.c.l.b16 %v150
  %v754 = vunpack.c.h.b16 %v150
  %v755 = vunpack.c.l.b16 %v151
  %v756 = vunpack.c.h.b16 %v151
  %v757 = vunpack.c.l.b16 %v152
  %v758 = vunpack.c.h.b16 %v152
  %v759 = vunpack.c.l.b16 %v153
  %v760 = vunpack.c.h.b16 %v153
  %v761 = vunpack.c.l.b16 %v154
  %v762 = vunpack.c.h.b16 %v154
  %v763 = vunpack.c.l.b16 %v155
  %v764 = vunpack.c.h.b16 %v155
  %v765 = vunpack.c.l.b16 %v156
  %v766 = vunpack.c.h.b16 %v156
  %v767 = vunpack.c.l.b16 %v157
  %v768 = vunpack.c.h.b16 %v157
  %v769 = vunpack.c.l.b16 %v158
  %v770 = vunpack.c.h.b16 %v158
  %v771 = vunpack.c.l.b16 %v159
  %v772 = vunpack.c.h.b16 %v159
  %v773 = vunpack.c.l.b16 %v160
  %v774 = vunpack.c.h.b16 %v160
  %v775 = vunpack.c.l.b16 %v161
  %v776 = vunpack.c.h.b16 %v161
  %v777 = vunpack.c.l.b16 %v162
  %v778 = vunpack.c.h.b16 %v162
  %v779 = vunpack.c.l.b16 %v163
  %v780 = vunpack.c.h.b16 %v163
  %v781 = vunpack.c.l.b16 %v164
  %v782 = vunpack.c.h.b16 %v164
  %v783 = vunpack.c.l.b16 %v165
  %v784 = vunpack.c.h.b16 %v165
  %v785 = vunpack.c.l.b16 %v166
  %v786 = vunpack.c.h.b16 %v166
  %v787 = vunpack.c.l.b16 %v167
  %v788 = vunpack.c.h.b16 %v167
  %v789 = vunpack.c.l.b16 %v168
  %v790 = vunpack.c.h.b16 %v168
  %v791 = vunpack.c.l.b16 %v169
  %v792 = vunpack.c.h.b16 %v169
  %v793 = vunpack.c.l.b16 %v170
  %v794 = vunpack.c.h.b16 %v170
  %v795 = vunpack.c.l.b16 %v171
  %v796 = vunpack.c.h.b16 %v171
  %v797 = vunpack.c.l.b16 %v172
  %v798 = vunpack.c.h.b16 %v172
  %v799 = vunpack.c.l.b16 %v173
  %v800 = vunpack.c.h.b16 %v173
  %v801 = vunpack.c.l.b16 %v174
  %v802 = vunpack.c.h.b16 %v174
  %v803 = vunpack.c.l.b16 %v175
  %v804 = vunpack.c.h.b16 %v175
  %v805 = vunpack.c.l.b16 %v176
  %v806 = vunpack.c.h.b16 %v176
  %v807 = vunpack.c.l.b16 %v177
  %v808 = vunpack.c.h.b16 %v177
  %v809 = vunpack.c.l.b16 %v178
  %v810 = vunpack.c.h.b16 %v178
  %v811 = vunpack.c.l.b16 %v179
  %v812 = vunpack.c.h.b16 %v179
  %v813 = vunpack.c.l.b16 %v180
  %v814 = vunpack.c.h.b16 %v180
  %v815 = vunpack.c.l.b16 %v181
  %v816 = vunpack.c.h.b16 %v181
  %v817 = vunpack.c.l.b16 %v182
  %v818 = vunpack.c.h.b16 %v182
  %v819 = vunpack.c.l.b16 %v183
  %v820 = vunpack.c.h.b16 %v183
  %v821 = vunpack.c.l.b16 %v184
  %v822 = vunpack.c.h.b16 %v184
  %v823 = vunpack.c.l.b16 %v185
  %v824 = vunpack.c.h.b16 %v185
  %v825 = vunpack.c.l.b16 %v186
  %v826 = vunpack.c.h.b16 %v186
  %v827 = vunpack.c.l.b16 %v187
  %v828 = vunpack.c.h.b16 %v187
  %v829 = vunpack.c.l.b16 %v188
  %v830 = vunpack.c.h.b16 %v188
  %v831 = vunpack.c.l.b16 %v189
  %v832 = vunpack.c.h.b16 %v189
  %v833 = vunpack.c.l.b16 %v190
  %v834 = vunpack.c.h.b16 %v190
  %v835 = vunpack.c.l.b16 %v191
  %v836 = vunpack.c.h.b16 %v191
  %v837 = vunpack.c.l.b16 %v192
  %v838 = vunpack.c.h.b16 %v192
  %v839 = vunpack.c.l.b16 %v193
  %v840 = vunpack.c.h.b16 %v193
  %v841 = vunpack.c.l.b16 %v194
  %v842 = vunpack.c.h.b16 %v194
  %v843 = vunpack.c.l.b16 %v195
  %v844 = vunpack.c.h.b16 %v195
  %v845 = vunpack.c.l.b16 %v196
  %v846 = vunpack.c.h.b16 %v196
  %v847 = vunpack.c.l.b16 %v197
  %v848 = vunpack.c.h.b16 %v197
  %v849 = vunpack.c.l.b16 %v198
  %v850 = vunpack.c.h.b16 %v198
  %v851 = vunpack.c.l.b16 %v199
  %v852 = vunpack.c.h.b16 %v199
  %v853 = vunpack.c.l.b16 %v200
  %v854 = vunpack.c.h.b16 %v200
  %v855 = vunpack.c.l.b16 %v201
  %v856 = vunpack.c.h.b16 %v201
  %v857 = vunpack.c.l.b16 %v202
  %v858 = vunpack.c.h.b16 %v202
  %v859 = vunpack.c.l.b16 %v203
  %v860 = vunpack.c.h.b16 %v203
  %v861 = vunpack.c.l.b16 %v204
  %v862 = vunpack.c.h.b16 %v204
  %v863 = vunpack.c.l.b16 %v205
  %v864 = vunpack.c.h.b16 %v205
  %v865 = vunpack.c.l.b16 %v206
  %v866 = vunpack.c.h.b16 %v206
  %v867 = vunpack.c.l.b16 %v207
  %v868 = vunpack.c.h.b16 %v207
  %v869 = vunpack.c.l.b16 %v208
  %v870 = vunpack.c.h.b16 %v208
  %v871 = vunpack.c.l.b16 %v209
  %v872 = vunpack.c.h.b16 %v209
  %v873 = vunpack.c.l.b16 %v210
  %v874 = vunpack.c.h.b16 %v210
  %v875 = vunpack.c.l.b16 %v211
  %v876 = vunpack.c.h.b16 %v211
  %v877 = vunpack.c.l.b16 %v212
  %v878 = vunpack.c.h.b16 %v212
  %v879 = vunpack.c.l.b16 %v213
  %v880 = vunpack.c.h.b16 %v213
  %v881 = vunpack.c.l.b16 %v214
  %v882 = vunpack.c.h.b16 %v214
  %v883 = vunpack.c.l.b16 %v215
  %v884 = vunpack.c.h.b16 %v215
  %v885 = vunpack.c.l.b16 %v216
  %v886 = vunpack.c.h.b16 %v216
  %v887 = vunpack.c.l.b16 %v217
  %v888 = vunpack.c.h.b16 %v217
  %v889 = vunpack.c.l.b16 %v218
  %v890 = vunpack.c.h.b16 %v218
  %v891 = vunpack.c.l.b16 %v219
  %v892 = vunpack.c.h.b16 %v219
  %v893 = vunpack.c.l.b16 %v220
  %v894 = vunpack.c.h.b16 %v220
  %v895 = vunpack.c.l.b16 %v221
  %v896 = vunpack.c.h.b16 %v221
  %v897 = vunpack.c.l.b16 %v222
  %v898 = vunpack.c.h.b16 %v222
  %v899 = vunpack.c.l.b16 %v223
  %v900 = vunpack.c.h.b16 %v223
  %v901 = vunpack.c.l.b16 %v224
  %v902 = vunpack.c.h.b16 %v224
  %v903 = vunpack.c.l.b16 %v225
  %v904 = vunpack.c.h.b16 %v225
  %v905 = vunpack.c.l.b16 %v226
  %v906 = vunpack.c.h.b16 %v226
  %v907 = vunpack.c.l.b16 %v227
  %v908 = vunpack.c.h.b16 %v227
  %v909 = vunpack.c.l.b16 %v228
  %v910 = vunpack.c.h.b16 %v228
  %v911 = vunpack.c.l.b16 %v229
  %v912 = vunpack.c.h.b16 %v229
  %v913 = vunpack.c.l.b16 %v230
  %v914 = vunpack.c.h.b16 %v230
  %v915 = vunpack.c.l.b16 %v231
  %v916 = vunpack.c.h.b16 %v231
  %v917 = vunpack.c.l.b16 %v232
  %v918 = vunpack.c.h.b16 %v232
  %v919 = vunpack.c.l.b16 %v233
  %v920 = vunpack.c.h.b16 %v233
  %v921 = vunpack.c.l.b16 %v234
  %v922 = vunpack.c.h.b16 %v234
  %v923 = vunpack.c.l.b16 %v235
  %v924 = vunpack.c.h.b16 %v235
  %v925 = vunpack.c.l.b16 %v236
  %v926 = vunpack.c.h.b16 %v236
  %v927 = vunpack.c.l.b16 %v237
  %v928 = vunpack.c.h.b16 %v237
  %v929 = vunpack.c.l.b16 %v238
  %v930 = vunpack.c.h.b16 %v238
  %v931 = vunpack.c.l.b16 %v239
  %v932 = vunpack.c.h.b16 %v239
  %v933 = vunpack.c.l.b16 %v240
  %v934 = vunpack.c.h.b16 %v240
  %v935 = vunpack.c.l.b16 %v241
  %v936 = vunpack.c.h.b16 %v241
  %v937 = vunpack.c.l.b16 %v242
  %v938 = vunpack.c.h.b16 %v242
  %v939 = vunpack.c.l.b16 %v243
  %v940 = vunpack.c.h.b16 %v243
  %v941 = vunpack.c.l.b16 %v244
  %v942 = vunpack.c.h.b16 %v244
  %v943 = vunpack.c.l.b16 %v245
  %v944 = vunpack.c.h.b16 %v245
  %v945 = vunpack.c.l.b16 %v246
  %v946 = vunpack.c.h.b16 %v246
  %v947 = vunpack.c.l.b16 %v247
  %v948 = vunpack.c.h.b16 %v247
  %v949 = vunpack.c.l.b16 %v248
  %v950 = vunpack.c.h.b16 %v248
  %v951 = vunpack.c.l.b16 %v249
  %v952 = vunpack.c.h.b16 %v249
  %v953 = vunpack.c.l.b16 %v250
  %v954 = vunpack.c.h.b16 %v250
  %v955 = vunpack.c.l.b16 %v251
  %v956 = vunpack.c.h.b16 %v251
  %v957 = vunpack.c.l.b16 %v252
  %v958 = vunpack.c.h.b16 %v252
  %v959 = vunpack.c.l.b16 %v253
  %v960 = vunpack.c.h.b16 %v253
  %v961 = vunpack.c.l.b16 %v254
  %v962 = vunpack.c.h.b16 %v254
  %v963 = vunpack.c.l.b16 %v255
  %v964 = vunpack.c.h.b16 %v255
  %v965 = vunpack.c.l.b16 %v256
  %v966 = vunpack.c.h.b16 %v256
  %v967 = vunpack.c.l.b16 %v257
  %v968 = vunpack.c.h.b16 %v257
  %v969 = vunpack.c.l.b16 %v258
  %v970 = vunpack.c.h.b16 %v258
  %v971 = vunpack.c.l.b16 %v259
  %v972 = vunpack.c.h.b16 %v259
  %v973 = vunpack.c.l.b16 %v260
  %v974 = vunpack.c.h.b16 %v260
  %v975 = vunpack.c.l.b16 %v261
  %v976 = vunpack.c.h.b16 %v261
  %v977 = vunpack.c.l.b16 %v262
  %v978 = vunpack.c.h.b16 %v262
  %v979 = vunpack.c.l.b16 %v263
  %v980 = vunpack.c.h.b16 %v263
  %v981 = vunpack.c.l.b16 %v264
  %v982 = vunpack.c.h.b16 %v264
  %v983 = vunpack.c.l.b16 %v265
  %v984 = vunpack.c.h.b16 %v265
  %v985 = vpack.c.b16 %v541, %v537
  %v986 = vpack.c.b16 %v542, %v538
  %v987 = vpack.c.b16 %v543, %v539
  %v988 = vpack.c.b16 %v544, %v540
  %v989 = vpack.c.b16 %v549, %v545
  %v990 = vpack.c.b16 %v550, %v546
  %v991 = vpack.c.b16 %v551, %v547
  %v992 = vpack.c.b16 %v552, %v548
  %v993 = vpack.c.b16 %v557, %v553
  %v994 = vpack.c.b16 %v558, %v554
  %v995 = vpack.c.b16 %v559, %v555
  %v996 = vpack.c.b16 %v560, %v556
  %v997 = vpack.c.b16 %v565, %v561
  %v998 = vpack.c.b16 %v566, %v562
  %v999 = vpack.c.b16 %v567, %v563
  %v1000 = vpack.c.b16 %v568, %v564
  %v1001 = vpack.c.b16 %v573, %v569
  %v1002 = vpack.c.b16 %v574, %v570
  %v1003 = vpack.c.b16 %v575, %v571
  %v1004 = vpack.c.b16 %v576, %v572
  %v1005 = vpack.c.b16 %v581, %v577
  %v1006 = vpack.c.b16 %v582, %v578
  %v1007 = vpack.c.b16 %v583, %v579
  %v1008 = vpack.c.b16 %v584, %v580
  %v1009 = vpack.c.b16 %v589, %v585
  %v1010 = vpack.c.b16 %v590, %v586
  %v1011 = vpack.c.b16 %v591, %v587
  %v1012 = vpack.c.b16 %v592, %v588
  %v1013 = vpack.c.b16 %v597, %v593
  %v1014 = vpack.c.b16 %v598, %v594
  %v1015 = vpack.c.b16 %v599, %v595
  %v1016 = vpack.c.b16 %v600, %v596
  %v1017 = vpack.c.b16 %v605, %v601
  %v1018 = vpack.c.b16 %v606, %v602
  %v1019 = vpack.c.b16 %v607, %v603
  %v1020 = vpack.c.b16 %v608, %v604
  %v1021 = vpack.c.b16 %v613, %v609
  %v1022 = vpack.c.b16 %v614, %v610
  %v1023 = vpack.c.b16 %v615, %v611
  %v1024 = vpack.c.b16 %v616, %v612
  %v1025 = vpack.c.b16 %v621, %v617
  %v1026 = vpack.c.b16 %v622, %v618
  %v1027 = vpack.c.b16 %v623, %v619
  %v1028 = vpack.c.b16 %v624, %v620
  %v1029 = vpack.c.b16 %v629, %v625
  %v1030 = vpack.c.b16 %v630, %v626
  %v1031 = vpack.c.b16 %v631, %v627
  %v1032 = vpack.c.b16 %v632, %v628
  %v1033 = vpack.c.b16 %v637, %v633
  %v1034 = vpack.c.b16 %v638, %v634
  %v1035 = vpack.c.b16 %v639, %v635
  %v1036 = vpack.c.b16 %v640, %v636
  %v1037 = vpack.c.b16 %v645, %v641
  %v1038 = vpack.c.b16 %v646, %v642
  %v1039 = vpack.c.b16 %v647, %v643
  %v1040 = vpack.c.b16 %v648, %v644
  %v1041 = vpack.c.b16 %v653, %v649
  %v1042 = vpack.c.b16 %v654, %v650
  %v1043 = vpack.c.b16 %v655, %v651
  %v1044 = vpack.c.b16 %v656, %v652
  %v1045 = vpack.c.b16 %v661, %v657
  %v1046 = vpack.c.b16 %v662, %v658
  %v1047 = vpack.c.b16 %v663, %v659
  %v1048 = vpack.c.b16 %v664, %v660
  %v1049 = vpack.c.b16 %v669, %v665
  %v1050 = vpack.c.b16 %v670, %v666
  %v1051 = vpack.c.b16 %v671, %v667
  %v1052 = vpack.c.b16 %v672, %v668
  %v1053 = vpack.c.b16 %v677, %v673
  %v1054 = vpack.c.b16 %v678, %v674
  %v1055 = vpack.c.b16 %v679, %v675
  %v1056 = vpack.c.b16 %v680, %v676
  %v1057 = vpack.c.b16 %v685, %v681
  %v1058 = vpack.c.b16 %v686, %v682
  %v1059 = vpack.c.b16 %v687, %v683
  %v1060 = vpack.c.b16 %v688, %v684
  %v1061 = vpack.c.b16 %v693, %v689
  %v1062 = vpack.c.b16 %v694, %v690
  %v1063 = vpack.c.b16 %v695, %v691
  %v1064 = vpack.c.b16 %v696, %v692
  %v1065 = vpack.c.b16 %v701, %v697
  %v1066 = vpack.c.b16 %v702, %v698
  %v1067 = vpack.c.b16 %v703, %v699
  %v1068 = vpack.c.b16 %v704, %v700
  %v1069 = vpack.c.b16 %v709, %v705
  %v1070 = vpack.c.b16 %v710, %v706
  %v1071 = vpack.c.b16 %v711, %v707
  %v1072 = vpack.c.b16 %v712, %v708
  %v1073 = vpack.c.b16 %v717, %v713
  %v1074 = vpack.c.b16 %v718, %v714
  %v1075 = vpack.c.b16 %v719, %v715
  %v1076 = vpack.c.b16 %v720, %v716
  %v1077 = vpack.c.b16 %v725, %v721
  %v1078 = vpack.c.b16 %v726, %v722
  %v1079 = vpack.c.b16 %v727, %v723
  %v1080 = vpack.c.b16 %v728, %v724
  %v1081 = vpack.c.b16 %v733, %v729
  %v1082 = vpack.c.b16 %v734, %v730
  %v1083 = vpack.c.b16 %v735, %v731
  %v1084 = vpack.c.b16 %v736, %v732
  %v1085 = vpack.c.b16 %v741, %v737
  %v1086 = vpack.c.b16 %v742, %v738
  %v1087 = vpack.c.b16 %v743, %v739
  %v1088 = vpack.c.b16 %v744, %v740
  %v1089 = vpack.c.b16 %v749, %v745
  %v1090 = vpack.c.b16 %v750, %v746
  %v1091 = vpack.c.b16 %v751, %v747
  %v1092 = vpack.c.b16 %v752, %v748
  %v1093 = vpack.c.b16 %v757, %v753
  %v1094 = vpack.c.b16 %v758, %v754
  %v1095 = vpack.c.b16 %v759, %v755
  %v1096 = vpack.c.b16 %v760, %v756
  %v1097 = vpack.c.b16 %v765, %v761
  %v1098 = vpack.c.b16 %v766, %v762
  %v1099 = vpack.c.b16 %v767, %v763
  %v1100 = vpack.c.b16 %v768, %v764
  %v1101 = vpack.c.b16 %v773, %v769
  %v1102 = vpack.c.b16 %v774, %v770
  %v1103 = vpack.c.b16 %v775, %v771
  %v1104 = vpack.c.b16 %v776, %v772
  %v1105 = vpack.c.b16 %v781, %v777
  %v1106 = vpack.c.b16 %v782, %v778
  %v1107 = vpack.c.b16 %v783, %v779
  %v1108 = vpack.c.b16 %v784, %v780
  %v1109 = vpack.c.b16 %v789, %v785
  %v1110 = vpack.c.b16 %v790, %v786
  %v1111 = vpack.c.b16 %v791, %v787
  %v1112 = vpack.c.b16 %v792, %v788
  %v1113 = vpack.c.b16 %v797, %v793
  %v1114 = vpack.c.b16 %v798, %v794
  %v1115 = vpack.c.b16 %v799, %v795
  %v1116 = vpack.c.b16 %v800, %v796
  %v1117 = vpack.c.b16 %v805, %v801
  %v1118 = vpack.c.b16 %v806, %v802
  %v1119 = vpack.c.b16 %v807, %v803
  %v1120 = vpack.c.b16 %v808, %v804
  %v1121 = vpack.c.b16 %v813, %v809
  %v1122 = vpack.c.b16 %v814, %v810
  %v1123 = vpack.c.b16 %v815, %v811
  %v1124 = vpack.c.b16 %v816, %v812
  %v1125 = vpack.c.b16 %v821, %v817
  %v1126 = vpack.c.b16 %v822, %v818
  %v1127 = vpack.c.b16 %v823, %v819
  %v1128 = vpack.c.b16 %v824, %v820
  %v1129 = vpack.c.b16 %v829, %v825
  %v1130 = vpack.c.b16 %v830, %v826
  %v1131 = vpack.c.b16 %v831, %v827
  %v1132 = vpack.c.b16 %v832, %v828
  %v1133 = vpack.c.b16 %v837, %v833
  %v1134 = vpack.c.b16 %v838, %v834
  %v1135 = vpack.c.b16 %v839, %v835
  %v1136 = vpack.c.b16 %v840, %v836
  %v1137 = vpack.c.b16 %v845, %v841
  %v1138 = vpack.c.b16 %v846, %v842
  %v1139 = vpack.c.b16 %v847, %v843
  %v1140 = vpack.c.b16 %v848, %v844
  %v1141 = vpack.c.b16 %v853, %v849
  %v1142 = vpack.c.b16 %v854, %v850
  %v1143 = vpack.c.b16 %v855, %v851
  %v1144 = vpack.c.b16 %v856, %v852
  %v1145 = vpack.c.b16 %v861, %v857
  %v1146 = vpack.c.b16 %v862, %v858
  %v1147 = vpack.c.b16 %v863, %v859
  %v1148 = vpack.c.b16 %v864, %v860
  %v1149 = vpack.c.b16 %v869, %v865
  %v1150 = vpack.c.b16 %v870, %v866
  %v1151 = vpack.c.b16 %v871, %v867
  %v1152 = vpack.c.b16 %v872, %v868
  %v1153 = vpack.c.b16 %v877, %v873
  %v1154 = vpack.c.b16 %v878, %v874
  %v1155 = vpack.c.b16 %v879, %v875
  %v1156 = vpack.c.b16 %v880, %v876
  %v1157 = vpack.c.b16 %v885, %v881
  %v1158 = vpack.c.b16 %v886, %v882
  %v1159 = vpack.c.b16 %v887, %v883
  %v1160 = vpack.c.b16 %v888, %v884
  %v1161 = vpack.c.b16 %v893, %v889
  %v1162 = vpack.c.b16 %v894, %v890
  %v1163 = vpack.c.b16 %v895, %v891
  %v1164 = vpack.c.b16 %v896, %v892
  %v1165 = vpack.c.b16 %v901, %v897
  %v1166 = vpack.c.b16 %v902, %v898
  %v1167 = vpack.c.b16 %v903, %v899
  %v1168 = vpack.c.b16 %v904, %v900
  %v1169 = vpack.c.b16 %v909, %v905
  %v1170 = vpack.c.b16 %v910, %v906
  %v1171 = vpack.c.b16 %v911, %v907
  %v1172 = vpack.c.b16 %v912, %v908
  %v1173 = vpack.c.b16 %v917, %v913
  %v1174 = vpack.c.b16 %v918, %v914
  %v1175 = vpack.c.b16 %v919, %v915
  %v1176 = vpack.c.b16 %v920, %v916
  %v1177 = vpack.c.b16 %v925, %v921
  %v1178 = vpack.c.b16 %v926, %v922
  %v1179 = vpack.c.b16 %v927, %v923
  %v1180 = vpack.c.b16 %v928, %v924
  %v1181 = vpack.c.b16 %v933, %v929
  %v1182 = vpack.c.b16 %v934, %v930
  %v1183 = vpack.c.b16 %v935, %v931
  %v1184 = vpack.c.b16 %v936, %v932
  %v1185 = vpack.c.b16 %v941, %v937
  %v1186 = vpack.c.b16 %v942, %v938
  %v1187 = vpack.c.b16 %v943, %v939
  %v1188 = vpack.c.b16 %v944, %v940
  %v1189 = vpack.c.b16 %v949, %v945
  %v1190 = vpack.c.b16 %v950, %v946
  %v1191 = vpack.c.b16 %v951, %v947
  %v1192 = vpack.c.b16 %v952, %v948
  %v1193 = vpack.c.b16 %v957, %v953
  %v1194 = vpack.c.b16 %v958, %v954
  %v1195 = vpack.c.b16 %v959, %v955
  %v1196 = vpack.c.b16 %v960, %v956
  %v1197 = vpack.c.b16 %v965, %v961
  %v1198 = vpack.c.b16 %v966, %v962
  %v1199 = vpack.c.b16 %v967, %v963
  %v1200 = vpack.c.b16 %v968, %v964
  %v1201 = vpack.c.b16 %v973, %v969
  %v1202 = vpack.c.b16 %v974, %v970
  %v1203 = vpack.c.b16 %v975, %v971
  %v1204 = vpack.c.b16 %v976, %v972
  %v1205 = vpack.c.b16 %v981, %v977
  %v1206 = vpack.c.b16 %v982, %v978
  %v1207 = vpack.c.b16 %v983, %v979
  %v1208 = vpack.c.b16 %v984, %v980
  %1433 = vmatprep.subr.bf16.mxu0 %v986
  %1434 = vmatpush1.bf16.msra.mxu0 %v985
  %1435 = vmatprep.subr.bf16.mxu0 %v990
  %1436 = vmatpush1.bf16.msra.mxu0 %v989
  %1437 = vmatprep.subr.bf16.mxu0 %v994
  %1438 = vmatpush1.bf16.msra.mxu0 %v993
  %1439 = vmatprep.subr.bf16.mxu0 %v998
  %1440 = vmatpush1.bf16.msra.mxu0 %v997
  %1441 = vmatprep.subr.bf16.mxu0 %v1002
  %1442 = vmatpush1.bf16.msra.mxu0 %v1001
  %1443 = vmatprep.subr.bf16.mxu0 %v1006
  %1444 = vmatpush1.bf16.msra.mxu0 %v1005
  %1445 = vmatprep.subr.bf16.mxu0 %v1010
  %1446 = vmatpush1.bf16.msra.mxu0 %v1009
  %1447 = vmatprep.subr.bf16.mxu0 %v1014
  %1448 = vmatpush1.bf16.msra.mxu0 %v1013
  %1449 = vmatprep.subr.bf16.mxu0 %v1018
  %1450 = vmatpush1.bf16.msra.mxu0 %v1017
  %1451 = vmatprep.subr.bf16.mxu0 %v1022
  %1452 = vmatpush1.bf16.msra.mxu0 %v1021
  %1453 = vmatprep.subr.bf16.mxu0 %v1026
  %1454 = vmatpush1.bf16.msra.mxu0 %v1025
  %1455 = vmatprep.subr.bf16.mxu0 %v1030
  %1456 = vmatpush1.bf16.msra.mxu0 %v1029
  %1457 = vmatprep.subr.bf16.mxu0 %v1034
  %1458 = vmatpush1.bf16.msra.mxu0 %v1033
  %1459 = vmatprep.subr.bf16.mxu0 %v1038
  %1460 = vmatpush1.bf16.msra.mxu0 %v1037
  %1461 = vmatprep.subr.bf16.mxu0 %v1042
  %1462 = vmatpush1.bf16.msra.mxu0 %v1041
  %1463 = vmatprep.subr.bf16.mxu0 %v1046
  %1464 = vmatpush1.bf16.msra.mxu0 %v1045
  %1465 = vmatprep.mubr.bf16.mxu0 %v300
  %1466 = vmatmul.mubr.bf16.gmra.mrb[0].mxu0 %v299
  %v1467 = vpop.f32.mrb[0].mxu0
  %v1468 = vadd.f32 %v271, %v1467
  %v1469 = vpop.f32.mrb[0].mxu0
  %v1470 = vadd.f32 %v275, %v1469
  %v1471 = vpop.f32.mrb[0].mxu0
  %v1472 = vpop.f32.mrb[0].mxu0
  %1473 = vdwg.mxu0
  %1474 = vmatprep.subr.bf16.mxu0 %v1050
  %1475 = vmatpush1.bf16.msra.mxu0 %v1049
  %1476 = vmatprep.subr.bf16.mxu0 %v1054
  %1477 = vmatpush1.bf16.msra.mxu0 %v1053
  %1478 = vmatprep.subr.bf16.mxu0 %v1058
  %1479 = vmatpush1.bf16.msra.mxu0 %v1057
  %1480 = vmatprep.subr.bf16.mxu0 %v1062
  %1481 = vmatpush1.bf16.msra.mxu0 %v1061
  %1482 = vmatprep.subr.bf16.mxu0 %v1066
  %1483 = vmatpush1.bf16.msra.mxu0 %v1065
  %1484 = vmatprep.subr.bf16.mxu0 %v1070
  %1485 = vmatpush1.bf16.msra.mxu0 %v1069
  %1486 = vmatprep.subr.bf16.mxu0 %v1074
  %1487 = vmatpush1.bf16.msra.mxu0 %v1073
  %1488 = vmatprep.subr.bf16.mxu0 %v1078
  %1489 = vmatpush1.bf16.msra.mxu0 %v1077
  %1490 = vmatprep.subr.bf16.mxu0 %v1082
  %1491 = vmatpush1.bf16.msra.mxu0 %v1081
  %1492 = vmatprep.subr.bf16.mxu0 %v1086
  %1493 = vmatpush1.bf16.msra.mxu0 %v1085
  %1494 = vmatprep.subr.bf16.mxu0 %v1090
  %1495 = vmatpush1.bf16.msra.mxu0 %v1089
  %1496 = vmatprep.subr.bf16.mxu0 %v1094
  %1497 = vmatpush1.bf16.msra.mxu0 %v1093
  %1498 = vmatprep.subr.bf16.mxu0 %v1098
  %1499 = vmatpush1.bf16.msra.mxu0 %v1097
  %1500 = vmatprep.subr.bf16.mxu0 %v1102
  %1501 = vmatpush1.bf16.msra.mxu0 %v1101
  %1502 = vmatprep.subr.bf16.mxu0 %v1106
  %1503 = vmatpush1.bf16.msra.mxu0 %v1105
  %1504 = vmatprep.subr.bf16.mxu0 %v1110
  %1505 = vmatpush1.bf16.msra.mxu0 %v1109
  %1506 = vmatprep.mubr.bf16.mxu0 %v302
  %1507 = vmatmul.mubr.bf16.gmra.mrb[0].mxu0 %v301
  %v1508 = vpop.f32.mrb[0].mxu0
  %v1509 = vadd.f32 %v1468, %v1508
  %v1510 = vpop.f32.mrb[0].mxu0
  %v1511 = vadd.f32 %v1470, %v1510
  %v1512 = vpop.f32.mrb[0].mxu0
  %v1513 = vpop.f32.mrb[0].mxu0
  %1514 = vdwg.mxu0
  %1515 = vmatprep.subr.bf16.mxu0 %v1114
  %1516 = vmatpush1.bf16.msra.mxu0 %v1113
  %1517 = vmatprep.subr.bf16.mxu0 %v1118
  %1518 = vmatpush1.bf16.msra.mxu0 %v1117
  %1519 = vmatprep.subr.bf16.mxu0 %v1122
  %1520 = vmatpush1.bf16.msra.mxu0 %v1121
  %1521 = vmatprep.subr.bf16.mxu0 %v1126
  %1522 = vmatpush1.bf16.msra.mxu0 %v1125
  %1523 = vmatprep.subr.bf16.mxu0 %v1130
  %1524 = vmatpush1.bf16.msra.mxu0 %v1129
  %1525 = vmatprep.subr.bf16.mxu0 %v1134
  %1526 = vmatpush1.bf16.msra.mxu0 %v1133
  %1527 = vmatprep.subr.bf16.mxu0 %v1138
  %1528 = vmatpush1.bf16.msra.mxu0 %v1137
  %1529 = vmatprep.subr.bf16.mxu0 %v1142
  %1530 = vmatpush1.bf16.msra.mxu0 %v1141
  %1531 = vmatprep.subr.bf16.mxu0 %v1146
  %1532 = vmatpush1.bf16.msra.mxu0 %v1145
  %1533 = vmatprep.subr.bf16.mxu0 %v1150
  %1534 = vmatpush1.bf16.msra.mxu0 %v1149
  %1535 = vmatprep.subr.bf16.mxu0 %v1154
  %1536 = vmatpush1.bf16.msra.mxu0 %v1153
  %1537 = vmatprep.subr.bf16.mxu0 %v1158
  %1538 = vmatpush1.bf16.msra.mxu0 %v1157
  %1539 = vmatprep.subr.bf16.mxu0 %v1162
  %1540 = vmatpush1.bf16.msra.mxu0 %v1161
  %1541 = vmatprep.subr.bf16.mxu0 %v1166
  %1542 = vmatpush1.bf16.msra.mxu0 %v1165
  %1543 = vmatprep.subr.bf16.mxu0 %v1170
  %1544 = vmatpush1.bf16.msra.mxu0 %v1169
  %1545 = vmatprep.subr.bf16.mxu0 %v1174
  %1546 = vmatpush1.bf16.msra.mxu0 %v1173
  %1547 = vmatprep.mubr.bf16.mxu0 %v304
  %1548 = vmatmul.mubr.bf16.gmra.mrb[0].mxu0 %v303
  %v1549 = vpop.f32.mrb[0].mxu0
  %v1550 = vadd.f32 %v1509, %v1549
  %v1551 = vpop.f32.mrb[0].mxu0
  %v1552 = vadd.f32 %v1511, %v1551
  %v1553 = vpop.f32.mrb[0].mxu0
  %v1554 = vpop.f32.mrb[0].mxu0
  %1555 = vdwg.mxu0
  %1556 = vmatprep.subr.bf16.mxu0 %v1178
  %1557 = vmatpush1.bf16.msra.mxu0 %v1177
  %1558 = vmatprep.subr.bf16.mxu0 %v1182
  %1559 = vmatpush1.bf16.msra.mxu0 %v1181
  %1560 = vmatprep.subr.bf16.mxu0 %v1186
  %1561 = vmatpush1.bf16.msra.mxu0 %v1185
  %1562 = vmatprep.subr.bf16.mxu0 %v1190
  %1563 = vmatpush1.bf16.msra.mxu0 %v1189
  %1564 = vmatprep.subr.bf16.mxu0 %v1194
  %1565 = vmatpush1.bf16.msra.mxu0 %v1193
  %1566 = vmatprep.subr.bf16.mxu0 %v1198
  %1567 = vmatpush1.bf16.msra.mxu0 %v1197
  %1568 = vmatprep.subr.bf16.mxu0 %v1202
  %1569 = vmatpush1.bf16.msra.mxu0 %v1201
  %1570 = vmatprep.subr.bf16.mxu0 %v1206
  %1571 = vmatpush1.bf16.msra.mxu0 %v1205
  %1572 = vmatprep.subr.bf16.mxu0 0
  %1573 = vmatpush1.bf16.msra.mxu0 0
  %1574 = vmatprep.subr.bf16.mxu0 0
  %1575 = vmatpush1.bf16.msra.mxu0 0
  %1576 = vmatprep.subr.bf16.mxu0 0
  %1577 = vmatpush1.bf16.msra.mxu0 0
  %1578 = vmatprep.subr.bf16.mxu0 0
  %1579 = vmatpush1.bf16.msra.mxu0 0
  %1580 = vmatprep.subr.bf16.mxu0 0
  %1581 = vmatpush1.bf16.msra.mxu0 0
  %1582 = vmatprep.subr.bf16.mxu0 0
  %1583 = vmatpush1.bf16.msra.mxu0 0
  %1584 = vmatprep.subr.bf16.mxu0 0
  %1585 = vmatpush1.bf16.msra.mxu0 0
  %1586 = vmatprep.subr.bf16.mxu0 0
  %1587 = vmatpush1.bf16.msra.mxu0 0
  %1588 = vmatprep.mubr.bf16.mxu0 0
  %1589 = vmatmul.mubr.bf16.gmra.mrb[0].mxu0 %v305
  %v1590 = vpop.f32.mrb[0].mxu0
  %v1591 = vadd.f32 %v1550, %v1590
  %v1592 = vpop.f32.mrb[0].mxu0
  %v1593 = vadd.f32 %v1552, %v1592
  %v1594 = vpop.f32.mrb[0].mxu0
  %v1595 = vpop.f32.mrb[0].mxu0
  %1596 = vdwg.mxu0
  %1597 = vmatprep.subr.bf16.mxu0 %v988
  %1598 = vmatpush1.bf16.msra.mxu0 %v987
  %1599 = vmatprep.subr.bf16.mxu0 %v992
  %1600 = vmatpush1.bf16.msra.mxu0 %v991
  %1601 = vmatprep.subr.bf16.mxu0 %v996
  %1602 = vmatpush1.bf16.msra.mxu0 %v995
  %1603 = vmatprep.subr.bf16.mxu0 %v1000
  %1604 = vmatpush1.bf16.msra.mxu0 %v999
  %1605 = vmatprep.subr.bf16.mxu0 %v1004
  %1606 = vmatpush1.bf16.msra.mxu0 %v1003
  %1607 = vmatprep.subr.bf16.mxu0 %v1008
  %1608 = vmatpush1.bf16.msra.mxu0 %v1007
  %1609 = vmatprep.subr.bf16.mxu0 %v1012
  %1610 = vmatpush1.bf16.msra.mxu0 %v1011
  %1611 = vmatprep.subr.bf16.mxu0 %v1016
  %1612 = vmatpush1.bf16.msra.mxu0 %v1015
  %1613 = vmatprep.subr.bf16.mxu0 %v1020
  %1614 = vmatpush1.bf16.msra.mxu0 %v1019
  %1615 = vmatprep.subr.bf16.mxu0 %v1024
  %1616 = vmatpush1.bf16.msra.mxu0 %v1023
  %1617 = vmatprep.subr.bf16.mxu0 %v1028
  %1618 = vmatpush1.bf16.msra.mxu0 %v1027
  %1619 = vmatprep.subr.bf16.mxu0 %v1032
  %1620 = vmatpush1.bf16.msra.mxu0 %v1031
  %1621 = vmatprep.subr.bf16.mxu0 %v1036
  %1622 = vmatpush1.bf16.msra.mxu0 %v1035
  %1623 = vmatprep.subr.bf16.mxu0 %v1040
  %1624 = vmatpush1.bf16.msra.mxu0 %v1039
  %1625 = vmatprep.subr.bf16.mxu0 %v1044
  %1626 = vmatpush1.bf16.msra.mxu0 %v1043
  %1627 = vmatprep.subr.bf16.mxu0 %v1048
  %1628 = vmatpush1.bf16.msra.mxu0 %v1047
  %1629 = vmatprep.mubr.bf16.mxu0 %v300
  %1630 = vmatmul.mubr.bf16.gmra.mrb[0].mxu0 %v299
  %v1631 = vpop.f32.mrb[0].mxu0
  %v1632 = vadd.f32 %v279, %v1631
  %v1633 = vpop.f32.mrb[0].mxu0
  %v1634 = vadd.f32 %v283, %v1633
  %v1635 = vpop.f32.mrb[0].mxu0
  %v1636 = vpop.f32.mrb[0].mxu0
  %1637 = vdwg.mxu0
  %1638 = vmatprep.subr.bf16.mxu0 %v1052
  %1639 = vmatpush1.bf16.msra.mxu0 %v1051
  %1640 = vmatprep.subr.bf16.mxu0 %v1056
  %1641 = vmatpush1.bf16.msra.mxu0 %v1055
  %1642 = vmatprep.subr.bf16.mxu0 %v1060
  %1643 = vmatpush1.bf16.msra.mxu0 %v1059
  %1644 = vmatprep.subr.bf16.mxu0 %v1064
  %1645 = vmatpush1.bf16.msra.mxu0 %v1063
  %1646 = vmatprep.subr.bf16.mxu0 %v1068
  %1647 = vmatpush1.bf16.msra.mxu0 %v1067
  %1648 = vmatprep.subr.bf16.mxu0 %v1072
  %1649 = vmatpush1.bf16.msra.mxu0 %v1071
  %1650 = vmatprep.subr.bf16.mxu0 %v1076
  %1651 = vmatpush1.bf16.msra.mxu0 %v1075
  %1652 = vmatprep.subr.bf16.mxu0 %v1080
  %1653 = vmatpush1.bf16.msra.mxu0 %v1079
  %1654 = vmatprep.subr.bf16.mxu0 %v1084
  %1655 = vmatpush1.bf16.msra.mxu0 %v1083
  %1656 = vmatprep.subr.bf16.mxu0 %v1088
  %1657 = vmatpush1.bf16.msra.mxu0 %v1087
  %1658 = vmatprep.subr.bf16.mxu0 %v1092
  %1659 = vmatpush1.bf16.msra.mxu0 %v1091
  %1660 = vmatprep.subr.bf16.mxu0 %v1096
  %1661 = vmatpush1.bf16.msra.mxu0 %v1095
  %1662 = vmatprep.subr.bf16.mxu0 %v1100
  %1663 = vmatpush1.bf16.msra.mxu0 %v1099
  %1664 = vmatprep.subr.bf16.mxu0 %v1104
  %1665 = vmatpush1.bf16.msra.mxu0 %v1103
  %1666 = vmatprep.subr.bf16.mxu0 %v1108
  %1667 = vmatpush1.bf16.msra.mxu0 %v1107
  %1668 = vmatprep.subr.bf16.mxu0 %v1112
  %1669 = vmatpush1.bf16.msra.mxu0 %v1111
  %1670 = vmatprep.mubr.bf16.mxu0 %v302
  %1671 = vmatmul.mubr.bf16.gmra.mrb[0].mxu0 %v301
  %v1672 = vpop.f32.mrb[0].mxu0
  %v1673 = vadd.f32 %v1632, %v1672
  %v1674 = vpop.f32.mrb[0].mxu0
  %v1675 = vadd.f32 %v1634, %v1674
  %v1676 = vpop.f32.mrb[0].mxu0
  %v1677 = vpop.f32.mrb[0].mxu0
  %1678 = vdwg.mxu0
  %1679 = vmatprep.subr.bf16.mxu0 %v1116
  %1680 = vmatpush1.bf16.msra.mxu0 %v1115
  %1681 = vmatprep.subr.bf16.mxu0 %v1120
  %1682 = vmatpush1.bf16.msra.mxu0 %v1119
  %1683 = vmatprep.subr.bf16.mxu0 %v1124
  %1684 = vmatpush1.bf16.msra.mxu0 %v1123
  %1685 = vmatprep.subr.bf16.mxu0 %v1128
  %1686 = vmatpush1.bf16.msra.mxu0 %v1127
  %1687 = vmatprep.subr.bf16.mxu0 %v1132
  %1688 = vmatpush1.bf16.msra.mxu0 %v1131
  %1689 = vmatprep.subr.bf16.mxu0 %v1136
  %1690 = vmatpush1.bf16.msra.mxu0 %v1135
  %1691 = vmatprep.subr.bf16.mxu0 %v1140
  %1692 = vmatpush1.bf16.msra.mxu0 %v1139
  %1693 = vmatprep.subr.bf16.mxu0 %v1144
  %1694 = vmatpush1.bf16.msra.mxu0 %v1143
  %1695 = vmatprep.subr.bf16.mxu0 %v1148
  %1696 = vmatpush1.bf16.msra.mxu0 %v1147
  %1697 = vmatprep.subr.bf16.mxu0 %v1152
  %1698 = vmatpush1.bf16.msra.mxu0 %v1151
  %1699 = vmatprep.subr.bf16.mxu0 %v1156
  %1700 = vmatpush1.bf16.msra.mxu0 %v1155
  %1701 = vmatprep.subr.bf16.mxu0 %v1160
  %1702 = vmatpush1.bf16.msra.mxu0 %v1159
  %1703 = vmatprep.subr.bf16.mxu0 %v1164
  %1704 = vmatpush1.bf16.msra.mxu0 %v1163
  %1705 = vmatprep.subr.bf16.mxu0 %v1168
  %1706 = vmatpush1.bf16.msra.mxu0 %v1167
  %1707 = vmatprep.subr.bf16.mxu0 %v1172
  %1708 = vmatpush1.bf16.msra.mxu0 %v1171
  %1709 = vmatprep.subr.bf16.mxu0 %v1176
  %1710 = vmatpush1.bf16.msra.mxu0 %v1175
  %1711 = vmatprep.mubr.bf16.mxu0 %v304
  %1712 = vmatmul.mubr.bf16.gmra.mrb[0].mxu0 %v303
  %v1713 = vpop.f32.mrb[0].mxu0
  %v1714 = vadd.f32 %v1673, %v1713
  %v1715 = vpop.f32.mrb[0].mxu0
  %v1716 = vadd.f32 %v1675, %v1715
  %v1717 = vpop.f32.mrb[0].mxu0
  %v1718 = vpop.f32.mrb[0].mxu0
  %1719 = vdwg.mxu0
  %1720 = vmatprep.subr.bf16.mxu0 %v1180
  %1721 = vmatpush1.bf16.msra.mxu0 %v1179
  %1722 = vmatprep.subr.bf16.mxu0 %v1184
  %1723 = vmatpush1.bf16.msra.mxu0 %v1183
  %1724 = vmatprep.subr.bf16.mxu0 %v1188
  %1725 = vmatpush1.bf16.msra.mxu0 %v1187
  %1726 = vmatprep.subr.bf16.mxu0 %v1192
  %1727 = vmatpush1.bf16.msra.mxu0 %v1191
  %1728 = vmatprep.subr.bf16.mxu0 %v1196
  %1729 = vmatpush1.bf16.msra.mxu0 %v1195
  %1730 = vmatprep.subr.bf16.mxu0 %v1200
  %1731 = vmatpush1.bf16.msra.mxu0 %v1199
  %1732 = vmatprep.subr.bf16.mxu0 %v1204
  %1733 = vmatpush1.bf16.msra.mxu0 %v1203
  %1734 = vmatprep.subr.bf16.mxu0 %v1208
  %1735 = vmatpush1.bf16.msra.mxu0 %v1207
  %1736 = vmatprep.subr.bf16.mxu0 0
  %1737 = vmatpush1.bf16.msra.mxu0 0
  %1738 = vmatprep.subr.bf16.mxu0 0
  %1739 = vmatpush1.bf16.msra.mxu0 0
  %1740 = vmatprep.subr.bf16.mxu0 0
  %1741 = vmatpush1.bf16.msra.mxu0 0
  %1742 = vmatprep.subr.bf16.mxu0 0
  %1743 = vmatpush1.bf16.msra.mxu0 0
  %1744 = vmatprep.subr.bf16.mxu0 0
  %1745 = vmatpush1.bf16.msra.mxu0 0
  %1746 = vmatprep.subr.bf16.mxu0 0
  %1747 = vmatpush1.bf16.msra.mxu0 0
  %1748 = vmatprep.subr.bf16.mxu0 0
  %1749 = vmatpush1.bf16.msra.mxu0 0
  %1750 = vmatprep.subr.bf16.mxu0 0
  %1751 = vmatpush1.bf16.msra.mxu0 0
  %1752 = vmatprep.mubr.bf16.mxu0 0
  %1753 = vmatmul.mubr.bf16.gmra.mrb[0].mxu0 %v305
  %v1754 = vpop.f32.mrb[0].mxu0
  %v1755 = vadd.f32 %v1714, %v1754
  %v1756 = vpop.f32.mrb[0].mxu0
  %v1757 = vadd.f32 %v1716, %v1756
  %v1758 = vpop.f32.mrb[0].mxu0
  %v1759 = vpop.f32.mrb[0].mxu0
  %1760 = vdwg.mxu0
  %v1761 = vmax.f32 %v1591, 0.0
  %v1762 = vmax.f32 %v1593, 0.0
  %v1763 = vmax.f32 %v1755, 0.0
  %v1764 = vmax.f32 %v1757, 0.0
  %v1765 = vpack.c.bf16 %v1761, %v1761
  %v1766 = vpack.c.bf16 %v1762, %v1762
  %v1767 = vpack.c.bf16 %v1763, %v1763
  %v1768 = vpack.c.bf16 %v1764, %v1764
  %v1769 = vld [vmem:[%s4] sm:$0xf]
  %v1770 = vld [vmem:[%s4 + $0x4] sm:$0xf]
  %v1771 = vld [vmem:[%s4 + $0x8] sm:$0xf]
  %v1772 = vld [vmem:[%s4 + $0xc] sm:$0xf]
  %v1773 = vld [vmem:[%s4 + $0x10] sm:$0xf]
  %v1774 = vld [vmem:[%s4 + $0x14] sm:$0xf]
  %v1775 = vld [vmem:[%s4 + $0x18] sm:$0xf]
  %v1776 = vld [vmem:[%s4 + $0x1c] sm:$0xf]
  %v1777 = vld [vmem:[%s4 + $0x20] sm:$0xf]
  %v1778 = vld [vmem:[%s4 + $0x24] sm:$0xf]
  %v1779 = vld [vmem:[%s4 + $0x28] sm:$0xf]
  %v1780 = vld [vmem:[%s4 + $0x2c] sm:$0xf]
  %v1781 = vld [vmem:[%s4 + $0x30] sm:$0xf]
  %v1782 = vld [vmem:[%s4 + $0x34] sm:$0xf]
  %v1783 = vld [vmem:[%s4 + $0x38] sm:$0xf]
  %v1784 = vld [vmem:[%s4 + $0x3c] sm:$0xf]
  %v1785 = vld [vmem:[%s4 + $0x40] sm:$0xf]
  %v1786 = vld [vmem:[%s4 + $0x44] sm:$0xf]
  %v1787 = vld [vmem:[%s4 + $0x48] sm:$0xf]
  %v1788 = vld [vmem:[%s4 + $0x4c] sm:$0xf]
  %v1789 = vld [vmem:[%s4 + $0x50] sm:$0xf]
  %v1790 = vld [vmem:[%s4 + $0x54] sm:$0xf]
  %v1791 = vld [vmem:[%s4 + $0x58] sm:$0xf]
  %v1792 = vld [vmem:[%s4 + $0x5c] sm:$0xf]
  %v1793 = vld [vmem:[%s4 + $0x60] sm:$0xf]
  %v1794 = vld [vmem:[%s4 + $0x64] sm:$0xf]
  %v1795 = vld [vmem:[%s4 + $0x68] sm:$0xf]
  %v1796 = vld [vmem:[%s4 + $0x6c] sm:$0xf]
  %v1797 = vld [vmem:[%s4 + $0x70] sm:$0xf]
  %v1798 = vld [vmem:[%s4 + $0x74] sm:$0xf]
  %v1799 = vld [vmem:[%s4 + $0x78] sm:$0xf]
  %v1800 = vld [vmem:[%s4 + $0x7c] sm:$0xf]
  %v1801 = vld [vmem:[%s4 + $0x80] sm:$0xf]
  %v1802 = vld [vmem:[%s4 + $0x84] sm:$0xf]
  %v1803 = vld [vmem:[%s4 + $0x88] sm:$0xf]
  %v1804 = vld [vmem:[%s4 + $0x8c] sm:$0xf]
  %v1805 = vld [vmem:[%s4 + $0x90] sm:$0xf]
  %v1806 = vld [vmem:[%s4 + $0x94] sm:$0xf]
  %v1807 = vld [vmem:[%s4 + $0x98] sm:$0xf]
  %v1808 = vld [vmem:[%s4 + $0x9c] sm:$0xf]
  %v1809 = vld [vmem:[%s4 + $0xa0] sm:$0xf]
  %v1810 = vld [vmem:[%s4 + $0xa4] sm:$0xf]
  %v1811 = vld [vmem:[%s4 + $0xa8] sm:$0xf]
  %v1812 = vld [vmem:[%s4 + $0xac] sm:$0xf]
  %v1813 = vld [vmem:[%s4 + $0xb0] sm:$0xf]
  %v1814 = vld [vmem:[%s4 + $0xb4] sm:$0xf]
  %v1815 = vld [vmem:[%s4 + $0xb8] sm:$0xf]
  %v1816 = vld [vmem:[%s4 + $0xbc] sm:$0xf]
  %v1817 = vld [vmem:[%s4 + $0xc0] sm:$0xf]
  %v1818 = vld [vmem:[%s4 + $0xc4] sm:$0xf]
  %v1819 = vld [vmem:[%s4 + $0xc8] sm:$0xf]
  %v1820 = vld [vmem:[%s4 + $0xcc] sm:$0xf]
  %v1821 = vld [vmem:[%s4 + $0xd0] sm:$0xf]
  %v1822 = vld [vmem:[%s4 + $0xd4] sm:$0xf]
  %v1823 = vld [vmem:[%s4 + $0xd8] sm:$0xf]
  %v1824 = vld [vmem:[%s4 + $0xdc] sm:$0xf]
  %v1825 = vld [vmem:[%s4 + $0xe0] sm:$0xf]
  %v1826 = vld [vmem:[%s4 + $0xe4] sm:$0xf]
  %v1827 = vld [vmem:[%s4 + $0xe8] sm:$0xf]
  %v1828 = vld [vmem:[%s4 + $0xec] sm:$0xf]
  %v1829 = vld [vmem:[%s4 + $0xf0] sm:$0xf]
  %v1830 = vld [vmem:[%s4 + $0xf4] sm:$0xf]
  %v1831 = vld [vmem:[%s4 + $0xf8] sm:$0xf]
  %v1832 = vld [vmem:[%s4 + $0xfc] sm:$0xf]
  %v1833 = vld [vmem:[%s5] sm:$0x1]
  %v1835 = vlaneseq
  %v1836 = vshrl.u32 %v1835, 7
  %v1837 = vsub.s32 0, %v1836
  %v1838 = vrot.slane %v1833, %v1837
  %v1904 = vunpack.c.l.b16 %v1769
  %v1905 = vunpack.c.l.b16 %v1770
  %v1906 = vunpack.c.l.b16 %v1771
  %v1907 = vunpack.c.l.b16 %v1772
  %v1908 = vunpack.c.l.b16 %v1773
  %v1909 = vunpack.c.l.b16 %v1774
  %v1910 = vunpack.c.l.b16 %v1775
  %v1911 = vunpack.c.l.b16 %v1776
  %v1912 = vunpack.c.l.b16 %v1777
  %v1913 = vunpack.c.l.b16 %v1778
  %v1914 = vunpack.c.l.b16 %v1779
  %v1915 = vunpack.c.l.b16 %v1780
  %v1916 = vunpack.c.l.b16 %v1781
  %v1917 = vunpack.c.l.b16 %v1782
  %v1918 = vunpack.c.l.b16 %v1783
  %v1919 = vunpack.c.l.b16 %v1784
  %v1920 = vunpack.c.l.b16 %v1785
  %v1921 = vunpack.c.l.b16 %v1786
  %v1922 = vunpack.c.l.b16 %v1787
  %v1923 = vunpack.c.l.b16 %v1788
  %v1924 = vunpack.c.l.b16 %v1789
  %v1925 = vunpack.c.l.b16 %v1790
  %v1926 = vunpack.c.l.b16 %v1791
  %v1927 = vunpack.c.l.b16 %v1792
  %v1928 = vunpack.c.l.b16 %v1793
  %v1929 = vunpack.c.l.b16 %v1794
  %v1930 = vunpack.c.l.b16 %v1795
  %v1931 = vunpack.c.l.b16 %v1796
  %v1932 = vunpack.c.l.b16 %v1797
  %v1933 = vunpack.c.l.b16 %v1798
  %v1934 = vunpack.c.l.b16 %v1799
  %v1935 = vunpack.c.l.b16 %v1800
  %v1936 = vunpack.c.l.b16 %v1801
  %v1937 = vunpack.c.l.b16 %v1802
  %v1938 = vunpack.c.l.b16 %v1803
  %v1939 = vunpack.c.l.b16 %v1804
  %v1940 = vunpack.c.l.b16 %v1805
  %v1941 = vunpack.c.l.b16 %v1806
  %v1942 = vunpack.c.l.b16 %v1807
  %v1943 = vunpack.c.l.b16 %v1808
  %v1944 = vunpack.c.l.b16 %v1809
  %v1945 = vunpack.c.l.b16 %v1810
  %v1946 = vunpack.c.l.b16 %v1811
  %v1947 = vunpack.c.l.b16 %v1812
  %v1948 = vunpack.c.l.b16 %v1813
  %v1949 = vunpack.c.l.b16 %v1814
  %v1950 = vunpack.c.l.b16 %v1815
  %v1951 = vunpack.c.l.b16 %v1816
  %v1952 = vunpack.c.l.b16 %v1817
  %v1953 = vunpack.c.l.b16 %v1818
  %v1954 = vunpack.c.l.b16 %v1819
  %v1955 = vunpack.c.l.b16 %v1820
  %v1956 = vunpack.c.l.b16 %v1821
  %v1957 = vunpack.c.l.b16 %v1822
  %v1958 = vunpack.c.l.b16 %v1823
  %v1959 = vunpack.c.l.b16 %v1824
  %v1960 = vunpack.c.l.b16 %v1825
  %v1961 = vunpack.c.l.b16 %v1826
  %v1962 = vunpack.c.l.b16 %v1827
  %v1963 = vunpack.c.l.b16 %v1828
  %v1964 = vunpack.c.l.b16 %v1829
  %v1965 = vunpack.c.l.b16 %v1830
  %v1966 = vunpack.c.l.b16 %v1831
  %v1967 = vunpack.c.l.b16 %v1832
  %v1968 = vpack.c.b16 %v1905, %v1904
  %v1969 = vpack.c.b16 %v1907, %v1906
  %v1970 = vpack.c.b16 %v1909, %v1908
  %v1971 = vpack.c.b16 %v1911, %v1910
  %v1972 = vpack.c.b16 %v1913, %v1912
  %v1973 = vpack.c.b16 %v1915, %v1914
  %v1974 = vpack.c.b16 %v1917, %v1916
  %v1975 = vpack.c.b16 %v1919, %v1918
  %v1976 = vpack.c.b16 %v1921, %v1920
  %v1977 = vpack.c.b16 %v1923, %v1922
  %v1978 = vpack.c.b16 %v1925, %v1924
  %v1979 = vpack.c.b16 %v1927, %v1926
  %v1980 = vpack.c.b16 %v1929, %v1928
  %v1981 = vpack.c.b16 %v1931, %v1930
  %v1982 = vpack.c.b16 %v1933, %v1932
  %v1983 = vpack.c.b16 %v1935, %v1934
  %v1984 = vpack.c.b16 %v1937, %v1936
  %v1985 = vpack.c.b16 %v1939, %v1938
  %v1986 = vpack.c.b16 %v1941, %v1940
  %v1987 = vpack.c.b16 %v1943, %v1942
  %v1988 = vpack.c.b16 %v1945, %v1944
  %v1989 = vpack.c.b16 %v1947, %v1946
  %v1990 = vpack.c.b16 %v1949, %v1948
  %v1991 = vpack.c.b16 %v1951, %v1950
  %v1992 = vpack.c.b16 %v1953, %v1952
  %v1993 = vpack.c.b16 %v1955, %v1954
  %v1994 = vpack.c.b16 %v1957, %v1956
  %v1995 = vpack.c.b16 %v1959, %v1958
  %v1996 = vpack.c.b16 %v1961, %v1960
  %v1997 = vpack.c.b16 %v1963, %v1962
  %v1998 = vpack.c.b16 %v1965, %v1964
  %v1999 = vpack.c.b16 %v1967, %v1966
  %2032 = vmatprep.subr.bf16.mxu0 0
  %2033 = vmatpush1.bf16.msra.mxu0 %v1968
  %2034 = vmatprep.subr.bf16.mxu0 0
  %2035 = vmatpush1.bf16.msra.mxu0 %v1969
  %2036 = vmatprep.subr.bf16.mxu0 0
  %2037 = vmatpush1.bf16.msra.mxu0 %v1970
  %2038 = vmatprep.subr.bf16.mxu0 0
  %2039 = vmatpush1.bf16.msra.mxu0 %v1971
  %2040 = vmatprep.subr.bf16.mxu0 0
  %2041 = vmatpush1.bf16.msra.mxu0 %v1972
  %2042 = vmatprep.subr.bf16.mxu0 0
  %2043 = vmatpush1.bf16.msra.mxu0 %v1973
  %2044 = vmatprep.subr.bf16.mxu0 0
  %2045 = vmatpush1.bf16.msra.mxu0 %v1974
  %2046 = vmatprep.subr.bf16.mxu0 0
  %2047 = vmatpush1.bf16.msra.mxu0 %v1975
  %2048 = vmatprep.subr.bf16.mxu0 0
  %2049 = vmatpush1.bf16.msra.mxu0 %v1976
  %2050 = vmatprep.subr.bf16.mxu0 0
  %2051 = vmatpush1.bf16.msra.mxu0 %v1977
  %2052 = vmatprep.subr.bf16.mxu0 0
  %2053 = vmatpush1.bf16.msra.mxu0 %v1978
  %2054 = vmatprep.subr.bf16.mxu0 0
  %2055 = vmatpush1.bf16.msra.mxu0 %v1979
  %2056 = vmatprep.subr.bf16.mxu0 0
  %2057 = vmatpush1.bf16.msra.mxu0 %v1980
  %2058 = vmatprep.subr.bf16.mxu0 0
  %2059 = vmatpush1.bf16.msra.mxu0 %v1981
  %2060 = vmatprep.subr.bf16.mxu0 0
  %2061 = vmatpush1.bf16.msra.mxu0 %v1982
  %2062 = vmatprep.subr.bf16.mxu0 0
  %2063 = vmatpush1.bf16.msra.mxu0 %v1983
  %2064 = vmatprep.mubr.bf16.mxu0 %v1766
  %2065 = vmatmul.mubr.bf16.gmra.mrb[0].mxu0 %v1765
  %v2066 = vpop.f32.mrb[0].mxu0
  %v2067 = vadd.f32 %v1838, %v2066
  %v2068 = vpop.f32.mrb[0].mxu0
  %v2069 = vpop.f32.mrb[0].mxu0
  %v2070 = vpop.f32.mrb[0].mxu0
  %2071 = vdwg.mxu0
  %2072 = vmatprep.subr.bf16.mxu0 0
  %2073 = vmatpush1.bf16.msra.mxu0 %v1984
  %2074 = vmatprep.subr.bf16.mxu0 0
  %2075 = vmatpush1.bf16.msra.mxu0 %v1985
  %2076 = vmatprep.subr.bf16.mxu0 0
  %2077 = vmatpush1.bf16.msra.mxu0 %v1986
  %2078 = vmatprep.subr.bf16.mxu0 0
  %2079 = vmatpush1.bf16.msra.mxu0 %v1987
  %2080 = vmatprep.subr.bf16.mxu0 0
  %2081 = vmatpush1.bf16.msra.mxu0 %v1988
  %2082 = vmatprep.subr.bf16.mxu0 0
  %2083 = vmatpush1.bf16.msra.mxu0 %v1989
  %2084 = vmatprep.subr.bf16.mxu0 0
  %2085 = vmatpush1.bf16.msra.mxu0 %v1990
  %2086 = vmatprep.subr.bf16.mxu0 0
  %2087 = vmatpush1.bf16.msra.mxu0 %v1991
  %2088 = vmatprep.subr.bf16.mxu0 0
  %2089 = vmatpush1.bf16.msra.mxu0 %v1992
  %2090 = vmatprep.subr.bf16.mxu0 0
  %2091 = vmatpush1.bf16.msra.mxu0 %v1993
  %2092 = vmatprep.subr.bf16.mxu0 0
  %2093 = vmatpush1.bf16.msra.mxu0 %v1994
  %2094 = vmatprep.subr.bf16.mxu0 0
  %2095 = vmatpush1.bf16.msra.mxu0 %v1995
  %2096 = vmatprep.subr.bf16.mxu0 0
  %2097 = vmatpush1.bf16.msra.mxu0 %v1996
  %2098 = vmatprep.subr.bf16.mxu0 0
  %2099 = vmatpush1.bf16.msra.mxu0 %v1997
  %2100 = vmatprep.subr.bf16.mxu0 0
  %2101 = vmatpush1.bf16.msra.mxu0 %v1998
  %2102 = vmatprep.subr.bf16.mxu0 0
  %2103 = vmatpush1.bf16.msra.mxu0 %v1999
  %2104 = vmatprep.mubr.bf16.mxu0 %v1768
  %2105 = vmatmul.mubr.bf16.gmra.mrb[0].mxu0 %v1767
  %v2106 = vpop.f32.mrb[0].mxu0
  %v2107 = vadd.f32 %v2067, %v2106
  %v2108 = vpop.f32.mrb[0].mxu0
  %v2109 = vpop.f32.mrb[0].mxu0
  %v2110 = vpop.f32.mrb[0].mxu0
  %2111 = vdwg.mxu0
  %v2112 = vmax.f32 %v2107, 0.0
  %v2113 = vld [vmem:[%s1] sm:$0xff]
  %v2114 = vmul.f32 %v2112, 1.442695
  %v2115 = vpow.pop %v2114
  %2117 = vrot.lane.b32.xlu0 %v2115, 64
  %v2118 = vpop.permute.xlu0 %2117
  %v2120 = vmul.f32 %v2113, %v2118
  %v2121 = vadd.f32 %v2112, %v2120
  %v2122 = vpack.c.bf16 %v2121, %v2121
  %v2123 = vld [vmem:[%s6] sm:$0xff]
  %v2124 = vld [vmem:[%s6 + $0x8] sm:$0xff]
  %v2125 = vld [vmem:[%s6 + $0x10] sm:$0xff]
  %v2126 = vld [vmem:[%s6 + $0x18] sm:$0xff]
  %v2127 = vld [vmem:[%s6 + $0x20] sm:$0xff]
  %v2128 = vld [vmem:[%s6 + $0x28] sm:$0xff]
  %v2129 = vld [vmem:[%s6 + $0x30] sm:$0xff]
  %v2130 = vld [vmem:[%s6 + $0x38] sm:$0xff]
  %v2131 = vld [vmem:[%s6 + $0x40] sm:$0xff]
  %v2132 = vld [vmem:[%s6 + $0x48] sm:$0xff]
  %v2133 = vld [vmem:[%s6 + $0x50] sm:$0xff]
  %v2134 = vld [vmem:[%s6 + $0x58] sm:$0xff]
  %v2135 = vld [vmem:[%s6 + $0x60] sm:$0xff]
  %v2136 = vld [vmem:[%s6 + $0x68] sm:$0xff]
  %v2137 = vld [vmem:[%s6 + $0x70] sm:$0xff]
  %v2138 = vld [vmem:[%s6 + $0x78] sm:$0xff]
  %v2139 = vld [vmem:[%s7] sm:$0xf]
  %v2141 = vlaneseq
  %v2142 = vshrl.u32 %v2141, 7
  %v2143 = vsub.s32 0, %v2142
  %v2144 = vrot.slane %v2139, %v2143
  %v2145 = vlaneseq
  %v2146 = vshrl.u32 %v2145, 7
  %v2147 = vsub.s32 1, %v2146
  %v2148 = vrot.slane %v2139, %v2147
  %v2149 = vlaneseq
  %v2150 = vshrl.u32 %v2149, 7
  %v2151 = vsub.s32 2, %v2150
  %v2152 = vrot.slane %v2139, %v2151
  %v2153 = vlaneseq
  %v2154 = vshrl.u32 %v2153, 7
  %v2155 = vsub.s32 3, %v2154
  %v2156 = vrot.slane %v2139, %v2155
  %v2177 = vunpack.c.l.b16 %v2123
  %v2178 = vunpack.c.h.b16 %v2123
  %v2179 = vunpack.c.l.b16 %v2124
  %v2180 = vunpack.c.h.b16 %v2124
  %v2181 = vunpack.c.l.b16 %v2125
  %v2182 = vunpack.c.h.b16 %v2125
  %v2183 = vunpack.c.l.b16 %v2126
  %v2184 = vunpack.c.h.b16 %v2126
  %v2185 = vunpack.c.l.b16 %v2127
  %v2186 = vunpack.c.h.b16 %v2127
  %v2187 = vunpack.c.l.b16 %v2128
  %v2188 = vunpack.c.h.b16 %v2128
  %v2189 = vunpack.c.l.b16 %v2129
  %v2190 = vunpack.c.h.b16 %v2129
  %v2191 = vunpack.c.l.b16 %v2130
  %v2192 = vunpack.c.h.b16 %v2130
  %v2193 = vunpack.c.l.b16 %v2131
  %v2194 = vunpack.c.h.b16 %v2131
  %v2195 = vunpack.c.l.b16 %v2132
  %v2196 = vunpack.c.h.b16 %v2132
  %v2197 = vunpack.c.l.b16 %v2133
  %v2198 = vunpack.c.h.b16 %v2133
  %v2199 = vunpack.c.l.b16 %v2134
  %v2200 = vunpack.c.h.b16 %v2134
  %v2201 = vunpack.c.l.b16 %v2135
  %v2202 = vunpack.c.h.b16 %v2135
  %v2203 = vunpack.c.l.b16 %v2136
  %v2204 = vunpack.c.h.b16 %v2136
  %v2205 = vunpack.c.l.b16 %v2137
  %v2206 = vunpack.c.h.b16 %v2137
  %v2207 = vunpack.c.l.b16 %v2138
  %v2208 = vunpack.c.h.b16 %v2138
  %v2209 = vpack.c.b16 %v2181, %v2177
  %v2210 = vpack.c.b16 %v2182, %v2178
  %v2211 = vpack.c.b16 %v2183, %v2179
  %v2212 = vpack.c.b16 %v2184, %v2180
  %v2213 = vpack.c.b16 %v2189, %v2185
  %v2214 = vpack.c.b16 %v2190, %v2186
  %v2215 = vpack.c.b16 %v2191, %v2187
  %v2216 = vpack.c.b16 %v2192, %v2188
  %v2217 = vpack.c.b16 %v2197, %v2193
  %v2218 = vpack.c.b16 %v2198, %v2194
  %v2219 = vpack.c.b16 %v2199, %v2195
  %v2220 = vpack.c.b16 %v2200, %v2196
  %v2221 = vpack.c.b16 %v2205, %v2201
  %v2222 = vpack.c.b16 %v2206, %v2202
  %v2223 = vpack.c.b16 %v2207, %v2203
  %v2224 = vpack.c.b16 %v2208, %v2204
  %vm2241 = vcmask 523264
  %v2243 = vsel %vm2241, %v2122, 0
  %2245 = vmatprep.subr.bf16.mxu0 %v2210
  %2246 = vmatpush1.bf16.msra.mxu0 %v2209
  %2247 = vmatprep.subr.bf16.mxu0 %v2214
  %2248 = vmatpush1.bf16.msra.mxu0 %v2213
  %2249 = vmatprep.subr.bf16.mxu0 %v2218
  %2250 = vmatpush1.bf16.msra.mxu0 %v2217
  %2251 = vmatprep.subr.bf16.mxu0 %v2222
  %2252 = vmatpush1.bf16.msra.mxu0 %v2221
  %2253 = vmatprep.subr.bf16.mxu0 0
  %2254 = vmatpush1.bf16.msra.mxu0 0
  %2255 = vmatprep.subr.bf16.mxu0 0
  %2256 = vmatpush1.bf16.msra.mxu0 0
  %2257 = vmatprep.subr.bf16.mxu0 0
  %2258 = vmatpush1.bf16.msra.mxu0 0
  %2259 = vmatprep.subr.bf16.mxu0 0
  %2260 = vmatpush1.bf16.msra.mxu0 0
  %2261 = vmatprep.subr.bf16.mxu0 0
  %2262 = vmatpush1.bf16.msra.mxu0 0
  %2263 = vmatprep.subr.bf16.mxu0 0
  %2264 = vmatpush1.bf16.msra.mxu0 0
  %2265 = vmatprep.subr.bf16.mxu0 0
  %2266 = vmatpush1.bf16.msra.mxu0 0
  %2267 = vmatprep.subr.bf16.mxu0 0
  %2268 = vmatpush1.bf16.msra.mxu0 0
  %2269 = vmatprep.subr.bf16.mxu0 0
  %2270 = vmatpush1.bf16.msra.mxu0 0
  %2271 = vmatprep.subr.bf16.mxu0 0
  %2272 = vmatpush1.bf16.msra.mxu0 0
  %2273 = vmatprep.subr.bf16.mxu0 0
  %2274 = vmatpush1.bf16.msra.mxu0 0
  %2275 = vmatprep.subr.bf16.mxu0 0
  %2276 = vmatpush1.bf16.msra.mxu0 0
  %2277 = vmatprep.mubr.bf16.mxu0 0
  %2278 = vmatmul.mubr.bf16.gmra.mrb[0].mxu0 %v2243
  %v2279 = vpop.f32.mrb[0].mxu0
  %v2280 = vadd.f32 %v2144, %v2279
  %v2281 = vpop.f32.mrb[0].mxu0
  %v2282 = vadd.f32 %v2148, %v2281
  %v2283 = vpop.f32.mrb[0].mxu0
  %v2284 = vpop.f32.mrb[0].mxu0
  %2285 = vdwg.mxu0
  %2286 = vmatprep.subr.bf16.mxu0 %v2212
  %2287 = vmatpush1.bf16.msra.mxu0 %v2211
  %2288 = vmatprep.subr.bf16.mxu0 %v2216
  %2289 = vmatpush1.bf16.msra.mxu0 %v2215
  %2290 = vmatprep.subr.bf16.mxu0 %v2220
  %2291 = vmatpush1.bf16.msra.mxu0 %v2219
  %2292 = vmatprep.subr.bf16.mxu0 %v2224
  %2293 = vmatpush1.bf16.msra.mxu0 %v2223
  %2294 = vmatprep.subr.bf16.mxu0 0
  %2295 = vmatpush1.bf16.msra.mxu0 0
  %2296 = vmatprep.subr.bf16.mxu0 0
  %2297 = vmatpush1.bf16.msra.mxu0 0
  %2298 = vmatprep.subr.bf16.mxu0 0
  %2299 = vmatpush1.bf16.msra.mxu0 0
  %2300 = vmatprep.subr.bf16.mxu0 0
  %2301 = vmatpush1.bf16.msra.mxu0 0
  %2302 = vmatprep.subr.bf16.mxu0 0
  %2303 = vmatpush1.bf16.msra.mxu0 0
  %2304 = vmatprep.subr.bf16.mxu0 0
  %2305 = vmatpush1.bf16.msra.mxu0 0
  %2306 = vmatprep.subr.bf16.mxu0 0
  %2307 = vmatpush1.bf16.msra.mxu0 0
  %2308 = vmatprep.subr.bf16.mxu0 0
  %2309 = vmatpush1.bf16.msra.mxu0 0
  %2310 = vmatprep.subr.bf16.mxu0 0
  %2311 = vmatpush1.bf16.msra.mxu0 0
  %2312 = vmatprep.subr.bf16.mxu0 0
  %2313 = vmatpush1.bf16.msra.mxu0 0
  %2314 = vmatprep.subr.bf16.mxu0 0
  %2315 = vmatpush1.bf16.msra.mxu0 0
  %2316 = vmatprep.subr.bf16.mxu0 0
  %2317 = vmatpush1.bf16.msra.mxu0 0
  %2318 = vmatprep.mubr.bf16.mxu0 0
  %2319 = vmatmul.mubr.bf16.gmra.mrb[0].mxu0 %v2243
  %v2320 = vpop.f32.mrb[0].mxu0
  %v2321 = vadd.f32 %v2152, %v2320
  %v2322 = vpop.f32.mrb[0].mxu0
  %v2323 = vadd.f32 %v2156, %v2322
  %v2324 = vpop.f32.mrb[0].mxu0
  %v2325 = vpop.f32.mrb[0].mxu0
  %2326 = vdwg.mxu0
  %v2327 = vmax.f32 %v2280, 0.0
  %v2328 = vmax.f32 %v2282, 0.0
  %v2329 = vmax.f32 %v2321, 0.0
  %v2330 = vmax.f32 %v2323, 0.0
  %v2331 = vpack.c.bf16 %v2327, %v2327
  %v2332 = vpack.c.bf16 %v2328, %v2328
  %v2333 = vpack.c.bf16 %v2329, %v2329
  %v2334 = vpack.c.bf16 %v2330, %v2330
  %v2335 = vld [vmem:[%s8] sm:$0xff]
  %v2336 = vld [vmem:[%s8 + $0x8] sm:$0xff]
  %v2337 = vld [vmem:[%s8 + $0x10] sm:$0xff]
  %v2338 = vld [vmem:[%s8 + $0x18] sm:$0xf]
  %v2339 = vld [vmem:[%s8 + $0x1c] sm:$0xff]
  %v2340 = vld [vmem:[%s8 + $0x24] sm:$0xff]
  %v2341 = vld [vmem:[%s8 + $0x2c] sm:$0xff]
  %v2342 = vld [vmem:[%s8 + $0x34] sm:$0xf]
  %v2343 = vld [vmem:[%s8 + $0x38] sm:$0xff]
  %v2344 = vld [vmem:[%s8 + $0x40] sm:$0xff]
  %v2345 = vld [vmem:[%s8 + $0x48] sm:$0xff]
  %v2346 = vld [vmem:[%s8 + $0x50] sm:$0xf]
  %v2347 = vld [vmem:[%s8 + $0x54] sm:$0xff]
  %v2348 = vld [vmem:[%s8 + $0x5c] sm:$0xff]
  %v2349 = vld [vmem:[%s8 + $0x64] sm:$0xff]
  %v2350 = vld [vmem:[%s8 + $0x6c] sm:$0xf]
  %v2351 = vld [vmem:[%s8 + $0x70] sm:$0xff]
  %v2352 = vld [vmem:[%s8 + $0x78] sm:$0xff]
  %v2353 = vld [vmem:[%s8 + $0x80] sm:$0xff]
  %v2354 = vld [vmem:[%s8 + $0x88] sm:$0xf]
  %v2355 = vld [vmem:[%s8 + $0x8c] sm:$0xff]
  %v2356 = vld [vmem:[%s8 + $0x94] sm:$0xff]
  %v2357 = vld [vmem:[%s8 + $0x9c] sm:$0xff]
  %v2358 = vld [vmem:[%s8 + $0xa4] sm:$0xf]
  %v2359 = vld [vmem:[%s8 + $0xa8] sm:$0xff]
  %v2360 = vld [vmem:[%s8 + $0xb0] sm:$0xff]
  %v2361 = vld [vmem:[%s8 + $0xb8] sm:$0xff]
  %v2362 = vld [vmem:[%s8 + $0xc0] sm:$0xf]
  %v2363 = vld [vmem:[%s8 + $0xc4] sm:$0xff]
  %v2364 = vld [vmem:[%s8 + $0xcc] sm:$0xff]
  %v2365 = vld [vmem:[%s8 + $0xd4] sm:$0xff]
  %v2366 = vld [vmem:[%s8 + $0xdc] sm:$0xf]
  %v2367 = vld [vmem:[%s8 + $0xe0] sm:$0xff]
  %v2368 = vld [vmem:[%s8 + $0xe8] sm:$0xff]
  %v2369 = vld [vmem:[%s8 + $0xf0] sm:$0xff]
  %v2370 = vld [vmem:[%s8 + $0xf8] sm:$0xf]
  %v2371 = vld [vmem:[%s8 + $0xfc] sm:$0xff]
  %v2372 = vld [vmem:[%s8 + $0x104] sm:$0xff]
  %v2373 = vld [vmem:[%s8 + $0x10c] sm:$0xff]
  %v2374 = vld [vmem:[%s8 + $0x114] sm:$0xf]
  %v2375 = vld [vmem:[%s8 + $0x118] sm:$0xff]
  %v2376 = vld [vmem:[%s8 + $0x120] sm:$0xff]
  %v2377 = vld [vmem:[%s8 + $0x128] sm:$0xff]
  %v2378 = vld [vmem:[%s8 + $0x130] sm:$0xf]
  %v2379 = vld [vmem:[%s8 + $0x134] sm:$0xff]
  %v2380 = vld [vmem:[%s8 + $0x13c] sm:$0xff]
  %v2381 = vld [vmem:[%s8 + $0x144] sm:$0xff]
  %v2382 = vld [vmem:[%s8 + $0x14c] sm:$0xf]
  %v2383 = vld [vmem:[%s8 + $0x150] sm:$0xff]
  %v2384 = vld [vmem:[%s8 + $0x158] sm:$0xff]
  %v2385 = vld [vmem:[%s8 + $0x160] sm:$0xff]
  %v2386 = vld [vmem:[%s8 + $0x168] sm:$0xf]
  %v2387 = vld [vmem:[%s8 + $0x16c] sm:$0xff]
  %v2388 = vld [vmem:[%s8 + $0x174] sm:$0xff]
  %v2389 = vld [vmem:[%s8 + $0x17c] sm:$0xff]
  %v2390 = vld [vmem:[%s8 + $0x184] sm:$0xf]
  %v2391 = vld [vmem:[%s8 + $0x188] sm:$0xff]
  %v2392 = vld [vmem:[%s8 + $0x190] sm:$0xff]
  %v2393 = vld [vmem:[%s8 + $0x198] sm:$0xff]
  %v2394 = vld [vmem:[%s8 + $0x1a0] sm:$0xf]
  %v2395 = vld [vmem:[%s8 + $0x1a4] sm:$0xff]
  %v2396 = vld [vmem:[%s8 + $0x1ac] sm:$0xff]
  %v2397 = vld [vmem:[%s8 + $0x1b4] sm:$0xff]
  %v2398 = vld [vmem:[%s8 + $0x1bc] sm:$0xf]
  %v2399 = vld [vmem:[%s8 + $0x1c0] sm:$0xff]
  %v2400 = vld [vmem:[%s8 + $0x1c8] sm:$0xff]
  %v2401 = vld [vmem:[%s8 + $0x1d0] sm:$0xff]
  %v2402 = vld [vmem:[%s8 + $0x1d8] sm:$0xf]
  %v2403 = vld [vmem:[%s8 + $0x1dc] sm:$0xff]
  %v2404 = vld [vmem:[%s8 + $0x1e4] sm:$0xff]
  %v2405 = vld [vmem:[%s8 + $0x1ec] sm:$0xff]
  %v2406 = vld [vmem:[%s8 + $0x1f4] sm:$0xf]
  %v2407 = vld [vmem:[%s8 + $0x1f8] sm:$0xff]
  %v2408 = vld [vmem:[%s8 + $0x200] sm:$0xff]
  %v2409 = vld [vmem:[%s8 + $0x208] sm:$0xff]
  %v2410 = vld [vmem:[%s8 + $0x210] sm:$0xf]
  %v2411 = vld [vmem:[%s8 + $0x214] sm:$0xff]
  %v2412 = vld [vmem:[%s8 + $0x21c] sm:$0xff]
  %v2413 = vld [vmem:[%s8 + $0x224] sm:$0xff]
  %v2414 = vld [vmem:[%s8 + $0x22c] sm:$0xf]
  %v2415 = vld [vmem:[%s8 + $0x230] sm:$0xff]
  %v2416 = vld [vmem:[%s8 + $0x238] sm:$0xff]
  %v2417 = vld [vmem:[%s8 + $0x240] sm:$0xff]
  %v2418 = vld [vmem:[%s8 + $0x248] sm:$0xf]
  %v2419 = vld [vmem:[%s8 + $0x24c] sm:$0xff]
  %v2420 = vld [vmem:[%s8 + $0x254] sm:$0xff]
  %v2421 = vld [vmem:[%s8 + $0x25c] sm:$0xff]
  %v2422 = vld [vmem:[%s8 + $0x264] sm:$0xf]
  %v2423 = vld [vmem:[%s8 + $0x268] sm:$0xff]
  %v2424 = vld [vmem:[%s8 + $0x270] sm:$0xff]
  %v2425 = vld [vmem:[%s8 + $0x278] sm:$0xff]
  %v2426 = vld [vmem:[%s8 + $0x280] sm:$0xf]
  %v2427 = vld [vmem:[%s8 + $0x284] sm:$0xff]
  %v2428 = vld [vmem:[%s8 + $0x28c] sm:$0xff]
  %v2429 = vld [vmem:[%s8 + $0x294] sm:$0xff]
  %v2430 = vld [vmem:[%s8 + $0x29c] sm:$0xf]
  %v2431 = vld [vmem:[%s8 + $0x2a0] sm:$0xff]
  %v2432 = vld [vmem:[%s8 + $0x2a8] sm:$0xff]
  %v2433 = vld [vmem:[%s8 + $0x2b0] sm:$0xff]
  %v2434 = vld [vmem:[%s8 + $0x2b8] sm:$0xf]
  %v2435 = vld [vmem:[%s8 + $0x2bc] sm:$0xff]
  %v2436 = vld [vmem:[%s8 + $0x2c4] sm:$0xff]
  %v2437 = vld [vmem:[%s8 + $0x2cc] sm:$0xff]
  %v2438 = vld [vmem:[%s8 + $0x2d4] sm:$0xf]
  %v2439 = vld [vmem:[%s8 + $0x2d8] sm:$0xff]
  %v2440 = vld [vmem:[%s8 + $0x2e0] sm:$0xff]
  %v2441 = vld [vmem:[%s8 + $0x2e8] sm:$0xff]
  %v2442 = vld [vmem:[%s8 + $0x2f0] sm:$0xf]
  %v2443 = vld [vmem:[%s8 + $0x2f4] sm:$0xff]
  %v2444 = vld [vmem:[%s8 + $0x2fc] sm:$0xff]
  %v2445 = vld [vmem:[%s8 + $0x304] sm:$0xff]
  %v2446 = vld [vmem:[%s8 + $0x30c] sm:$0xf]
  %v2447 = vld [vmem:[%s8 + $0x310] sm:$0xff]
  %v2448 = vld [vmem:[%s8 + $0x318] sm:$0xff]
  %v2449 = vld [vmem:[%s8 + $0x320] sm:$0xff]
  %v2450 = vld [vmem:[%s8 + $0x328] sm:$0xf]
  %v2451 = vld [vmem:[%s8 + $0x32c] sm:$0xff]
  %v2452 = vld [vmem:[%s8 + $0x334] sm:$0xff]
  %v2453 = vld [vmem:[%s8 + $0x33c] sm:$0xff]
  %v2454 = vld [vmem:[%s8 + $0x344] sm:$0xf]
  %v2455 = vld [vmem:[%s8 + $0x348] sm:$0xff]
  %v2456 = vld [vmem:[%s8 + $0x350] sm:$0xff]
  %v2457 = vld [vmem:[%s8 + $0x358] sm:$0xff]
  %v2458 = vld [vmem:[%s8 + $0x360] sm:$0xf]
  %v2459 = vld [vmem:[%s8 + $0x364] sm:$0xff]
  %v2460 = vld [vmem:[%s8 + $0x36c] sm:$0xff]
  %v2461 = vld [vmem:[%s8 + $0x374] sm:$0xff]
  %v2462 = vld [vmem:[%s8 + $0x37c] sm:$0xf]
  %v2463 = vld [vmem:[%s8 + $0x380] sm:$0xff]
  %v2464 = vld [vmem:[%s8 + $0x388] sm:$0xff]
  %v2465 = vld [vmem:[%s8 + $0x390] sm:$0xff]
  %v2466 = vld [vmem:[%s8 + $0x398] sm:$0xf]
  %v2467 = vld [vmem:[%s8 + $0x39c] sm:$0xff]
  %v2468 = vld [vmem:[%s8 + $0x3a4] sm:$0xff]
  %v2469 = vld [vmem:[%s8 + $0x3ac] sm:$0xff]
  %v2470 = vld [vmem:[%s8 + $0x3b4] sm:$0xf]
  %v2471 = vld [vmem:[%s8 + $0x3b8] sm:$0xff]
  %v2472 = vld [vmem:[%s8 + $0x3c0] sm:$0xff]
  %v2473 = vld [vmem:[%s8 + $0x3c8] sm:$0xff]
  %v2474 = vld [vmem:[%s8 + $0x3d0] sm:$0xf]
  %v2475 = vld [vmem:[%s8 + $0x3d4] sm:$0xff]
  %v2476 = vld [vmem:[%s8 + $0x3dc] sm:$0xff]
  %v2477 = vld [vmem:[%s8 + $0x3e4] sm:$0xff]
  %v2478 = vld [vmem:[%s8 + $0x3ec] sm:$0xf]
  %v2479 = vld [vmem:[%s8 + $0x3f0] sm:$0xff]
  %v2480 = vld [vmem:[%s8 + $0x3f8] sm:$0xff]
  %v2481 = vld [vmem:[%s8 + $0x400] sm:$0xff]
  %v2482 = vld [vmem:[%s8 + $0x408] sm:$0xf]
  %v2483 = vld [vmem:[%s8 + $0x40c] sm:$0xff]
  %v2484 = vld [vmem:[%s8 + $0x414] sm:$0xff]
  %v2485 = vld [vmem:[%s8 + $0x41c] sm:$0xff]
  %v2486 = vld [vmem:[%s8 + $0x424] sm:$0xf]
  %v2487 = vld [vmem:[%s8 + $0x428] sm:$0xff]
  %v2488 = vld [vmem:[%s8 + $0x430] sm:$0xff]
  %v2489 = vld [vmem:[%s8 + $0x438] sm:$0xff]
  %v2490 = vld [vmem:[%s8 + $0x440] sm:$0xf]
  %v2491 = vld [vmem:[%s8 + $0x444] sm:$0xff]
  %v2492 = vld [vmem:[%s8 + $0x44c] sm:$0xff]
  %v2493 = vld [vmem:[%s8 + $0x454] sm:$0xff]
  %v2494 = vld [vmem:[%s8 + $0x45c] sm:$0xf]
  %v2495 = vld [vmem:[%s8 + $0x460] sm:$0xff]
  %v2496 = vld [vmem:[%s8 + $0x468] sm:$0xff]
  %v2497 = vld [vmem:[%s8 + $0x470] sm:$0xff]
  %v2498 = vld [vmem:[%s8 + $0x478] sm:$0xf]
  %v2499 = vld [vmem:[%s8 + $0x47c] sm:$0xff]
  %v2500 = vld [vmem:[%s8 + $0x484] sm:$0xff]
  %v2501 = vld [vmem:[%s8 + $0x48c] sm:$0xff]
  %v2502 = vld [vmem:[%s8 + $0x494] sm:$0xf]
  %v2503 = vld [vmem:[%s8 + $0x498] sm:$0xff]
  %v2504 = vld [vmem:[%s8 + $0x4a0] sm:$0xff]
  %v2505 = vld [vmem:[%s8 + $0x4a8] sm:$0xff]
  %v2506 = vld [vmem:[%s8 + $0x4b0] sm:$0xf]
  %v2507 = vld [vmem:[%s8 + $0x4b4] sm:$0xff]
  %v2508 = vld [vmem:[%s8 + $0x4bc] sm:$0xff]
  %v2509 = vld [vmem:[%s8 + $0x4c4] sm:$0xff]
  %v2510 = vld [vmem:[%s8 + $0x4cc] sm:$0xf]
  %v2511 = vld [vmem:[%s8 + $0x4d0] sm:$0xff]
  %v2512 = vld [vmem:[%s8 + $0x4d8] sm:$0xff]
  %v2513 = vld [vmem:[%s8 + $0x4e0] sm:$0xff]
  %v2514 = vld [vmem:[%s8 + $0x4e8] sm:$0xf]
  %v2515 = vld [vmem:[%s8 + $0x4ec] sm:$0xff]
  %v2516 = vld [vmem:[%s8 + $0x4f4] sm:$0xff]
  %v2517 = vld [vmem:[%s8 + $0x4fc] sm:$0xff]
  %v2518 = vld [vmem:[%s8 + $0x504] sm:$0xf]
  %v2519 = vld [vmem:[%s8 + $0x508] sm:$0xff]
  %v2520 = vld [vmem:[%s8 + $0x510] sm:$0xff]
  %v2521 = vld [vmem:[%s8 + $0x518] sm:$0xff]
  %v2522 = vld [vmem:[%s8 + $0x520] sm:$0xf]
  %v2523 = vld [vmem:[%s8 + $0x524] sm:$0xff]
  %v2524 = vld [vmem:[%s8 + $0x52c] sm:$0xff]
  %v2525 = vld [vmem:[%s8 + $0x534] sm:$0xff]
  %v2526 = vld [vmem:[%s8 + $0x53c] sm:$0xf]
  %v2527 = vld [vmem:[%s8 + $0x540] sm:$0xff]
  %v2528 = vld [vmem:[%s8 + $0x548] sm:$0xff]
  %v2529 = vld [vmem:[%s8 + $0x550] sm:$0xff]
  %v2530 = vld [vmem:[%s8 + $0x558] sm:$0xf]
  %v2531 = vld [vmem:[%s8 + $0x55c] sm:$0xff]
  %v2532 = vld [vmem:[%s8 + $0x564] sm:$0xff]
  %v2533 = vld [vmem:[%s8 + $0x56c] sm:$0xff]
  %v2534 = vld [vmem:[%s8 + $0x574] sm:$0xf]
  %v2535 = vld [vmem:[%s8 + $0x578] sm:$0xff]
  %v2536 = vld [vmem:[%s8 + $0x580] sm:$0xff]
  %v2537 = vld [vmem:[%s8 + $0x588] sm:$0xff]
  %v2538 = vld [vmem:[%s8 + $0x590] sm:$0xf]
  %v2539 = vld [vmem:[%s8 + $0x594] sm:$0xff]
  %v2540 = vld [vmem:[%s8 + $0x59c] sm:$0xff]
  %v2541 = vld [vmem:[%s8 + $0x5a4] sm:$0xff]
  %v2542 = vld [vmem:[%s8 + $0x5ac] sm:$0xf]
  %v2543 = vld [vmem:[%s8 + $0x5b0] sm:$0xff]
  %v2544 = vld [vmem:[%s8 + $0x5b8] sm:$0xff]
  %v2545 = vld [vmem:[%s8 + $0x5c0] sm:$0xff]
  %v2546 = vld [vmem:[%s8 + $0x5c8] sm:$0xf]
  %v2547 = vld [vmem:[%s8 + $0x5cc] sm:$0xff]
  %v2548 = vld [vmem:[%s8 + $0x5d4] sm:$0xff]
  %v2549 = vld [vmem:[%s8 + $0x5dc] sm:$0xff]
  %v2550 = vld [vmem:[%s8 + $0x5e4] sm:$0xf]
  %v2551 = vld [vmem:[%s8 + $0x5e8] sm:$0xff]
  %v2552 = vld [vmem:[%s8 + $0x5f0] sm:$0xff]
  %v2553 = vld [vmem:[%s8 + $0x5f8] sm:$0xff]
  %v2554 = vld [vmem:[%s8 + $0x600] sm:$0xf]
  %v2555 = vld [vmem:[%s8 + $0x604] sm:$0xff]
  %v2556 = vld [vmem:[%s8 + $0x60c] sm:$0xff]
  %v2557 = vld [vmem:[%s8 + $0x614] sm:$0xff]
  %v2558 = vld [vmem:[%s8 + $0x61c] sm:$0xf]
  %v2559 = vld [vmem:[%s8 + $0x620] sm:$0xff]
  %v2560 = vld [vmem:[%s8 + $0x628] sm:$0xff]
  %v2561 = vld [vmem:[%s8 + $0x630] sm:$0xff]
  %v2562 = vld [vmem:[%s8 + $0x638] sm:$0xf]
  %v2563 = vld [vmem:[%s8 + $0x63c] sm:$0xff]
  %v2564 = vld [vmem:[%s8 + $0x644] sm:$0xff]
  %v2565 = vld [vmem:[%s8 + $0x64c] sm:$0xff]
  %v2566 = vld [vmem:[%s8 + $0x654] sm:$0xf]
  %v2567 = vld [vmem:[%s8 + $0x658] sm:$0xff]
  %v2568 = vld [vmem:[%s8 + $0x660] sm:$0xff]
  %v2569 = vld [vmem:[%s8 + $0x668] sm:$0xff]
  %v2570 = vld [vmem:[%s8 + $0x670] sm:$0xf]
  %v2571 = vld [vmem:[%s8 + $0x674] sm:$0xff]
  %v2572 = vld [vmem:[%s8 + $0x67c] sm:$0xff]
  %v2573 = vld [vmem:[%s8 + $0x684] sm:$0xff]
  %v2574 = vld [vmem:[%s8 + $0x68c] sm:$0xf]
  %v2575 = vld [vmem:[%s8 + $0x690] sm:$0xff]
  %v2576 = vld [vmem:[%s8 + $0x698] sm:$0xff]
  %v2577 = vld [vmem:[%s8 + $0x6a0] sm:$0xff]
  %v2578 = vld [vmem:[%s8 + $0x6a8] sm:$0xf]
  %v2579 = vld [vmem:[%s8 + $0x6ac] sm:$0xff]
  %v2580 = vld [vmem:[%s8 + $0x6b4] sm:$0xff]
  %v2581 = vld [vmem:[%s8 + $0x6bc] sm:$0xff]
  %v2582 = vld [vmem:[%s8 + $0x6c4] sm:$0xf]
  %v2583 = vld [vmem:[%s8 + $0x6c8] sm:$0xff]
  %v2584 = vld [vmem:[%s8 + $0x6d0] sm:$0xff]
  %v2585 = vld [vmem:[%s8 + $0x6d8] sm:$0xff]
  %v2586 = vld [vmem:[%s8 + $0x6e0] sm:$0xf]
  %v2587 = vld [vmem:[%s8 + $0x6e4] sm:$0xff]
  %v2588 = vld [vmem:[%s8 + $0x6ec] sm:$0xff]
  %v2589 = vld [vmem:[%s8 + $0x6f4] sm:$0xff]
  %v2590 = vld [vmem:[%s8 + $0x6fc] sm:$0xf]
  %v2591 = vld [vmem:[%s9] sm:$0xff]
  %v2593 = vlaneseq
  %v2594 = vshrl.u32 %v2593, 7
  %v2595 = vsub.s32 0, %v2594
  %v2596 = vrot.slane %v2591, %v2595
  %v2597 = vlaneseq
  %v2598 = vshrl.u32 %v2597, 7
  %v2599 = vsub.s32 1, %v2598
  %v2600 = vrot.slane %v2591, %v2599
  %v2601 = vlaneseq
  %v2602 = vshrl.u32 %v2601, 7
  %v2603 = vsub.s32 2, %v2602
  %v2604 = vrot.slane %v2591, %v2603
  %v2605 = vlaneseq
  %v2606 = vshrl.u32 %v2605, 7
  %v2607 = vsub.s32 3, %v2606
  %v2608 = vrot.slane %v2591, %v2607
  %v2609 = vlaneseq
  %v2610 = vshrl.u32 %v2609, 7
  %v2611 = vsub.s32 4, %v2610
  %v2612 = vrot.slane %v2591, %v2611
  %v2613 = vlaneseq
  %v2614 = vshrl.u32 %v2613, 7
  %v2615 = vsub.s32 5, %v2614
  %v2616 = vrot.slane %v2591, %v2615
  %v2617 = vlaneseq
  %v2618 = vshrl.u32 %v2617, 7
  %v2619 = vsub.s32 6, %v2618
  %v2620 = vrot.slane %v2591, %v2619
  %v2884 = vunpack.c.l.b16 %v2335
  %v2885 = vunpack.c.h.b16 %v2335
  %v2886 = vunpack.c.l.b16 %v2336
  %v2887 = vunpack.c.h.b16 %v2336
  %v2888 = vunpack.c.l.b16 %v2337
  %v2889 = vunpack.c.h.b16 %v2337
  %v2890 = vunpack.c.l.b16 %v2338
  %v2891 = vunpack.c.l.b16 %v2339
  %v2892 = vunpack.c.h.b16 %v2339
  %v2893 = vunpack.c.l.b16 %v2340
  %v2894 = vunpack.c.h.b16 %v2340
  %v2895 = vunpack.c.l.b16 %v2341
  %v2896 = vunpack.c.h.b16 %v2341
  %v2897 = vunpack.c.l.b16 %v2342
  %v2898 = vunpack.c.l.b16 %v2343
  %v2899 = vunpack.c.h.b16 %v2343
  %v2900 = vunpack.c.l.b16 %v2344
  %v2901 = vunpack.c.h.b16 %v2344
  %v2902 = vunpack.c.l.b16 %v2345
  %v2903 = vunpack.c.h.b16 %v2345
  %v2904 = vunpack.c.l.b16 %v2346
  %v2905 = vunpack.c.l.b16 %v2347
  %v2906 = vunpack.c.h.b16 %v2347
  %v2907 = vunpack.c.l.b16 %v2348
  %v2908 = vunpack.c.h.b16 %v2348
  %v2909 = vunpack.c.l.b16 %v2349
  %v2910 = vunpack.c.h.b16 %v2349
  %v2911 = vunpack.c.l.b16 %v2350
  %v2912 = vunpack.c.l.b16 %v2351
  %v2913 = vunpack.c.h.b16 %v2351
  %v2914 = vunpack.c.l.b16 %v2352
  %v2915 = vunpack.c.h.b16 %v2352
  %v2916 = vunpack.c.l.b16 %v2353
  %v2917 = vunpack.c.h.b16 %v2353
  %v2918 = vunpack.c.l.b16 %v2354
  %v2919 = vunpack.c.l.b16 %v2355
  %v2920 = vunpack.c.h.b16 %v2355
  %v2921 = vunpack.c.l.b16 %v2356
  %v2922 = vunpack.c.h.b16 %v2356
  %v2923 = vunpack.c.l.b16 %v2357
  %v2924 = vunpack.c.h.b16 %v2357
  %v2925 = vunpack.c.l.b16 %v2358
  %v2926 = vunpack.c.l.b16 %v2359
  %v2927 = vunpack.c.h.b16 %v2359
  %v2928 = vunpack.c.l.b16 %v2360
  %v2929 = vunpack.c.h.b16 %v2360
  %v2930 = vunpack.c.l.b16 %v2361
  %v2931 = vunpack.c.h.b16 %v2361
  %v2932 = vunpack.c.l.b16 %v2362
  %v2933 = vunpack.c.l.b16 %v2363
  %v2934 = vunpack.c.h.b16 %v2363
  %v2935 = vunpack.c.l.b16 %v2364
  %v2936 = vunpack.c.h.b16 %v2364
  %v2937 = vunpack.c.l.b16 %v2365
  %v2938 = vunpack.c.h.b16 %v2365
  %v2939 = vunpack.c.l.b16 %v2366
  %v2940 = vunpack.c.l.b16 %v2367
  %v2941 = vunpack.c.h.b16 %v2367
  %v2942 = vunpack.c.l.b16 %v2368
  %v2943 = vunpack.c.h.b16 %v2368
  %v2944 = vunpack.c.l.b16 %v2369
  %v2945 = vunpack.c.h.b16 %v2369
  %v2946 = vunpack.c.l.b16 %v2370
  %v2947 = vunpack.c.l.b16 %v2371
  %v2948 = vunpack.c.h.b16 %v2371
  %v2949 = vunpack.c.l.b16 %v2372
  %v2950 = vunpack.c.h.b16 %v2372
  %v2951 = vunpack.c.l.b16 %v2373
  %v2952 = vunpack.c.h.b16 %v2373
  %v2953 = vunpack.c.l.b16 %v2374
  %v2954 = vunpack.c.l.b16 %v2375
  %v2955 = vunpack.c.h.b16 %v2375
  %v2956 = vunpack.c.l.b16 %v2376
  %v2957 = vunpack.c.h.b16 %v2376
  %v2958 = vunpack.c.l.b16 %v2377
  %v2959 = vunpack.c.h.b16 %v2377
  %v2960 = vunpack.c.l.b16 %v2378
  %v2961 = vunpack.c.l.b16 %v2379
  %v2962 = vunpack.c.h.b16 %v2379
  %v2963 = vunpack.c.l.b16 %v2380
  %v2964 = vunpack.c.h.b16 %v2380
  %v2965 = vunpack.c.l.b16 %v2381
  %v2966 = vunpack.c.h.b16 %v2381
  %v2967 = vunpack.c.l.b16 %v2382
  %v2968 = vunpack.c.l.b16 %v2383
  %v2969 = vunpack.c.h.b16 %v2383
  %v2970 = vunpack.c.l.b16 %v2384
  %v2971 = vunpack.c.h.b16 %v2384
  %v2972 = vunpack.c.l.b16 %v2385
  %v2973 = vunpack.c.h.b16 %v2385
  %v2974 = vunpack.c.l.b16 %v2386
  %v2975 = vunpack.c.l.b16 %v2387
  %v2976 = vunpack.c.h.b16 %v2387
  %v2977 = vunpack.c.l.b16 %v2388
  %v2978 = vunpack.c.h.b16 %v2388
  %v2979 = vunpack.c.l.b16 %v2389
  %v2980 = vunpack.c.h.b16 %v2389
  %v2981 = vunpack.c.l.b16 %v2390
  %v2982 = vunpack.c.l.b16 %v2391
  %v2983 = vunpack.c.h.b16 %v2391
  %v2984 = vunpack.c.l.b16 %v2392
  %v2985 = vunpack.c.h.b16 %v2392
  %v2986 = vunpack.c.l.b16 %v2393
  %v2987 = vunpack.c.h.b16 %v2393
  %v2988 = vunpack.c.l.b16 %v2394
  %v2989 = vunpack.c.l.b16 %v2395
  %v2990 = vunpack.c.h.b16 %v2395
  %v2991 = vunpack.c.l.b16 %v2396
  %v2992 = vunpack.c.h.b16 %v2396
  %v2993 = vunpack.c.l.b16 %v2397
  %v2994 = vunpack.c.h.b16 %v2397
  %v2995 = vunpack.c.l.b16 %v2398
  %v2996 = vunpack.c.l.b16 %v2399
  %v2997 = vunpack.c.h.b16 %v2399
  %v2998 = vunpack.c.l.b16 %v2400
  %v2999 = vunpack.c.h.b16 %v2400
  %v3000 = vunpack.c.l.b16 %v2401
  %v3001 = vunpack.c.h.b16 %v2401
  %v3002 = vunpack.c.l.b16 %v2402
  %v3003 = vunpack.c.l.b16 %v2403
  %v3004 = vunpack.c.h.b16 %v2403
  %v3005 = vunpack.c.l.b16 %v2404
  %v3006 = vunpack.c.h.b16 %v2404
  %v3007 = vunpack.c.l.b16 %v2405
  %v3008 = vunpack.c.h.b16 %v2405
  %v3009 = vunpack.c.l.b16 %v2406
  %v3010 = vunpack.c.l.b16 %v2407
  %v3011 = vunpack.c.h.b16 %v2407
  %v3012 = vunpack.c.l.b16 %v2408
  %v3013 = vunpack.c.h.b16 %v2408
  %v3014 = vunpack.c.l.b16 %v2409
  %v3015 = vunpack.c.h.b16 %v2409
  %v3016 = vunpack.c.l.b16 %v2410
  %v3017 = vunpack.c.l.b16 %v2411
  %v3018 = vunpack.c.h.b16 %v2411
  %v3019 = vunpack.c.l.b16 %v2412
  %v3020 = vunpack.c.h.b16 %v2412
  %v3021 = vunpack.c.l.b16 %v2413
  %v3022 = vunpack.c.h.b16 %v2413
  %v3023 = vunpack.c.l.b16 %v2414
  %v3024 = vunpack.c.l.b16 %v2415
  %v3025 = vunpack.c.h.b16 %v2415
  %v3026 = vunpack.c.l.b16 %v2416
  %v3027 = vunpack.c.h.b16 %v2416
  %v3028 = vunpack.c.l.b16 %v2417
  %v3029 = vunpack.c.h.b16 %v2417
  %v3030 = vunpack.c.l.b16 %v2418
  %v3031 = vunpack.c.l.b16 %v2419
  %v3032 = vunpack.c.h.b16 %v2419
  %v3033 = vunpack.c.l.b16 %v2420
  %v3034 = vunpack.c.h.b16 %v2420
  %v3035 = vunpack.c.l.b16 %v2421
  %v3036 = vunpack.c.h.b16 %v2421
  %v3037 = vunpack.c.l.b16 %v2422
  %v3038 = vunpack.c.l.b16 %v2423
  %v3039 = vunpack.c.h.b16 %v2423
  %v3040 = vunpack.c.l.b16 %v2424
  %v3041 = vunpack.c.h.b16 %v2424
  %v3042 = vunpack.c.l.b16 %v2425
  %v3043 = vunpack.c.h.b16 %v2425
  %v3044 = vunpack.c.l.b16 %v2426
  %v3045 = vunpack.c.l.b16 %v2427
  %v3046 = vunpack.c.h.b16 %v2427
  %v3047 = vunpack.c.l.b16 %v2428
  %v3048 = vunpack.c.h.b16 %v2428
  %v3049 = vunpack.c.l.b16 %v2429
  %v3050 = vunpack.c.h.b16 %v2429
  %v3051 = vunpack.c.l.b16 %v2430
  %v3052 = vunpack.c.l.b16 %v2431
  %v3053 = vunpack.c.h.b16 %v2431
  %v3054 = vunpack.c.l.b16 %v2432
  %v3055 = vunpack.c.h.b16 %v2432
  %v3056 = vunpack.c.l.b16 %v2433
  %v3057 = vunpack.c.h.b16 %v2433
  %v3058 = vunpack.c.l.b16 %v2434
  %v3059 = vunpack.c.l.b16 %v2435
  %v3060 = vunpack.c.h.b16 %v2435
  %v3061 = vunpack.c.l.b16 %v2436
  %v3062 = vunpack.c.h.b16 %v2436
  %v3063 = vunpack.c.l.b16 %v2437
  %v3064 = vunpack.c.h.b16 %v2437
  %v3065 = vunpack.c.l.b16 %v2438
  %v3066 = vunpack.c.l.b16 %v2439
  %v3067 = vunpack.c.h.b16 %v2439
  %v3068 = vunpack.c.l.b16 %v2440
  %v3069 = vunpack.c.h.b16 %v2440
  %v3070 = vunpack.c.l.b16 %v2441
  %v3071 = vunpack.c.h.b16 %v2441
  %v3072 = vunpack.c.l.b16 %v2442
  %v3073 = vunpack.c.l.b16 %v2443
  %v3074 = vunpack.c.h.b16 %v2443
  %v3075 = vunpack.c.l.b16 %v2444
  %v3076 = vunpack.c.h.b16 %v2444
  %v3077 = vunpack.c.l.b16 %v2445
  %v3078 = vunpack.c.h.b16 %v2445
  %v3079 = vunpack.c.l.b16 %v2446
  %v3080 = vunpack.c.l.b16 %v2447
  %v3081 = vunpack.c.h.b16 %v2447
  %v3082 = vunpack.c.l.b16 %v2448
  %v3083 = vunpack.c.h.b16 %v2448
  %v3084 = vunpack.c.l.b16 %v2449
  %v3085 = vunpack.c.h.b16 %v2449
  %v3086 = vunpack.c.l.b16 %v2450
  %v3087 = vunpack.c.l.b16 %v2451
  %v3088 = vunpack.c.h.b16 %v2451
  %v3089 = vunpack.c.l.b16 %v2452
  %v3090 = vunpack.c.h.b16 %v2452
  %v3091 = vunpack.c.l.b16 %v2453
  %v3092 = vunpack.c.h.b16 %v2453
  %v3093 = vunpack.c.l.b16 %v2454
  %v3094 = vunpack.c.l.b16 %v2455
  %v3095 = vunpack.c.h.b16 %v2455
  %v3096 = vunpack.c.l.b16 %v2456
  %v3097 = vunpack.c.h.b16 %v2456
  %v3098 = vunpack.c.l.b16 %v2457
  %v3099 = vunpack.c.h.b16 %v2457
  %v3100 = vunpack.c.l.b16 %v2458
  %v3101 = vunpack.c.l.b16 %v2459
  %v3102 = vunpack.c.h.b16 %v2459
  %v3103 = vunpack.c.l.b16 %v2460
  %v3104 = vunpack.c.h.b16 %v2460
  %v3105 = vunpack.c.l.b16 %v2461
  %v3106 = vunpack.c.h.b16 %v2461
  %v3107 = vunpack.c.l.b16 %v2462
  %v3108 = vunpack.c.l.b16 %v2463
  %v3109 = vunpack.c.h.b16 %v2463
  %v3110 = vunpack.c.l.b16 %v2464
  %v3111 = vunpack.c.h.b16 %v2464
  %v3112 = vunpack.c.l.b16 %v2465
  %v3113 = vunpack.c.h.b16 %v2465
  %v3114 = vunpack.c.l.b16 %v2466
  %v3115 = vunpack.c.l.b16 %v2467
  %v3116 = vunpack.c.h.b16 %v2467
  %v3117 = vunpack.c.l.b16 %v2468
  %v3118 = vunpack.c.h.b16 %v2468
  %v3119 = vunpack.c.l.b16 %v2469
  %v3120 = vunpack.c.h.b16 %v2469
  %v3121 = vunpack.c.l.b16 %v2470
  %v3122 = vunpack.c.l.b16 %v2471
  %v3123 = vunpack.c.h.b16 %v2471
  %v3124 = vunpack.c.l.b16 %v2472
  %v3125 = vunpack.c.h.b16 %v2472
  %v3126 = vunpack.c.l.b16 %v2473
  %v3127 = vunpack.c.h.b16 %v2473
  %v3128 = vunpack.c.l.b16 %v2474
  %v3129 = vunpack.c.l.b16 %v2475
  %v3130 = vunpack.c.h.b16 %v2475
  %v3131 = vunpack.c.l.b16 %v2476
  %v3132 = vunpack.c.h.b16 %v2476
  %v3133 = vunpack.c.l.b16 %v2477
  %v3134 = vunpack.c.h.b16 %v2477
  %v3135 = vunpack.c.l.b16 %v2478
  %v3136 = vunpack.c.l.b16 %v2479
  %v3137 = vunpack.c.h.b16 %v2479
  %v3138 = vunpack.c.l.b16 %v2480
  %v3139 = vunpack.c.h.b16 %v2480
  %v3140 = vunpack.c.l.b16 %v2481
  %v3141 = vunpack.c.h.b16 %v2481
  %v3142 = vunpack.c.l.b16 %v2482
  %v3143 = vunpack.c.l.b16 %v2483
  %v3144 = vunpack.c.h.b16 %v2483
  %v3145 = vunpack.c.l.b16 %v2484
  %v3146 = vunpack.c.h.b16 %v2484
  %v3147 = vunpack.c.l.b16 %v2485
  %v3148 = vunpack.c.h.b16 %v2485
  %v3149 = vunpack.c.l.b16 %v2486
  %v3150 = vunpack.c.l.b16 %v2487
  %v3151 = vunpack.c.h.b16 %v2487
  %v3152 = vunpack.c.l.b16 %v2488
  %v3153 = vunpack.c.h.b16 %v2488
  %v3154 = vunpack.c.l.b16 %v2489
  %v3155 = vunpack.c.h.b16 %v2489
  %v3156 = vunpack.c.l.b16 %v2490
  %v3157 = vunpack.c.l.b16 %v2491
  %v3158 = vunpack.c.h.b16 %v2491
  %v3159 = vunpack.c.l.b16 %v2492
  %v3160 = vunpack.c.h.b16 %v2492
  %v3161 = vunpack.c.l.b16 %v2493
  %v3162 = vunpack.c.h.b16 %v2493
  %v3163 = vunpack.c.l.b16 %v2494
  %v3164 = vunpack.c.l.b16 %v2495
  %v3165 = vunpack.c.h.b16 %v2495
  %v3166 = vunpack.c.l.b16 %v2496
  %v3167 = vunpack.c.h.b16 %v2496
  %v3168 = vunpack.c.l.b16 %v2497
  %v3169 = vunpack.c.h.b16 %v2497
  %v3170 = vunpack.c.l.b16 %v2498
  %v3171 = vunpack.c.l.b16 %v2499
  %v3172 = vunpack.c.h.b16 %v2499
  %v3173 = vunpack.c.l.b16 %v2500
  %v3174 = vunpack.c.h.b16 %v2500
  %v3175 = vunpack.c.l.b16 %v2501
  %v3176 = vunpack.c.h.b16 %v2501
  %v3177 = vunpack.c.l.b16 %v2502
  %v3178 = vunpack.c.l.b16 %v2503
  %v3179 = vunpack.c.h.b16 %v2503
  %v3180 = vunpack.c.l.b16 %v2504
  %v3181 = vunpack.c.h.b16 %v2504
  %v3182 = vunpack.c.l.b16 %v2505
  %v3183 = vunpack.c.h.b16 %v2505
  %v3184 = vunpack.c.l.b16 %v2506
  %v3185 = vunpack.c.l.b16 %v2507
  %v3186 = vunpack.c.h.b16 %v2507
  %v3187 = vunpack.c.l.b16 %v2508
  %v3188 = vunpack.c.h.b16 %v2508
  %v3189 = vunpack.c.l.b16 %v2509
  %v3190 = vunpack.c.h.b16 %v2509
  %v3191 = vunpack.c.l.b16 %v2510
  %v3192 = vunpack.c.l.b16 %v2511
  %v3193 = vunpack.c.h.b16 %v2511
  %v3194 = vunpack.c.l.b16 %v2512
  %v3195 = vunpack.c.h.b16 %v2512
  %v3196 = vunpack.c.l.b16 %v2513
  %v3197 = vunpack.c.h.b16 %v2513
  %v3198 = vunpack.c.l.b16 %v2514
  %v3199 = vunpack.c.l.b16 %v2515
  %v3200 = vunpack.c.h.b16 %v2515
  %v3201 = vunpack.c.l.b16 %v2516
  %v3202 = vunpack.c.h.b16 %v2516
  %v3203 = vunpack.c.l.b16 %v2517
  %v3204 = vunpack.c.h.b16 %v2517
  %v3205 = vunpack.c.l.b16 %v2518
  %v3206 = vunpack.c.l.b16 %v2519
  %v3207 = vunpack.c.h.b16 %v2519
  %v3208 = vunpack.c.l.b16 %v2520
  %v3209 = vunpack.c.h.b16 %v2520
  %v3210 = vunpack.c.l.b16 %v2521
  %v3211 = vunpack.c.h.b16 %v2521
  %v3212 = vunpack.c.l.b16 %v2522
  %v3213 = vunpack.c.l.b16 %v2523
  %v3214 = vunpack.c.h.b16 %v2523
  %v3215 = vunpack.c.l.b16 %v2524
  %v3216 = vunpack.c.h.b16 %v2524
  %v3217 = vunpack.c.l.b16 %v2525
  %v3218 = vunpack.c.h.b16 %v2525
  %v3219 = vunpack.c.l.b16 %v2526
  %v3220 = vunpack.c.l.b16 %v2527
  %v3221 = vunpack.c.h.b16 %v2527
  %v3222 = vunpack.c.l.b16 %v2528
  %v3223 = vunpack.c.h.b16 %v2528
  %v3224 = vunpack.c.l.b16 %v2529
  %v3225 = vunpack.c.h.b16 %v2529
  %v3226 = vunpack.c.l.b16 %v2530
  %v3227 = vunpack.c.l.b16 %v2531
  %v3228 = vunpack.c.h.b16 %v2531
  %v3229 = vunpack.c.l.b16 %v2532
  %v3230 = vunpack.c.h.b16 %v2532
  %v3231 = vunpack.c.l.b16 %v2533
  %v3232 = vunpack.c.h.b16 %v2533
  %v3233 = vunpack.c.l.b16 %v2534
  %v3234 = vunpack.c.l.b16 %v2535
  %v3235 = vunpack.c.h.b16 %v2535
  %v3236 = vunpack.c.l.b16 %v2536
  %v3237 = vunpack.c.h.b16 %v2536
  %v3238 = vunpack.c.l.b16 %v2537
  %v3239 = vunpack.c.h.b16 %v2537
  %v3240 = vunpack.c.l.b16 %v2538
  %v3241 = vunpack.c.l.b16 %v2539
  %v3242 = vunpack.c.h.b16 %v2539
  %v3243 = vunpack.c.l.b16 %v2540
  %v3244 = vunpack.c.h.b16 %v2540
  %v3245 = vunpack.c.l.b16 %v2541
  %v3246 = vunpack.c.h.b16 %v2541
  %v3247 = vunpack.c.l.b16 %v2542
  %v3248 = vunpack.c.l.b16 %v2543
  %v3249 = vunpack.c.h.b16 %v2543
  %v3250 = vunpack.c.l.b16 %v2544
  %v3251 = vunpack.c.h.b16 %v2544
  %v3252 = vunpack.c.l.b16 %v2545
  %v3253 = vunpack.c.h.b16 %v2545
  %v3254 = vunpack.c.l.b16 %v2546
  %v3255 = vunpack.c.l.b16 %v2547
  %v3256 = vunpack.c.h.b16 %v2547
  %v3257 = vunpack.c.l.b16 %v2548
  %v3258 = vunpack.c.h.b16 %v2548
  %v3259 = vunpack.c.l.b16 %v2549
  %v3260 = vunpack.c.h.b16 %v2549
  %v3261 = vunpack.c.l.b16 %v2550
  %v3262 = vunpack.c.l.b16 %v2551
  %v3263 = vunpack.c.h.b16 %v2551
  %v3264 = vunpack.c.l.b16 %v2552
  %v3265 = vunpack.c.h.b16 %v2552
  %v3266 = vunpack.c.l.b16 %v2553
  %v3267 = vunpack.c.h.b16 %v2553
  %v3268 = vunpack.c.l.b16 %v2554
  %v3269 = vunpack.c.l.b16 %v2555
  %v3270 = vunpack.c.h.b16 %v2555
  %v3271 = vunpack.c.l.b16 %v2556
  %v3272 = vunpack.c.h.b16 %v2556
  %v3273 = vunpack.c.l.b16 %v2557
  %v3274 = vunpack.c.h.b16 %v2557
  %v3275 = vunpack.c.l.b16 %v2558
  %v3276 = vunpack.c.l.b16 %v2559
  %v3277 = vunpack.c.h.b16 %v2559
  %v3278 = vunpack.c.l.b16 %v2560
  %v3279 = vunpack.c.h.b16 %v2560
  %v3280 = vunpack.c.l.b16 %v2561
  %v3281 = vunpack.c.h.b16 %v2561
  %v3282 = vunpack.c.l.b16 %v2562
  %v3283 = vunpack.c.l.b16 %v2563
  %v3284 = vunpack.c.h.b16 %v2563
  %v3285 = vunpack.c.l.b16 %v2564
  %v3286 = vunpack.c.h.b16 %v2564
  %v3287 = vunpack.c.l.b16 %v2565
  %v3288 = vunpack.c.h.b16 %v2565
  %v3289 = vunpack.c.l.b16 %v2566
  %v3290 = vunpack.c.l.b16 %v2567
  %v3291 = vunpack.c.h.b16 %v2567
  %v3292 = vunpack.c.l.b16 %v2568
  %v3293 = vunpack.c.h.b16 %v2568
  %v3294 = vunpack.c.l.b16 %v2569
  %v3295 = vunpack.c.h.b16 %v2569
  %v3296 = vunpack.c.l.b16 %v2570
  %v3297 = vunpack.c.l.b16 %v2571
  %v3298 = vunpack.c.h.b16 %v2571
  %v3299 = vunpack.c.l.b16 %v2572
  %v3300 = vunpack.c.h.b16 %v2572
  %v3301 = vunpack.c.l.b16 %v2573
  %v3302 = vunpack.c.h.b16 %v2573
  %v3303 = vunpack.c.l.b16 %v2574
  %v3304 = vunpack.c.l.b16 %v2575
  %v3305 = vunpack.c.h.b16 %v2575
  %v3306 = vunpack.c.l.b16 %v2576
  %v3307 = vunpack.c.h.b16 %v2576
  %v3308 = vunpack.c.l.b16 %v2577
  %v3309 = vunpack.c.h.b16 %v2577
  %v3310 = vunpack.c.l.b16 %v2578
  %v3311 = vunpack.c.l.b16 %v2579
  %v3312 = vunpack.c.h.b16 %v2579
  %v3313 = vunpack.c.l.b16 %v2580
  %v3314 = vunpack.c.h.b16 %v2580
  %v3315 = vunpack.c.l.b16 %v2581
  %v3316 = vunpack.c.h.b16 %v2581
  %v3317 = vunpack.c.l.b16 %v2582
  %v3318 = vunpack.c.l.b16 %v2583
  %v3319 = vunpack.c.h.b16 %v2583
  %v3320 = vunpack.c.l.b16 %v2584
  %v3321 = vunpack.c.h.b16 %v2584
  %v3322 = vunpack.c.l.b16 %v2585
  %v3323 = vunpack.c.h.b16 %v2585
  %v3324 = vunpack.c.l.b16 %v2586
  %v3325 = vunpack.c.l.b16 %v2587
  %v3326 = vunpack.c.h.b16 %v2587
  %v3327 = vunpack.c.l.b16 %v2588
  %v3328 = vunpack.c.h.b16 %v2588
  %v3329 = vunpack.c.l.b16 %v2589
  %v3330 = vunpack.c.h.b16 %v2589
  %v3331 = vunpack.c.l.b16 %v2590
  %v3332 = vpack.c.b16 %v2891, %v2884
  %v3333 = vpack.c.b16 %v2892, %v2885
  %v3334 = vpack.c.b16 %v2893, %v2886
  %v3335 = vpack.c.b16 %v2894, %v2887
  %v3336 = vpack.c.b16 %v2895, %v2888
  %v3337 = vpack.c.b16 %v2896, %v2889
  %v3338 = vpack.c.b16 %v2897, %v2890
  %v3339 = vpack.c.b16 %v2905, %v2898
  %v3340 = vpack.c.b16 %v2906, %v2899
  %v3341 = vpack.c.b16 %v2907, %v2900
  %v3342 = vpack.c.b16 %v2908, %v2901
  %v3343 = vpack.c.b16 %v2909, %v2902
  %v3344 = vpack.c.b16 %v2910, %v2903
  %v3345 = vpack.c.b16 %v2911, %v2904
  %v3346 = vpack.c.b16 %v2919, %v2912
  %v3347 = vpack.c.b16 %v2920, %v2913
  %v3348 = vpack.c.b16 %v2921, %v2914
  %v3349 = vpack.c.b16 %v2922, %v2915
  %v3350 = vpack.c.b16 %v2923, %v2916
  %v3351 = vpack.c.b16 %v2924, %v2917
  %v3352 = vpack.c.b16 %v2925, %v2918
  %v3353 = vpack.c.b16 %v2933, %v2926
  %v3354 = vpack.c.b16 %v2934, %v2927
  %v3355 = vpack.c.b16 %v2935, %v2928
  %v3356 = vpack.c.b16 %v2936, %v2929
  %v3357 = vpack.c.b16 %v2937, %v2930
  %v3358 = vpack.c.b16 %v2938, %v2931
  %v3359 = vpack.c.b16 %v2939, %v2932
  %v3360 = vpack.c.b16 %v2947, %v2940
  %v3361 = vpack.c.b16 %v2948, %v2941
  %v3362 = vpack.c.b16 %v2949, %v2942
  %v3363 = vpack.c.b16 %v2950, %v2943
  %v3364 = vpack.c.b16 %v2951, %v2944
  %v3365 = vpack.c.b16 %v2952, %v2945
  %v3366 = vpack.c.b16 %v2953, %v2946
  %v3367 = vpack.c.b16 %v2961, %v2954
  %v3368 = vpack.c.b16 %v2962, %v2955
  %v3369 = vpack.c.b16 %v2963, %v2956
  %v3370 = vpack.c.b16 %v2964, %v2957
  %v3371 = vpack.c.b16 %v2965, %v2958
  %v3372 = vpack.c.b16 %v2966, %v2959
  %v3373 = vpack.c.b16 %v2967, %v2960
  %v3374 = vpack.c.b16 %v2975, %v2968
  %v3375 = vpack.c.b16 %v2976, %v2969
  %v3376 = vpack.c.b16 %v2977, %v2970
  %v3377 = vpack.c.b16 %v2978, %v2971
  %v3378 = vpack.c.b16 %v2979, %v2972
  %v3379 = vpack.c.b16 %v2980, %v2973
  %v3380 = vpack.c.b16 %v2981, %v2974
  %v3381 = vpack.c.b16 %v2989, %v2982
  %v3382 = vpack.c.b16 %v2990, %v2983
  %v3383 = vpack.c.b16 %v2991, %v2984
  %v3384 = vpack.c.b16 %v2992, %v2985
  %v3385 = vpack.c.b16 %v2993, %v2986
  %v3386 = vpack.c.b16 %v2994, %v2987
  %v3387 = vpack.c.b16 %v2995, %v2988
  %v3388 = vpack.c.b16 %v3003, %v2996
  %v3389 = vpack.c.b16 %v3004, %v2997
  %v3390 = vpack.c.b16 %v3005, %v2998
  %v3391 = vpack.c.b16 %v3006, %v2999
  %v3392 = vpack.c.b16 %v3007, %v3000
  %v3393 = vpack.c.b16 %v3008, %v3001
  %v3394 = vpack.c.b16 %v3009, %v3002
  %v3395 = vpack.c.b16 %v3017, %v3010
  %v3396 = vpack.c.b16 %v3018, %v3011
  %v3397 = vpack.c.b16 %v3019, %v3012
  %v3398 = vpack.c.b16 %v3020, %v3013
  %v3399 = vpack.c.b16 %v3021, %v3014
  %v3400 = vpack.c.b16 %v3022, %v3015
  %v3401 = vpack.c.b16 %v3023, %v3016
  %v3402 = vpack.c.b16 %v3031, %v3024
  %v3403 = vpack.c.b16 %v3032, %v3025
  %v3404 = vpack.c.b16 %v3033, %v3026
  %v3405 = vpack.c.b16 %v3034, %v3027
  %v3406 = vpack.c.b16 %v3035, %v3028
  %v3407 = vpack.c.b16 %v3036, %v3029
  %v3408 = vpack.c.b16 %v3037, %v3030
  %v3409 = vpack.c.b16 %v3045, %v3038
  %v3410 = vpack.c.b16 %v3046, %v3039
  %v3411 = vpack.c.b16 %v3047, %v3040
  %v3412 = vpack.c.b16 %v3048, %v3041
  %v3413 = vpack.c.b16 %v3049, %v3042
  %v3414 = vpack.c.b16 %v3050, %v3043
  %v3415 = vpack.c.b16 %v3051, %v3044
  %v3416 = vpack.c.b16 %v3059, %v3052
  %v3417 = vpack.c.b16 %v3060, %v3053
  %v3418 = vpack.c.b16 %v3061, %v3054
  %v3419 = vpack.c.b16 %v3062, %v3055
  %v3420 = vpack.c.b16 %v3063, %v3056
  %v3421 = vpack.c.b16 %v3064, %v3057
  %v3422 = vpack.c.b16 %v3065, %v3058
  %v3423 = vpack.c.b16 %v3073, %v3066
  %v3424 = vpack.c.b16 %v3074, %v3067
  %v3425 = vpack.c.b16 %v3075, %v3068
  %v3426 = vpack.c.b16 %v3076, %v3069
  %v3427 = vpack.c.b16 %v3077, %v3070
  %v3428 = vpack.c.b16 %v3078, %v3071
  %v3429 = vpack.c.b16 %v3079, %v3072
  %v3430 = vpack.c.b16 %v3087, %v3080
  %v3431 = vpack.c.b16 %v3088, %v3081
  %v3432 = vpack.c.b16 %v3089, %v3082
  %v3433 = vpack.c.b16 %v3090, %v3083
  %v3434 = vpack.c.b16 %v3091, %v3084
  %v3435 = vpack.c.b16 %v3092, %v3085
  %v3436 = vpack.c.b16 %v3093, %v3086
  %v3437 = vpack.c.b16 %v3101, %v3094
  %v3438 = vpack.c.b16 %v3102, %v3095
  %v3439 = vpack.c.b16 %v3103, %v3096
  %v3440 = vpack.c.b16 %v3104, %v3097
  %v3441 = vpack.c.b16 %v3105, %v3098
  %v3442 = vpack.c.b16 %v3106, %v3099
  %v3443 = vpack.c.b16 %v3107, %v3100
  %v3444 = vpack.c.b16 %v3115, %v3108
  %v3445 = vpack.c.b16 %v3116, %v3109
  %v3446 = vpack.c.b16 %v3117, %v3110
  %v3447 = vpack.c.b16 %v3118, %v3111
  %v3448 = vpack.c.b16 %v3119, %v3112
  %v3449 = vpack.c.b16 %v3120, %v3113
  %v3450 = vpack.c.b16 %v3121, %v3114
  %v3451 = vpack.c.b16 %v3129, %v3122
  %v3452 = vpack.c.b16 %v3130, %v3123
  %v3453 = vpack.c.b16 %v3131, %v3124
  %v3454 = vpack.c.b16 %v3132, %v3125
  %v3455 = vpack.c.b16 %v3133, %v3126
  %v3456 = vpack.c.b16 %v3134, %v3127
  %v3457 = vpack.c.b16 %v3135, %v3128
  %v3458 = vpack.c.b16 %v3143, %v3136
  %v3459 = vpack.c.b16 %v3144, %v3137
  %v3460 = vpack.c.b16 %v3145, %v3138
  %v3461 = vpack.c.b16 %v3146, %v3139
  %v3462 = vpack.c.b16 %v3147, %v3140
  %v3463 = vpack.c.b16 %v3148, %v3141
  %v3464 = vpack.c.b16 %v3149, %v3142
  %v3465 = vpack.c.b16 %v3157, %v3150
  %v3466 = vpack.c.b16 %v3158, %v3151
  %v3467 = vpack.c.b16 %v3159, %v3152
  %v3468 = vpack.c.b16 %v3160, %v3153
  %v3469 = vpack.c.b16 %v3161, %v3154
  %v3470 = vpack.c.b16 %v3162, %v3155
  %v3471 = vpack.c.b16 %v3163, %v3156
  %v3472 = vpack.c.b16 %v3171, %v3164
  %v3473 = vpack.c.b16 %v3172, %v3165
  %v3474 = vpack.c.b16 %v3173, %v3166
  %v3475 = vpack.c.b16 %v3174, %v3167
  %v3476 = vpack.c.b16 %v3175, %v3168
  %v3477 = vpack.c.b16 %v3176, %v3169
  %v3478 = vpack.c.b16 %v3177, %v3170
  %v3479 = vpack.c.b16 %v3185, %v3178
  %v3480 = vpack.c.b16 %v3186, %v3179
  %v3481 = vpack.c.b16 %v3187, %v3180
  %v3482 = vpack.c.b16 %v3188, %v3181
  %v3483 = vpack.c.b16 %v3189, %v3182
  %v3484 = vpack.c.b16 %v3190, %v3183
  %v3485 = vpack.c.b16 %v3191, %v3184
  %v3486 = vpack.c.b16 %v3199, %v3192
  %v3487 = vpack.c.b16 %v3200, %v3193
  %v3488 = vpack.c.b16 %v3201, %v3194
  %v3489 = vpack.c.b16 %v3202, %v3195
  %v3490 = vpack.c.b16 %v3203, %v3196
  %v3491 = vpack.c.b16 %v3204, %v3197
  %v3492 = vpack.c.b16 %v3205, %v3198
  %v3493 = vpack.c.b16 %v3213, %v3206
  %v3494 = vpack.c.b16 %v3214, %v3207
  %v3495 = vpack.c.b16 %v3215, %v3208
  %v3496 = vpack.c.b16 %v3216, %v3209
  %v3497 = vpack.c.b16 %v3217, %v3210
  %v3498 = vpack.c.b16 %v3218, %v3211
  %v3499 = vpack.c.b16 %v3219, %v3212
  %v3500 = vpack.c.b16 %v3227, %v3220
  %v3501 = vpack.c.b16 %v3228, %v3221
  %v3502 = vpack.c.b16 %v3229, %v3222
  %v3503 = vpack.c.b16 %v3230, %v3223
  %v3504 = vpack.c.b16 %v3231, %v3224
  %v3505 = vpack.c.b16 %v3232, %v3225
  %v3506 = vpack.c.b16 %v3233, %v3226
  %v3507 = vpack.c.b16 %v3241, %v3234
  %v3508 = vpack.c.b16 %v3242, %v3235
  %v3509 = vpack.c.b16 %v3243, %v3236
  %v3510 = vpack.c.b16 %v3244, %v3237
  %v3511 = vpack.c.b16 %v3245, %v3238
  %v3512 = vpack.c.b16 %v3246, %v3239
  %v3513 = vpack.c.b16 %v3247, %v3240
  %v3514 = vpack.c.b16 %v3255, %v3248
  %v3515 = vpack.c.b16 %v3256, %v3249
  %v3516 = vpack.c.b16 %v3257, %v3250
  %v3517 = vpack.c.b16 %v3258, %v3251
  %v3518 = vpack.c.b16 %v3259, %v3252
  %v3519 = vpack.c.b16 %v3260, %v3253
  %v3520 = vpack.c.b16 %v3261, %v3254
  %v3521 = vpack.c.b16 %v3269, %v3262
  %v3522 = vpack.c.b16 %v3270, %v3263
  %v3523 = vpack.c.b16 %v3271, %v3264
  %v3524 = vpack.c.b16 %v3272, %v3265
  %v3525 = vpack.c.b16 %v3273, %v3266
  %v3526 = vpack.c.b16 %v3274, %v3267
  %v3527 = vpack.c.b16 %v3275, %v3268
  %v3528 = vpack.c.b16 %v3283, %v3276
  %v3529 = vpack.c.b16 %v3284, %v3277
  %v3530 = vpack.c.b16 %v3285, %v3278
  %v3531 = vpack.c.b16 %v3286, %v3279
  %v3532 = vpack.c.b16 %v3287, %v3280
  %v3533 = vpack.c.b16 %v3288, %v3281
  %v3534 = vpack.c.b16 %v3289, %v3282
  %v3535 = vpack.c.b16 %v3297, %v3290
  %v3536 = vpack.c.b16 %v3298, %v3291
  %v3537 = vpack.c.b16 %v3299, %v3292
  %v3538 = vpack.c.b16 %v3300, %v3293
  %v3539 = vpack.c.b16 %v3301, %v3294
  %v3540 = vpack.c.b16 %v3302, %v3295
  %v3541 = vpack.c.b16 %v3303, %v3296
  %v3542 = vpack.c.b16 %v3311, %v3304
  %v3543 = vpack.c.b16 %v3312, %v3305
  %v3544 = vpack.c.b16 %v3313, %v3306
  %v3545 = vpack.c.b16 %v3314, %v3307
  %v3546 = vpack.c.b16 %v3315, %v3308
  %v3547 = vpack.c.b16 %v3316, %v3309
  %v3548 = vpack.c.b16 %v3317, %v3310
  %v3549 = vpack.c.b16 %v3325, %v3318
  %v3550 = vpack.c.b16 %v3326, %v3319
  %v3551 = vpack.c.b16 %v3327, %v3320
  %v3552 = vpack.c.b16 %v3328, %v3321
  %v3553 = vpack.c.b16 %v3329, %v3322
  %v3554 = vpack.c.b16 %v3330, %v3323
  %v3555 = vpack.c.b16 %v3331, %v3324
  %3780 = vmatprep.subr.bf16.mxu0 %v3333
  %3781 = vmatpush1.bf16.msra.mxu0 %v3332
  %3782 = vmatprep.subr.bf16.mxu0 %v3340
  %3783 = vmatpush1.bf16.msra.mxu0 %v3339
  %3784 = vmatprep.subr.bf16.mxu0 %v3347
  %3785 = vmatpush1.bf16.msra.mxu0 %v3346
  %3786 = vmatprep.subr.bf16.mxu0 %v3354
  %3787 = vmatpush1.bf16.msra.mxu0 %v3353
  %3788 = vmatprep.subr.bf16.mxu0 %v3361
  %3789 = vmatpush1.bf16.msra.mxu0 %v3360
  %3790 = vmatprep.subr.bf16.mxu0 %v3368
  %3791 = vmatpush1.bf16.msra.mxu0 %v3367
  %3792 = vmatprep.subr.bf16.mxu0 %v3375
  %3793 = vmatpush1.bf16.msra.mxu0 %v3374
  %3794 = vmatprep.subr.bf16.mxu0 %v3382
  %3795 = vmatpush1.bf16.msra.mxu0 %v3381
  %3796 = vmatprep.subr.bf16.mxu0 %v3389
  %3797 = vmatpush1.bf16.msra.mxu0 %v3388
  %3798 = vmatprep.subr.bf16.mxu0 %v3396
  %3799 = vmatpush1.bf16.msra.mxu0 %v3395
  %3800 = vmatprep.subr.bf16.mxu0 %v3403
  %3801 = vmatpush1.bf16.msra.mxu0 %v3402
  %3802 = vmatprep.subr.bf16.mxu0 %v3410
  %3803 = vmatpush1.bf16.msra.mxu0 %v3409
  %3804 = vmatprep.subr.bf16.mxu0 %v3417
  %3805 = vmatpush1.bf16.msra.mxu0 %v3416
  %3806 = vmatprep.subr.bf16.mxu0 %v3424
  %3807 = vmatpush1.bf16.msra.mxu0 %v3423
  %3808 = vmatprep.subr.bf16.mxu0 %v3431
  %3809 = vmatpush1.bf16.msra.mxu0 %v3430
  %3810 = vmatprep.subr.bf16.mxu0 %v3438
  %3811 = vmatpush1.bf16.msra.mxu0 %v3437
  %3812 = vmatprep.mubr.bf16.mxu0 %v2332
  %3813 = vmatmul.mubr.bf16.gmra.mrb[0].mxu0 %v2331
  %v3814 = vpop.f32.mrb[0].mxu0
  %v3815 = vadd.f32 %v2596, %v3814
  %v3816 = vpop.f32.mrb[0].mxu0
  %v3817 = vadd.f32 %v2600, %v3816
  %v3818 = vpop.f32.mrb[0].mxu0
  %v3819 = vpop.f32.mrb[0].mxu0
  %3820 = vdwg.mxu0
  %3821 = vmatprep.subr.bf16.mxu0 %v3445
  %3822 = vmatpush1.bf16.msra.mxu0 %v3444
  %3823 = vmatprep.subr.bf16.mxu0 %v3452
  %3824 = vmatpush1.bf16.msra.mxu0 %v3451
  %3825 = vmatprep.subr.bf16.mxu0 %v3459
  %3826 = vmatpush1.bf16.msra.mxu0 %v3458
  %3827 = vmatprep.subr.bf16.mxu0 %v3466
  %3828 = vmatpush1.bf16.msra.mxu0 %v3465
  %3829 = vmatprep.subr.bf16.mxu0 %v3473
  %3830 = vmatpush1.bf16.msra.mxu0 %v3472
  %3831 = vmatprep.subr.bf16.mxu0 %v3480
  %3832 = vmatpush1.bf16.msra.mxu0 %v3479
  %3833 = vmatprep.subr.bf16.mxu0 %v3487
  %3834 = vmatpush1.bf16.msra.mxu0 %v3486
  %3835 = vmatprep.subr.bf16.mxu0 %v3494
  %3836 = vmatpush1.bf16.msra.mxu0 %v3493
  %3837 = vmatprep.subr.bf16.mxu0 %v3501
  %3838 = vmatpush1.bf16.msra.mxu0 %v3500
  %3839 = vmatprep.subr.bf16.mxu0 %v3508
  %3840 = vmatpush1.bf16.msra.mxu0 %v3507
  %3841 = vmatprep.subr.bf16.mxu0 %v3515
  %3842 = vmatpush1.bf16.msra.mxu0 %v3514
  %3843 = vmatprep.subr.bf16.mxu0 %v3522
  %3844 = vmatpush1.bf16.msra.mxu0 %v3521
  %3845 = vmatprep.subr.bf16.mxu0 %v3529
  %3846 = vmatpush1.bf16.msra.mxu0 %v3528
  %3847 = vmatprep.subr.bf16.mxu0 %v3536
  %3848 = vmatpush1.bf16.msra.mxu0 %v3535
  %3849 = vmatprep.subr.bf16.mxu0 %v3543
  %3850 = vmatpush1.bf16.msra.mxu0 %v3542
  %3851 = vmatprep.subr.bf16.mxu0 %v3550
  %3852 = vmatpush1.bf16.msra.mxu0 %v3549
  %3853 = vmatprep.mubr.bf16.mxu0 %v2334
  %3854 = vmatmul.mubr.bf16.gmra.mrb[0].mxu0 %v2333
  %v3855 = vpop.f32.mrb[0].mxu0
  %v3856 = vadd.f32 %v3815, %v3855
  %v3857 = vpop.f32.mrb[0].mxu0
  %v3858 = vadd.f32 %v3817, %v3857
  %v3859 = vpop.f32.mrb[0].mxu0
  %v3860 = vpop.f32.mrb[0].mxu0
  %3861 = vdwg.mxu0
  %3862 = vmatprep.subr.bf16.mxu0 %v3335
  %3863 = vmatpush1.bf16.msra.mxu0 %v3334
  %3864 = vmatprep.subr.bf16.mxu0 %v3342
  %3865 = vmatpush1.bf16.msra.mxu0 %v3341
  %3866 = vmatprep.subr.bf16.mxu0 %v3349
  %3867 = vmatpush1.bf16.msra.mxu0 %v3348
  %3868 = vmatprep.subr.bf16.mxu0 %v3356
  %3869 = vmatpush1.bf16.msra.mxu0 %v3355
  %3870 = vmatprep.subr.bf16.mxu0 %v3363
  %3871 = vmatpush1.bf16.msra.mxu0 %v3362
  %3872 = vmatprep.subr.bf16.mxu0 %v3370
  %3873 = vmatpush1.bf16.msra.mxu0 %v3369
  %3874 = vmatprep.subr.bf16.mxu0 %v3377
  %3875 = vmatpush1.bf16.msra.mxu0 %v3376
  %3876 = vmatprep.subr.bf16.mxu0 %v3384
  %3877 = vmatpush1.bf16.msra.mxu0 %v3383
  %3878 = vmatprep.subr.bf16.mxu0 %v3391
  %3879 = vmatpush1.bf16.msra.mxu0 %v3390
  %3880 = vmatprep.subr.bf16.mxu0 %v3398
  %3881 = vmatpush1.bf16.msra.mxu0 %v3397
  %3882 = vmatprep.subr.bf16.mxu0 %v3405
  %3883 = vmatpush1.bf16.msra.mxu0 %v3404
  %3884 = vmatprep.subr.bf16.mxu0 %v3412
  %3885 = vmatpush1.bf16.msra.mxu0 %v3411
  %3886 = vmatprep.subr.bf16.mxu0 %v3419
  %3887 = vmatpush1.bf16.msra.mxu0 %v3418
  %3888 = vmatprep.subr.bf16.mxu0 %v3426
  %3889 = vmatpush1.bf16.msra.mxu0 %v3425
  %3890 = vmatprep.subr.bf16.mxu0 %v3433
  %3891 = vmatpush1.bf16.msra.mxu0 %v3432
  %3892 = vmatprep.subr.bf16.mxu0 %v3440
  %3893 = vmatpush1.bf16.msra.mxu0 %v3439
  %3894 = vmatprep.mubr.bf16.mxu0 %v2332
  %3895 = vmatmul.mubr.bf16.gmra.mrb[0].mxu0 %v2331
  %v3896 = vpop.f32.mrb[0].mxu0
  %v3897 = vadd.f32 %v2604, %v3896
  %v3898 = vpop.f32.mrb[0].mxu0
  %v3899 = vadd.f32 %v2608, %v3898
  %v3900 = vpop.f32.mrb[0].mxu0
  %v3901 = vpop.f32.mrb[0].mxu0
  %3902 = vdwg.mxu0
  %3903 = vmatprep.subr.bf16.mxu0 %v3447
  %3904 = vmatpush1.bf16.msra.mxu0 %v3446
  %3905 = vmatprep.subr.bf16.mxu0 %v3454
  %3906 = vmatpush1.bf16.msra.mxu0 %v3453
  %3907 = vmatprep.subr.bf16.mxu0 %v3461
  %3908 = vmatpush1.bf16.msra.mxu0 %v3460
  %3909 = vmatprep.subr.bf16.mxu0 %v3468
  %3910 = vmatpush1.bf16.msra.mxu0 %v3467
  %3911 = vmatprep.subr.bf16.mxu0 %v3475
  %3912 = vmatpush1.bf16.msra.mxu0 %v3474
  %3913 = vmatprep.subr.bf16.mxu0 %v3482
  %3914 = vmatpush1.bf16.msra.mxu0 %v3481
  %3915 = vmatprep.subr.bf16.mxu0 %v3489
  %3916 = vmatpush1.bf16.msra.mxu0 %v3488
  %3917 = vmatprep.subr.bf16.mxu0 %v3496
  %3918 = vmatpush1.bf16.msra.mxu0 %v3495
  %3919 = vmatprep.subr.bf16.mxu0 %v3503
  %3920 = vmatpush1.bf16.msra.mxu0 %v3502
  %3921 = vmatprep.subr.bf16.mxu0 %v3510
  %3922 = vmatpush1.bf16.msra.mxu0 %v3509
  %3923 = vmatprep.subr.bf16.mxu0 %v3517
  %3924 = vmatpush1.bf16.msra.mxu0 %v3516
  %3925 = vmatprep.subr.bf16.mxu0 %v3524
  %3926 = vmatpush1.bf16.msra.mxu0 %v3523
  %3927 = vmatprep.subr.bf16.mxu0 %v3531
  %3928 = vmatpush1.bf16.msra.mxu0 %v3530
  %3929 = vmatprep.subr.bf16.mxu0 %v3538
  %3930 = vmatpush1.bf16.msra.mxu0 %v3537
  %3931 = vmatprep.subr.bf16.mxu0 %v3545
  %3932 = vmatpush1.bf16.msra.mxu0 %v3544
  %3933 = vmatprep.subr.bf16.mxu0 %v3552
  %3934 = vmatpush1.bf16.msra.mxu0 %v3551
  %3935 = vmatprep.mubr.bf16.mxu0 %v2334
  %3936 = vmatmul.mubr.bf16.gmra.mrb[0].mxu0 %v2333
  %v3937 = vpop.f32.mrb[0].mxu0
  %v3938 = vadd.f32 %v3897, %v3937
  %v3939 = vpop.f32.mrb[0].mxu0
  %v3940 = vadd.f32 %v3899, %v3939
  %v3941 = vpop.f32.mrb[0].mxu0
  %v3942 = vpop.f32.mrb[0].mxu0
  %3943 = vdwg.mxu0
  %3944 = vmatprep.subr.bf16.mxu0 %v3337
  %3945 = vmatpush1.bf16.msra.mxu0 %v3336
  %3946 = vmatprep.subr.bf16.mxu0 %v3344
  %3947 = vmatpush1.bf16.msra.mxu0 %v3343
  %3948 = vmatprep.subr.bf16.mxu0 %v3351
  %3949 = vmatpush1.bf16.msra.mxu0 %v3350
  %3950 = vmatprep.subr.bf16.mxu0 %v3358
  %3951 = vmatpush1.bf16.msra.mxu0 %v3357
  %3952 = vmatprep.subr.bf16.mxu0 %v3365
  %3953 = vmatpush1.bf16.msra.mxu0 %v3364
  %3954 = vmatprep.subr.bf16.mxu0 %v3372
  %3955 = vmatpush1.bf16.msra.mxu0 %v3371
  %3956 = vmatprep.subr.bf16.mxu0 %v3379
  %3957 = vmatpush1.bf16.msra.mxu0 %v3378
  %3958 = vmatprep.subr.bf16.mxu0 %v3386
  %3959 = vmatpush1.bf16.msra.mxu0 %v3385
  %3960 = vmatprep.subr.bf16.mxu0 %v3393
  %3961 = vmatpush1.bf16.msra.mxu0 %v3392
  %3962 = vmatprep.subr.bf16.mxu0 %v3400
  %3963 = vmatpush1.bf16.msra.mxu0 %v3399
  %3964 = vmatprep.subr.bf16.mxu0 %v3407
  %3965 = vmatpush1.bf16.msra.mxu0 %v3406
  %3966 = vmatprep.subr.bf16.mxu0 %v3414
  %3967 = vmatpush1.bf16.msra.mxu0 %v3413
  %3968 = vmatprep.subr.bf16.mxu0 %v3421
  %3969 = vmatpush1.bf16.msra.mxu0 %v3420
  %3970 = vmatprep.subr.bf16.mxu0 %v3428
  %3971 = vmatpush1.bf16.msra.mxu0 %v3427
  %3972 = vmatprep.subr.bf16.mxu0 %v3435
  %3973 = vmatpush1.bf16.msra.mxu0 %v3434
  %3974 = vmatprep.subr.bf16.mxu0 %v3442
  %3975 = vmatpush1.bf16.msra.mxu0 %v3441
  %3976 = vmatprep.mubr.bf16.mxu0 %v2332
  %3977 = vmatmul.mubr.bf16.gmra.mrb[0].mxu0 %v2331
  %v3978 = vpop.f32.mrb[0].mxu0
  %v3979 = vadd.f32 %v2612, %v3978
  %v3980 = vpop.f32.mrb[0].mxu0
  %v3981 = vadd.f32 %v2616, %v3980
  %v3982 = vpop.f32.mrb[0].mxu0
  %v3983 = vpop.f32.mrb[0].mxu0
  %3984 = vdwg.mxu0
  %3985 = vmatprep.subr.bf16.mxu0 %v3449
  %3986 = vmatpush1.bf16.msra.mxu0 %v3448
  %3987 = vmatprep.subr.bf16.mxu0 %v3456
  %3988 = vmatpush1.bf16.msra.mxu0 %v3455
  %3989 = vmatprep.subr.bf16.mxu0 %v3463
  %3990 = vmatpush1.bf16.msra.mxu0 %v3462
  %3991 = vmatprep.subr.bf16.mxu0 %v3470
  %3992 = vmatpush1.bf16.msra.mxu0 %v3469
  %3993 = vmatprep.subr.bf16.mxu0 %v3477
  %3994 = vmatpush1.bf16.msra.mxu0 %v3476
  %3995 = vmatprep.subr.bf16.mxu0 %v3484
  %3996 = vmatpush1.bf16.msra.mxu0 %v3483
  %3997 = vmatprep.subr.bf16.mxu0 %v3491
  %3998 = vmatpush1.bf16.msra.mxu0 %v3490
  %3999 = vmatprep.subr.bf16.mxu0 %v3498
  %4000 = vmatpush1.bf16.msra.mxu0 %v3497
  %4001 = vmatprep.subr.bf16.mxu0 %v3505
  %4002 = vmatpush1.bf16.msra.mxu0 %v3504
  %4003 = vmatprep.subr.bf16.mxu0 %v3512
  %4004 = vmatpush1.bf16.msra.mxu0 %v3511
  %4005 = vmatprep.subr.bf16.mxu0 %v3519
  %4006 = vmatpush1.bf16.msra.mxu0 %v3518
  %4007 = vmatprep.subr.bf16.mxu0 %v3526
  %4008 = vmatpush1.bf16.msra.mxu0 %v3525
  %4009 = vmatprep.subr.bf16.mxu0 %v3533
  %4010 = vmatpush1.bf16.msra.mxu0 %v3532
  %4011 = vmatprep.subr.bf16.mxu0 %v3540
  %4012 = vmatpush1.bf16.msra.mxu0 %v3539
  %4013 = vmatprep.subr.bf16.mxu0 %v3547
  %4014 = vmatpush1.bf16.msra.mxu0 %v3546
  %4015 = vmatprep.subr.bf16.mxu0 %v3554
  %4016 = vmatpush1.bf16.msra.mxu0 %v3553
  %4017 = vmatprep.mubr.bf16.mxu0 %v2334
  %4018 = vmatmul.mubr.bf16.gmra.mrb[0].mxu0 %v2333
  %v4019 = vpop.f32.mrb[0].mxu0
  %v4020 = vadd.f32 %v3979, %v4019
  %v4021 = vpop.f32.mrb[0].mxu0
  %v4022 = vadd.f32 %v3981, %v4021
  %v4023 = vpop.f32.mrb[0].mxu0
  %v4024 = vpop.f32.mrb[0].mxu0
  %4025 = vdwg.mxu0
  %4026 = vmatprep.subr.bf16.mxu0 0
  %4027 = vmatpush1.bf16.msra.mxu0 %v3338
  %4028 = vmatprep.subr.bf16.mxu0 0
  %4029 = vmatpush1.bf16.msra.mxu0 %v3345
  %4030 = vmatprep.subr.bf16.mxu0 0
  %4031 = vmatpush1.bf16.msra.mxu0 %v3352
  %4032 = vmatprep.subr.bf16.mxu0 0
  %4033 = vmatpush1.bf16.msra.mxu0 %v3359
  %4034 = vmatprep.subr.bf16.mxu0 0
  %4035 = vmatpush1.bf16.msra.mxu0 %v3366
  %4036 = vmatprep.subr.bf16.mxu0 0
  %4037 = vmatpush1.bf16.msra.mxu0 %v3373
  %4038 = vmatprep.subr.bf16.mxu0 0
  %4039 = vmatpush1.bf16.msra.mxu0 %v3380
  %4040 = vmatprep.subr.bf16.mxu0 0
  %4041 = vmatpush1.bf16.msra.mxu0 %v3387
  %4042 = vmatprep.subr.bf16.mxu0 0
  %4043 = vmatpush1.bf16.msra.mxu0 %v3394
  %4044 = vmatprep.subr.bf16.mxu0 0
  %4045 = vmatpush1.bf16.msra.mxu0 %v3401
  %4046 = vmatprep.subr.bf16.mxu0 0
  %4047 = vmatpush1.bf16.msra.mxu0 %v3408
  %4048 = vmatprep.subr.bf16.mxu0 0
  %4049 = vmatpush1.bf16.msra.mxu0 %v3415
  %4050 = vmatprep.subr.bf16.mxu0 0
  %4051 = vmatpush1.bf16.msra.mxu0 %v3422
  %4052 = vmatprep.subr.bf16.mxu0 0
  %4053 = vmatpush1.bf16.msra.mxu0 %v3429
  %4054 = vmatprep.subr.bf16.mxu0 0
  %4055 = vmatpush1.bf16.msra.mxu0 %v3436
  %4056 = vmatprep.subr.bf16.mxu0 0
  %4057 = vmatpush1.bf16.msra.mxu0 %v3443
  %4058 = vmatprep.mubr.bf16.mxu0 %v2332
  %4059 = vmatmul.mubr.bf16.gmra.mrb[0].mxu0 %v2331
  %v4060 = vpop.f32.mrb[0].mxu0
  %v4061 = vadd.f32 %v2620, %v4060
  %v4062 = vpop.f32.mrb[0].mxu0
  %v4063 = vpop.f32.mrb[0].mxu0
  %v4064 = vpop.f32.mrb[0].mxu0
  %4065 = vdwg.mxu0
  %4066 = vmatprep.subr.bf16.mxu0 0
  %4067 = vmatpush1.bf16.msra.mxu0 %v3450
  %4068 = vmatprep.subr.bf16.mxu0 0
  %4069 = vmatpush1.bf16.msra.mxu0 %v3457
  %4070 = vmatprep.subr.bf16.mxu0 0
  %4071 = vmatpush1.bf16.msra.mxu0 %v3464
  %4072 = vmatprep.subr.bf16.mxu0 0
  %4073 = vmatpush1.bf16.msra.mxu0 %v3471
  %4074 = vmatprep.subr.bf16.mxu0 0
  %4075 = vmatpush1.bf16.msra.mxu0 %v3478
  %4076 = vmatprep.subr.bf16.mxu0 0
  %4077 = vmatpush1.bf16.msra.mxu0 %v3485
  %4078 = vmatprep.subr.bf16.mxu0 0
  %4079 = vmatpush1.bf16.msra.mxu0 %v3492
  %4080 = vmatprep.subr.bf16.mxu0 0
  %4081 = vmatpush1.bf16.msra.mxu0 %v3499
  %4082 = vmatprep.subr.bf16.mxu0 0
  %4083 = vmatpush1.bf16.msra.mxu0 %v3506
  %4084 = vmatprep.subr.bf16.mxu0 0
  %4085 = vmatpush1.bf16.msra.mxu0 %v3513
  %4086 = vmatprep.subr.bf16.mxu0 0
  %4087 = vmatpush1.bf16.msra.mxu0 %v3520
  %4088 = vmatprep.subr.bf16.mxu0 0
  %4089 = vmatpush1.bf16.msra.mxu0 %v3527
  %4090 = vmatprep.subr.bf16.mxu0 0
  %4091 = vmatpush1.bf16.msra.mxu0 %v3534
  %4092 = vmatprep.subr.bf16.mxu0 0
  %4093 = vmatpush1.bf16.msra.mxu0 %v3541
  %4094 = vmatprep.subr.bf16.mxu0 0
  %4095 = vmatpush1.bf16.msra.mxu0 %v3548
  %4096 = vmatprep.subr.bf16.mxu0 0
  %4097 = vmatpush1.bf16.msra.mxu0 %v3555
  %4098 = vmatprep.mubr.bf16.mxu0 %v2334
  %4099 = vmatmul.mubr.bf16.gmra.mrb[0].mxu0 %v2333
  %v4100 = vpop.f32.mrb[0].mxu0
  %v4101 = vadd.f32 %v4061, %v4100
  %v4102 = vpop.f32.mrb[0].mxu0
  %v4103 = vpop.f32.mrb[0].mxu0
  %v4104 = vpop.f32.mrb[0].mxu0
  %4105 = vdwg.mxu0
  %v4106 = vxor.u32 %v3856, 2147483648
  %v4107 = vxor.u32 %v3858, 2147483648
  %v4108 = vxor.u32 %v3938, 2147483648
  %v4109 = vxor.u32 %v3940, 2147483648
  %v4110 = vxor.u32 %v4020, 2147483648
  %v4111 = vxor.u32 %v4022, 2147483648
  %v4112 = vxor.u32 %v4101, 2147483648
  %v4113 = vmul.f32 %v4106, 1.442695
  %v4114 = vpow.pop %v4113
  %v4115 = vmul.f32 %v4107, 1.442695
  %v4116 = vpow.pop %v4115
  %v4117 = vmul.f32 %v4108, 1.442695
  %v4118 = vpow.pop %v4117
  %v4119 = vmul.f32 %v4109, 1.442695
  %v4120 = vpow.pop %v4119
  %v4121 = vmul.f32 %v4110, 1.442695
  %v4122 = vpow.pop %v4121
  %v4123 = vmul.f32 %v4111, 1.442695
  %v4124 = vpow.pop %v4123
  %v4125 = vmul.f32 %v4112, 1.442695
  %v4126 = vpow.pop %v4125
  %v4127 = vadd.f32 %v4114, 1.0
  %v4128 = vadd.f32 %v4116, 1.0
  %v4129 = vadd.f32 %v4118, 1.0
  %v4130 = vadd.f32 %v4120, 1.0
  %v4131 = vadd.f32 %v4122, 1.0
  %v4132 = vadd.f32 %v4124, 1.0
  %v4133 = vadd.f32 %v4126, 1.0
  %v4134 = vrcp.pop %v4127
  %v4135 = vmul.f32 1.0, %v4134
  %v4136 = vrcp.pop %v4128
  %v4137 = vmul.f32 1.0, %v4136
  %v4138 = vrcp.pop %v4129
  %v4139 = vmul.f32 1.0, %v4138
  %v4140 = vrcp.pop %v4130
  %v4141 = vmul.f32 1.0, %v4140
  %v4142 = vrcp.pop %v4131
  %v4143 = vmul.f32 1.0, %v4142
  %v4144 = vrcp.pop %v4132
  %v4145 = vmul.f32 1.0, %v4144
  %v4146 = vrcp.pop %v4133
  %v4147 = vmul.f32 1.0, %v4146
  %4148 = vst [vmem:[%s10] sm:$0xff] %v4135
  %4149 = vst [vmem:[%s10 + $0x8] sm:$0xff] %v4137
  %4150 = vst [vmem:[%s10 + $0x10] sm:$0xff] %v4139
  %4151 = vst [vmem:[%s10 + $0x18] sm:$0xff] %v4141
  %4152 = vst [vmem:[%s10 + $0x20] sm:$0xff] %v4143
  %4153 = vst [vmem:[%s10 + $0x28] sm:$0xff] %v4145
  %4154 = vst [vmem:[%s10 + $0x30] sm:$0xff] %v4147
  %4155 = vst [vmem:[%s11] sm:$0xff] %v2112
  // Predicated region
  $region42: #{forward.1} parent=0 // pred_check
    _
  $region43: #{forward.1} parent=0 // pred_check_branch
    %4157 = sbr.rel (0) target = $region45
  $region44: #{forward.1} parent=0 // pred_region
    _
  $region45: #{forward.1} parent=0 // pred_fallthru
    _
  // Predicated region
  $region46: #{forward.1} parent=0 // pred_check
    _
  $region47: #{forward.1} parent=0 // pred_check_branch
    %4159 = sbr.rel (0) target = $region49
  $region48: #{forward.1} parent=0 // pred_region
    _
  $region49: #{forward.1} parent=0 // pred_fallthru
    _
  // Predicated region
  $region50: #{forward.1} parent=0 // pred_check
    _
  $region51: #{forward.1} parent=0 // pred_check_branch
    %4161 = sbr.rel (0) target = $region53
  $region52: #{forward.1} parent=0 // pred_region
    _
  $region53: #{forward.1} parent=0 // pred_fallthru
    _
  // Predicated region
  $region54: #{forward.1} parent=0 // pred_check
    _
  $region55: #{forward.1} parent=0 // pred_check_branch
    %4163 = sbr.rel (0) target = $region57
  $region56: #{forward.1} parent=0 // pred_region
    _
  $region57: #{forward.1} parent=0 // pred_fallthru
    _

</llo_original>
